<compile_context>
chip_gen: v7x
topology: tpu7x:2x2x1
jax: 0.10.0
libtpu: 0.0.40
codegen_flags: <defaults>
</compile_context>

<pallas_src>
import functools
import math

import jax
import jax.numpy as jnp
from jax import lax
from jax.experimental import pallas as pl
from jax.experimental.pallas import tpu as pltpu


CFG = dict(hidden=32, num_layers=2, num_heads=4, intermediate=128,
           vocab=64, max_pos=32, num_classes=3, pad_token_id=1)

LANE = 128          # padded classifier width (lane-dense output)
CLS_ROWS = 8        # sublane pad for the per-batch CLS-logit tile


# ----------------------------- in-kernel helpers -----------------------------

def _layernorm(v, g, b, eps=1e-12):
    mu = jnp.mean(v, axis=-1, keepdims=True)
    var = jnp.mean((v - mu) ** 2, axis=-1, keepdims=True)
    return (v - mu) * lax.rsqrt(var + eps) * g + b


def _gelu(x):
    # TODO(synk): HF BERT/Camembert use exact erf-GELU; tanh approximation kept
    # for robust TPU lowering (small numeric drift vs the PyTorch reference).
    c = math.sqrt(2.0 / math.pi)
    return 0.5 * x * (1.0 + jnp.tanh(c * (x + 0.044715 * x * x * x)))


def _mm(a, w):
    # MXU matmul: bf16 operands (weights are already bf16), f32 accumulation.
    return jnp.dot(a.astype(jnp.bfloat16), w, preferred_element_type=jnp.float32)


# ------------------------------- fused kernel --------------------------------

def fused_bert_kernel(emb_ref, bias_ref, misc_ref, wqkv_ref, wo_ref, w1_ref,
                      w2_ref, vec_ref, clsw_ref, out_ref, *, num_heads, num_layers):
    """One grid step = one batch element: (S, H) activations end-to-end."""
    S, H = emb_ref.shape
    I = w1_ref.shape[2]
    hd = H // num_heads
    scale = 1.0 / math.sqrt(hd)

    misc = misc_ref[...]          # (8, 128) packed emb-LN / classifier-bias vectors (f32)
    bias = bias_ref[...]          # (S, S) additive attention-mask bias, hoisted once

    # Embedding LayerNorm (embedding gathers + sum happen in the wrapper).
    x = _layernorm(emb_ref[...], misc[0, :H], misc[1, :H])            # (S, H) f32

    for l in range(num_layers):   # statically unrolled; weights VMEM-resident
        vec = vec_ref[l]          # (8, 128) packed per-layer 1-D params (f32)
        wqkv = wqkv_ref[l]        # (H, 3H) bf16
        wo = wo_ref[l]            # (H, H)  bf16
        w1 = w1_ref[l]            # (H, I)  bf16
        w2 = w2_ref[l]            # (I, H)  bf16

        # ---- fused Q/K/V projection; softmax scale folded into q once ----
        qkv = _mm(x, wqkv) + vec[0, :3 * H]                            # (S, 3H) f32
        q = qkv[:, :H] * scale
        k = qkv[:, H:2 * H]
        v = qkv[:, 2 * H:3 * H]

        # ---- per-head attention (statically unrolled; no reshapes/transposes,
        #      every op is an aligned 2-D MXU matmul).  Per-head context is
        #      folded directly into its W_O row-block (no lane concat). ----
        attn = None
        for h in range(num_heads):
            sl = slice(h * hd, (h + 1) * hd)
            qh = q[:, sl].astype(jnp.bfloat16)                         # (S, hd)
            kh = k[:, sl].astype(jnp.bfloat16)
            vh = v[:, sl].astype(jnp.bfloat16)
            s = lax.dot_general(qh, kh, (((1,), (1,)), ((), ())),
                                preferred_element_type=jnp.float32) + bias   # (S, S)
            s = s - jnp.max(s, axis=-1, keepdims=True)
            p = jnp.exp(s)
            p = p * pl.reciprocal(jnp.sum(p, axis=-1, keepdims=True), approx=True)
            ctx = jnp.dot(p.astype(jnp.bfloat16), vh,
                          preferred_element_type=jnp.float32)          # (S, hd)
            part = _mm(ctx, wo[sl, :])                                 # (S, H)
            attn = part if attn is None else attn + part
        attn = attn + vec[1, :H]

        h1 = _layernorm(x + attn, vec[2, :H], vec[3, :H])

        # ---- feed-forward ----
        inter = _gelu(_mm(h1, w1) + vec[4, :I])
        ffn = _mm(inter, w2) + vec[5, :H]
        x = _layernorm(h1 + ffn, vec[6, :H], vec[7, :H])

    # ---- classifier on the CLS row only (nn.Dropout(0.3) is identity in eval).
    # CLS row broadcast across 8 sublanes so matmul + store stay (8,128)-aligned
    # and lane-dense (classes padded to 128 lanes); wrapper slices row 0 / :C.
    cls_rows = jnp.broadcast_to(x[0:1, :], (CLS_ROWS, H))              # (8, H)
    logits = _mm(cls_rows, clsw_ref[...]) + misc[2, :]                 # (8, 128) f32
    out_ref[...] = logits[None]                                        # (1, 8, 128)


# ----------------------------- parameters & packing ---------------------------

def init_params(key, cfg):
    H, I = cfg["hidden"], cfg["intermediate"]
    keys = iter(jax.random.split(key, 64))

    def nrm(shape):
        return (0.02 * jax.random.normal(next(keys), shape)).astype(jnp.float32)

    params = dict(
        word_emb=nrm((cfg["vocab"], H)),
        pos_emb=nrm((cfg["max_pos"], H)),
        type_emb=nrm((2, H)),
        emb_ln_g=jnp.ones((H,), jnp.float32),
        emb_ln_b=jnp.zeros((H,), jnp.float32),
        cls_w=nrm((H, cfg["num_classes"])),
        cls_b=jnp.zeros((cfg["num_classes"],), jnp.float32),
        layers=[],
    )
    for _ in range(cfg["num_layers"]):
        params["layers"].append(dict(
            wq=nrm((H, H)), bq=jnp.zeros((H,), jnp.float32),
            wk=nrm((H, H)), bk=jnp.zeros((H,), jnp.float32),
            wv=nrm((H, H)), bv=jnp.zeros((H,), jnp.float32),
            wo=nrm((H, H)), bo=jnp.zeros((H,), jnp.float32),
            ln1_g=jnp.ones((H,), jnp.float32), ln1_b=jnp.zeros((H,), jnp.float32),
            w1=nrm((H, I)), b1=jnp.zeros((I,), jnp.float32),
            w2=nrm((I, H)), b2=jnp.zeros((H,), jnp.float32),
            ln2_g=jnp.ones((H,), jnp.float32), ln2_b=jnp.zeros((H,), jnp.float32),
        ))
    return params


def pack_params(params, cfg):
    """Stack per-layer matrices (bf16) and pack every small 1-D parameter into
    (8,128) f32 tiles; classifier weight lane-padded to 128 classes so the
    kernel output is lane-dense.

    TODO(synk): at camembert-base scale, also pad every stacked weight's last
    dim to a multiple of 128 (w2's H=32 / wqkv's 3H=96 lane-pad 4x / 1.3x in
    VMEM here) before streaming weights per layer.
    """
    H = cfg["hidden"]
    C = cfg["num_classes"]

    def row(v):
        v = v.astype(jnp.float32)
        return jnp.pad(v, (0, 128 - v.shape[0]))

    L = params["layers"]
    wqkv = jnp.stack([jnp.concatenate([lp["wq"], lp["wk"], lp["wv"]], axis=1)
                      for lp in L]).astype(jnp.bfloat16)                      # (L, H, 3H)
    wo = jnp.stack([lp["wo"] for lp in L]).astype(jnp.bfloat16)               # (L, H, H)
    w1 = jnp.stack([lp["w1"] for lp in L]).astype(jnp.bfloat16)               # (L, H, I)
    w2 = jnp.stack([lp["w2"] for lp in L]).astype(jnp.bfloat16)               # (L, I, H)
    vec = jnp.stack([
        jnp.stack([row(jnp.concatenate([lp["bq"], lp["bk"], lp["bv"]])),
                   row(lp["bo"]), row(lp["ln1_g"]), row(lp["ln1_b"]),
                   row(lp["b1"]), row(lp["b2"]), row(lp["ln2_g"]), row(lp["ln2_b"])])
        for lp in L])                                                         # (L, 8, 128) f32
    misc = jnp.stack([row(params["emb_ln_g"]), row(params["emb_ln_b"]),
                      row(params["cls_b"])]
                     + [jnp.zeros((128,), jnp.float32)] * 5)                  # (8, 128) f32
    cls_w = jnp.zeros((H, LANE), jnp.float32).at[:, :C].set(
        params["cls_w"]).astype(jnp.bfloat16)                                 # (H, 128) bf16
    return dict(word_emb=params["word_emb"], pos_emb=params["pos_emb"],
                type_emb=params["type_emb"], misc=misc, wqkv=wqkv, wo=wo,
                w1=w1, w2=w2, vec=vec, cls_w=cls_w)


# ------------------------------------ forward ---------------------------------

def _cost_estimate(cfg, B, S):
    H, I = cfg["hidden"], cfg["intermediate"]
    L, nh = cfg["num_layers"], cfg["num_heads"]
    per_layer = (2 * S * H * 3 * H        # QKV
                 + 2 * 2 * S * S * H      # scores + context
                 + 2 * S * H * H          # W_O
                 + 2 * 2 * S * H * I)     # FFN
    flops = B * (L * per_layer + 2 * CLS_ROWS * H * LANE)
    transcendentals = B * L * (nh * S * S + S * I)
    weight_bytes = (2 * L * (H * 3 * H + H * H + 2 * H * I)
                    + L * 8 * 128 * 4 + 8 * 128 * 4 + H * LANE * 2)
    act_bytes = B * (S * H * 4 + S * S * 4 + CLS_ROWS * LANE * 4)
    return pl.CostEstimate(flops=flops, transcendentals=transcendentals,
                           bytes_accessed=weight_bytes + act_bytes)


def bert_classifier_forward(packed, input_ids, attention_mask, cfg):
    B, S = input_ids.shape
    H, I, L = cfg["hidden"], cfg["intermediate"], cfg["num_layers"]
    C = cfg["num_classes"]
    pad = cfg["pad_token_id"]

    # Embedding gathers are glue; summed embedding feeds the kernel directly,
    # pre-flattened to (B*S, H) so the kernel never reshapes across tiles.
    # TODO(synk): pull the gathers in-kernel (SMEM ids + DMA gather) to avoid
    # the emb HBM round-trip once shapes are non-trivial.
    mask_ids = (input_ids != pad).astype(jnp.int32)
    # Camembert/RoBERTa position ids: cumsum over non-pad tokens, offset by padding_idx.
    position_ids = jnp.cumsum(mask_ids, axis=1) * mask_ids + pad
    emb = (packed["word_emb"][input_ids]
           + packed["pos_emb"][position_ids]
           + packed["type_emb"][0]).astype(jnp.float32)
    emb_flat = emb.reshape(B * S, H)

    # Extended attention mask -> additive bias, pre-broadcast to (S, S) per
    # batch in the wrapper (layout plumbing; avoids in-kernel broadcast_in_dim).
    neg = (1.0 - attention_mask.astype(jnp.float32)) * -1e9               # (B, S)
    bias_bss = jnp.broadcast_to(neg[:, None, :], (B, S, S)).reshape(B * S, S)

    kernel = functools.partial(fused_bert_kernel,
                               num_heads=cfg["num_heads"], num_layers=L)

    # Single fused pallas_call: embedding-LN + all encoder layers + classifier.
    # Total weights ~100 KB -> fully VMEM-resident (constant index_maps, fetched
    # once); grid=(B,) "parallel" lets v7x shard batches across its 2 TCs.
    # TODO(synk): at camembert-base scale (~170 MB bf16 weights > VMEM on all
    # generations), switch to grid=(B, num_layers) with "arbitrary" layer axis,
    # per-layer BlockSpec-streamed (double-buffered) wqkv/wo/w1/w2, activations
    # in persistent VMEM scratch, and raise vmem_limit_bytes on v5e.
    grid_spec = pltpu.PrefetchScalarGridSpec(
        num_scalar_prefetch=0,
        grid=(B,),
        in_specs=[
            pl.BlockSpec((S, H), lambda b: (b, 0)),              # emb (B*S, H)
            pl.BlockSpec((S, S), lambda b: (b, 0)),              # mask bias (B*S, S)
            pl.BlockSpec((8, 128), lambda b: (0, 0)),            # misc
            pl.BlockSpec((L, H, 3 * H), lambda b: (0, 0, 0)),    # wqkv
            pl.BlockSpec((L, H, H), lambda b: (0, 0, 0)),        # wo
            pl.BlockSpec((L, H, I), lambda b: (0, 0, 0)),        # w1
            pl.BlockSpec((L, I, H), lambda b: (0, 0, 0)),        # w2
            pl.BlockSpec((L, 8, 128), lambda b: (0, 0, 0)),      # vec
            pl.BlockSpec((H, LANE), lambda b: (0, 0)),           # cls_w (padded)
        ],
        out_specs=pl.BlockSpec((1, CLS_ROWS, LANE), lambda b: (b, 0, 0)),
    )

    out = pl.pallas_call(
        kernel,
        out_shape=jax.ShapeDtypeStruct((B, CLS_ROWS, LANE), jnp.float32),
        grid_spec=grid_spec,
        compiler_params=pltpu.CompilerParams(dimension_semantics=("parallel",)),
        cost_estimate=_cost_estimate(cfg, B, S),
    )(emb_flat, bias_bss, packed["misc"], packed["wqkv"], packed["wo"],
      packed["w1"], packed["w2"], packed["vec"], packed["cls_w"])

    # CLS logits: any sublane row holds the CLS projection; real classes in :C.
    return out[:, 0, :C]


# ------------------------------------ main ------------------------------------

if __name__ == "__main__":
    key = jax.random.PRNGKey(0)
    k_param, k_ids = jax.random.split(key)

    B, S = 2, 8
    params = init_params(k_param, CFG)
    packed = pack_params(params, CFG)
    input_ids = jax.random.randint(k_ids, (B, S), 2, CFG["vocab"], dtype=jnp.int32)
    attention_mask = jnp.ones((B, S), dtype=jnp.int32)

    fwd = jax.jit(lambda ids, m: bert_classifier_forward(packed, ids, m, CFG))
    logits = jax.block_until_ready(fwd(input_ids, attention_mask))
    assert logits.shape == (B, CFG["num_classes"])
    assert bool(jnp.all(jnp.isfinite(logits)))
    print("KERNEL_OK")
</pallas_src>

<mosaic_0001>
module attributes {stable_mosaic.version = 11 : i64} {
  func.func @fused_bert_kernel(%arg0: i32, %arg1: memref<8x32xf32, #tpu.memory_space<vmem>>, %arg2: memref<8x8xf32, #tpu.memory_space<vmem>>, %arg3: memref<8x128xf32, #tpu.memory_space<vmem>>, %arg4: memref<2x32x96xbf16, #tpu.memory_space<vmem>>, %arg5: memref<2x32x32xbf16, #tpu.memory_space<vmem>>, %arg6: memref<2x32x128xbf16, #tpu.memory_space<vmem>>, %arg7: memref<2x128x32xbf16, #tpu.memory_space<vmem>>, %arg8: memref<2x8x128xf32, #tpu.memory_space<vmem>>, %arg9: memref<32x128xbf16, #tpu.memory_space<vmem>>, %arg10: memref<1x8x128xf32, #tpu.memory_space<vmem>>) attributes {dimension_semantics = [#tpu.dimension_semantics<parallel>], iteration_bounds = array<i64: 2>, scalar_prefetch = 0 : i64, scratch_operands = 0 : i64, tpu.core_type = #tpu.core_type<tc>, window_params = [{transform_indices = @transform_0, window_bounds = array<i64: 8, 32>}, {transform_indices = @transform_1, window_bounds = array<i64: 8, 8>}, {pipeline_mode = #tpu.pipeline_mode<synchronous>, transform_indices = @transform_2, window_bounds = array<i64: 8, 128>}, {pipeline_mode = #tpu.pipeline_mode<synchronous>, transform_indices = @transform_3, window_bounds = array<i64: 2, 32, 96>}, {pipeline_mode = #tpu.pipeline_mode<synchronous>, transform_indices = @transform_4, window_bounds = array<i64: 2, 32, 32>}, {pipeline_mode = #tpu.pipeline_mode<synchronous>, transform_indices = @transform_5, window_bounds = array<i64: 2, 32, 128>}, {pipeline_mode = #tpu.pipeline_mode<synchronous>, transform_indices = @transform_6, window_bounds = array<i64: 2, 128, 32>}, {pipeline_mode = #tpu.pipeline_mode<synchronous>, transform_indices = @transform_7, window_bounds = array<i64: 2, 8, 128>}, {pipeline_mode = #tpu.pipeline_mode<synchronous>, transform_indices = @transform_8, window_bounds = array<i64: 32, 128>}, {transform_indices = @transform_9, window_bounds = array<i64: 1, 8, 128>}]} {
    %c0 = arith.constant 0 : index
    %c0_0 = arith.constant 0 : index
    %0 = vector.load %arg3[%c0, %c0_0] : memref<8x128xf32, #tpu.memory_space<vmem>>, vector<8x128xf32>
    %c0_1 = arith.constant 0 : index
    %c0_2 = arith.constant 0 : index
    %1 = vector.load %arg2[%c0_1, %c0_2] : memref<8x8xf32, #tpu.memory_space<vmem>>, vector<8x8xf32>
    %c0_3 = arith.constant 0 : index
    %c0_4 = arith.constant 0 : index
    %2 = vector.load %arg1[%c0_3, %c0_4] : memref<8x32xf32, #tpu.memory_space<vmem>>, vector<8x32xf32>
    %3 = vector.extract_strided_slice %0 {offsets = [0, 0], sizes = [1, 32], strides = [1, 1]} : vector<8x128xf32> to vector<1x32xf32>
    %4 = vector.shape_cast %3 : vector<1x32xf32> to vector<32xf32>
    %5 = vector.extract_strided_slice %0 {offsets = [1, 0], sizes = [1, 32], strides = [1, 1]} : vector<8x128xf32> to vector<1x32xf32>
    %6 = vector.shape_cast %5 : vector<1x32xf32> to vector<32xf32>
    %cst = arith.constant dense<0.000000e+00> : vector<8xf32>
    %7 = vector.multi_reduction <add>, %2, %cst [1] : vector<8x32xf32> to vector<8xf32>
    %8 = vector.shape_cast %7 : vector<8xf32> to vector<8x1xf32>
    %cst_5 = arith.constant 3.200000e+01 : f32
    %9 = vector.broadcast %cst_5 : f32 to vector<8x1xf32>
    %10 = arith.divf %8, %9 : vector<8x1xf32>
    %11 = vector.broadcast %10 : vector<8x1xf32> to vector<8x32xf32>
    %12 = arith.subf %2, %11 : vector<8x32xf32>
    %13 = arith.mulf %12, %12 : vector<8x32xf32>
    %cst_6 = arith.constant dense<0.000000e+00> : vector<8xf32>
    %14 = vector.multi_reduction <add>, %13, %cst_6 [1] : vector<8x32xf32> to vector<8xf32>
    %15 = vector.shape_cast %14 : vector<8xf32> to vector<8x1xf32>
    %cst_7 = arith.constant 3.200000e+01 : f32
    %16 = vector.broadcast %cst_7 : f32 to vector<8x1xf32>
    %17 = arith.divf %15, %16 : vector<8x1xf32>
    %18 = vector.broadcast %10 : vector<8x1xf32> to vector<8x32xf32>
    %19 = arith.subf %2, %18 : vector<8x32xf32>
    %cst_8 = arith.constant 9.99999996E-13 : f32
    %20 = vector.broadcast %cst_8 : f32 to vector<8x1xf32>
    %21 = arith.addf %17, %20 : vector<8x1xf32>
    %22 = math.rsqrt %21 : vector<8x1xf32>
    %23 = vector.broadcast %22 : vector<8x1xf32> to vector<8x32xf32>
    %24 = arith.mulf %19, %23 : vector<8x32xf32>
    %25 = vector.shape_cast %4 : vector<32xf32> to vector<1x32xf32>
    %26 = vector.broadcast %25 : vector<1x32xf32> to vector<8x32xf32>
    %27 = arith.mulf %24, %26 : vector<8x32xf32>
    %28 = vector.shape_cast %6 : vector<32xf32> to vector<1x32xf32>
    %29 = vector.broadcast %28 : vector<1x32xf32> to vector<8x32xf32>
    %30 = arith.addf %27, %29 : vector<8x32xf32>
    %c0_9 = arith.constant 0 : index
    %c0_10 = arith.constant 0 : index
    %c0_11 = arith.constant 0 : index
    %31 = vector.load %arg8[%c0_9, %c0_10, %c0_11] : memref<2x8x128xf32, #tpu.memory_space<vmem>>, vector<1x8x128xf32>
    %32 = vector.shape_cast %31 : vector<1x8x128xf32> to vector<8x128xf32>
    %c0_12 = arith.constant 0 : index
    %c0_13 = arith.constant 0 : index
    %c0_14 = arith.constant 0 : index
    %33 = vector.load %arg4[%c0_12, %c0_13, %c0_14] : memref<2x32x96xbf16, #tpu.memory_space<vmem>>, vector<1x32x96xbf16>
    %34 = vector.shape_cast %33 : vector<1x32x96xbf16> to vector<32x96xbf16>
    %c0_15 = arith.constant 0 : index
    %c0_16 = arith.constant 0 : index
    %c0_17 = arith.constant 0 : index
    %35 = vector.load %arg5[%c0_15, %c0_16, %c0_17] : memref<2x32x32xbf16, #tpu.memory_space<vmem>>, vector<1x32x32xbf16>
    %36 = vector.shape_cast %35 : vector<1x32x32xbf16> to vector<32x32xbf16>
    %c0_18 = arith.constant 0 : index
    %c0_19 = arith.constant 0 : index
    %c0_20 = arith.constant 0 : index
    %37 = vector.load %arg6[%c0_18, %c0_19, %c0_20] : memref<2x32x128xbf16, #tpu.memory_space<vmem>>, vector<1x32x128xbf16>
    %38 = vector.shape_cast %37 : vector<1x32x128xbf16> to vector<32x128xbf16>
    %c0_21 = arith.constant 0 : index
    %c0_22 = arith.constant 0 : index
    %c0_23 = arith.constant 0 : index
    %39 = vector.load %arg7[%c0_21, %c0_22, %c0_23] : memref<2x128x32xbf16, #tpu.memory_space<vmem>>, vector<1x128x32xbf16>
    %40 = vector.shape_cast %39 : vector<1x128x32xbf16> to vector<128x32xbf16>
    %41 = arith.truncf %30 : vector<8x32xf32> to vector<8x32xbf16>
    %cst_24 = arith.constant dense<0.000000e+00> : vector<8x96xf32>
    %42 = tpu.matmul %41, %34, %cst_24 {dimension_numbers = #tpu.dot_dimension_numbers<[1], [0], [0], [1], [0, 0, 1, 1], [], []>} : vector<8x32xbf16>, vector<32x96xbf16>, vector<8x96xf32> -> vector<8x96xf32>
    %43 = vector.extract_strided_slice %32 {offsets = [0, 0], sizes = [1, 96], strides = [1, 1]} : vector<8x128xf32> to vector<1x96xf32>
    %44 = vector.shape_cast %43 : vector<1x96xf32> to vector<96xf32>
    %45 = vector.shape_cast %44 : vector<96xf32> to vector<1x96xf32>
    %46 = vector.broadcast %45 : vector<1x96xf32> to vector<8x96xf32>
    %47 = arith.addf %42, %46 : vector<8x96xf32>
    %48 = vector.extract_strided_slice %47 {offsets = [0, 0], sizes = [8, 32], strides = [1, 1]} : vector<8x96xf32> to vector<8x32xf32>
    %cst_25 = arith.constant 0.353553385 : f32
    %49 = vector.broadcast %cst_25 : f32 to vector<8x32xf32>
    %50 = arith.mulf %48, %49 : vector<8x32xf32>
    %51 = vector.extract_strided_slice %47 {offsets = [0, 32], sizes = [8, 32], strides = [1, 1]} : vector<8x96xf32> to vector<8x32xf32>
    %52 = vector.extract_strided_slice %47 {offsets = [0, 64], sizes = [8, 32], strides = [1, 1]} : vector<8x96xf32> to vector<8x32xf32>
    %53 = vector.extract_strided_slice %50 {offsets = [0, 0], sizes = [8, 8], strides = [1, 1]} : vector<8x32xf32> to vector<8x8xf32>
    %54 = arith.truncf %53 : vector<8x8xf32> to vector<8x8xbf16>
    %55 = vector.extract_strided_slice %51 {offsets = [0, 0], sizes = [8, 8], strides = [1, 1]} : vector<8x32xf32> to vector<8x8xf32>
    %56 = arith.truncf %55 : vector<8x8xf32> to vector<8x8xbf16>
    %57 = vector.extract_strided_slice %52 {offsets = [0, 0], sizes = [8, 8], strides = [1, 1]} : vector<8x32xf32> to vector<8x8xf32>
    %58 = arith.truncf %57 : vector<8x8xf32> to vector<8x8xbf16>
    %cst_26 = arith.constant dense<0.000000e+00> : vector<8x8xf32>
    %59 = tpu.matmul %54, %56, %cst_26 {dimension_numbers = #tpu.dot_dimension_numbers<[1], [1], [0], [0], [0, 0, 1, 0], [], []>} : vector<8x8xbf16>, vector<8x8xbf16>, vector<8x8xf32> -> vector<8x8xf32>
    %60 = arith.addf %59, %1 : vector<8x8xf32>
    %cst_27 = arith.constant dense<0xFF800000> : vector<8xf32>
    %61 = vector.multi_reduction <maximumf>, %60, %cst_27 [1] : vector<8x8xf32> to vector<8xf32>
    %62 = vector.shape_cast %61 : vector<8xf32> to vector<8x1xf32>
    %63 = vector.broadcast %62 : vector<8x1xf32> to vector<8x8xf32>
    %64 = arith.subf %60, %63 : vector<8x8xf32>
    %65 = math.exp %64 : vector<8x8xf32>
    %cst_28 = arith.constant dense<0.000000e+00> : vector<8xf32>
    %66 = vector.multi_reduction <add>, %65, %cst_28 [1] : vector<8x8xf32> to vector<8xf32>
    %67 = vector.shape_cast %66 : vector<8xf32> to vector<8x1xf32>
    %68 = tpu.reciprocal %67 {approx = true} : vector<8x1xf32> -> vector<8x1xf32>
    %69 = vector.broadcast %68 : vector<8x1xf32> to vector<8x8xf32>
    %70 = arith.mulf %65, %69 : vector<8x8xf32>
    %71 = arith.truncf %70 : vector<8x8xf32> to vector<8x8xbf16>
    %cst_29 = arith.constant dense<0.000000e+00> : vector<8x8xf32>
    %72 = tpu.matmul %71, %58, %cst_29 {dimension_numbers = #tpu.dot_dimension_numbers<[1], [0], [0], [1], [0, 0, 1, 1], [], []>} : vector<8x8xbf16>, vector<8x8xbf16>, vector<8x8xf32> -> vector<8x8xf32>
    %73 = vector.extract_strided_slice %36 {offsets = [0, 0], sizes = [8, 32], strides = [1, 1]} : vector<32x32xbf16> to vector<8x32xbf16>
    %74 = arith.truncf %72 : vector<8x8xf32> to vector<8x8xbf16>
    %cst_30 = arith.constant dense<0.000000e+00> : vector<8x32xf32>
    %75 = tpu.matmul %74, %73, %cst_30 {dimension_numbers = #tpu.dot_dimension_numbers<[1], [0], [0], [1], [0, 0, 1, 1], [], []>} : vector<8x8xbf16>, vector<8x32xbf16>, vector<8x32xf32> -> vector<8x32xf32>
    %76 = vector.extract_strided_slice %50 {offsets = [0, 8], sizes = [8, 8], strides = [1, 1]} : vector<8x32xf32> to vector<8x8xf32>
    %77 = arith.truncf %76 : vector<8x8xf32> to vector<8x8xbf16>
    %78 = vector.extract_strided_slice %51 {offsets = [0, 8], sizes = [8, 8], strides = [1, 1]} : vector<8x32xf32> to vector<8x8xf32>
    %79 = arith.truncf %78 : vector<8x8xf32> to vector<8x8xbf16>
    %80 = vector.extract_strided_slice %52 {offsets = [0, 8], sizes = [8, 8], strides = [1, 1]} : vector<8x32xf32> to vector<8x8xf32>
    %81 = arith.truncf %80 : vector<8x8xf32> to vector<8x8xbf16>
    %cst_31 = arith.constant dense<0.000000e+00> : vector<8x8xf32>
    %82 = tpu.matmul %77, %79, %cst_31 {dimension_numbers = #tpu.dot_dimension_numbers<[1], [1], [0], [0], [0, 0, 1, 0], [], []>} : vector<8x8xbf16>, vector<8x8xbf16>, vector<8x8xf32> -> vector<8x8xf32>
    %83 = arith.addf %82, %1 : vector<8x8xf32>
    %cst_32 = arith.constant dense<0xFF800000> : vector<8xf32>
    %84 = vector.multi_reduction <maximumf>, %83, %cst_32 [1] : vector<8x8xf32> to vector<8xf32>
    %85 = vector.shape_cast %84 : vector<8xf32> to vector<8x1xf32>
    %86 = vector.broadcast %85 : vector<8x1xf32> to vector<8x8xf32>
    %87 = arith.subf %83, %86 : vector<8x8xf32>
    %88 = math.exp %87 : vector<8x8xf32>
    %cst_33 = arith.constant dense<0.000000e+00> : vector<8xf32>
    %89 = vector.multi_reduction <add>, %88, %cst_33 [1] : vector<8x8xf32> to vector<8xf32>
    %90 = vector.shape_cast %89 : vector<8xf32> to vector<8x1xf32>
    %91 = tpu.reciprocal %90 {approx = true} : vector<8x1xf32> -> vector<8x1xf32>
    %92 = vector.broadcast %91 : vector<8x1xf32> to vector<8x8xf32>
    %93 = arith.mulf %88, %92 : vector<8x8xf32>
    %94 = arith.truncf %93 : vector<8x8xf32> to vector<8x8xbf16>
    %cst_34 = arith.constant dense<0.000000e+00> : vector<8x8xf32>
    %95 = tpu.matmul %94, %81, %cst_34 {dimension_numbers = #tpu.dot_dimension_numbers<[1], [0], [0], [1], [0, 0, 1, 1], [], []>} : vector<8x8xbf16>, vector<8x8xbf16>, vector<8x8xf32> -> vector<8x8xf32>
    %96 = vector.extract_strided_slice %36 {offsets = [8, 0], sizes = [8, 32], strides = [1, 1]} : vector<32x32xbf16> to vector<8x32xbf16>
    %97 = arith.truncf %95 : vector<8x8xf32> to vector<8x8xbf16>
    %cst_35 = arith.constant dense<0.000000e+00> : vector<8x32xf32>
    %98 = tpu.matmul %97, %96, %cst_35 {dimension_numbers = #tpu.dot_dimension_numbers<[1], [0], [0], [1], [0, 0, 1, 1], [], []>} : vector<8x8xbf16>, vector<8x32xbf16>, vector<8x32xf32> -> vector<8x32xf32>
    %99 = arith.addf %75, %98 : vector<8x32xf32>
    %100 = vector.extract_strided_slice %50 {offsets = [0, 16], sizes = [8, 8], strides = [1, 1]} : vector<8x32xf32> to vector<8x8xf32>
    %101 = arith.truncf %100 : vector<8x8xf32> to vector<8x8xbf16>
    %102 = vector.extract_strided_slice %51 {offsets = [0, 16], sizes = [8, 8], strides = [1, 1]} : vector<8x32xf32> to vector<8x8xf32>
    %103 = arith.truncf %102 : vector<8x8xf32> to vector<8x8xbf16>
    %104 = vector.extract_strided_slice %52 {offsets = [0, 16], sizes = [8, 8], strides = [1, 1]} : vector<8x32xf32> to vector<8x8xf32>
    %105 = arith.truncf %104 : vector<8x8xf32> to vector<8x8xbf16>
    %cst_36 = arith.constant dense<0.000000e+00> : vector<8x8xf32>
    %106 = tpu.matmul %101, %103, %cst_36 {dimension_numbers = #tpu.dot_dimension_numbers<[1], [1], [0], [0], [0, 0, 1, 0], [], []>} : vector<8x8xbf16>, vector<8x8xbf16>, vector<8x8xf32> -> vector<8x8xf32>
    %107 = arith.addf %106, %1 : vector<8x8xf32>
    %cst_37 = arith.constant dense<0xFF800000> : vector<8xf32>
    %108 = vector.multi_reduction <maximumf>, %107, %cst_37 [1] : vector<8x8xf32> to vector<8xf32>
    %109 = vector.shape_cast %108 : vector<8xf32> to vector<8x1xf32>
    %110 = vector.broadcast %109 : vector<8x1xf32> to vector<8x8xf32>
    %111 = arith.subf %107, %110 : vector<8x8xf32>
    %112 = math.exp %111 : vector<8x8xf32>
    %cst_38 = arith.constant dense<0.000000e+00> : vector<8xf32>
    %113 = vector.multi_reduction <add>, %112, %cst_38 [1] : vector<8x8xf32> to vector<8xf32>
    %114 = vector.shape_cast %113 : vector<8xf32> to vector<8x1xf32>
    %115 = tpu.reciprocal %114 {approx = true} : vector<8x1xf32> -> vector<8x1xf32>
    %116 = vector.broadcast %115 : vector<8x1xf32> to vector<8x8xf32>
    %117 = arith.mulf %112, %116 : vector<8x8xf32>
    %118 = arith.truncf %117 : vector<8x8xf32> to vector<8x8xbf16>
    %cst_39 = arith.constant dense<0.000000e+00> : vector<8x8xf32>
    %119 = tpu.matmul %118, %105, %cst_39 {dimension_numbers = #tpu.dot_dimension_numbers<[1], [0], [0], [1], [0, 0, 1, 1], [], []>} : vector<8x8xbf16>, vector<8x8xbf16>, vector<8x8xf32> -> vector<8x8xf32>
    %120 = vector.extract_strided_slice %36 {offsets = [16, 0], sizes = [8, 32], strides = [1, 1]} : vector<32x32xbf16> to vector<8x32xbf16>
    %121 = arith.truncf %119 : vector<8x8xf32> to vector<8x8xbf16>
    %cst_40 = arith.constant dense<0.000000e+00> : vector<8x32xf32>
    %122 = tpu.matmul %121, %120, %cst_40 {dimension_numbers = #tpu.dot_dimension_numbers<[1], [0], [0], [1], [0, 0, 1, 1], [], []>} : vector<8x8xbf16>, vector<8x32xbf16>, vector<8x32xf32> -> vector<8x32xf32>
    %123 = arith.addf %99, %122 : vector<8x32xf32>
    %124 = vector.extract_strided_slice %50 {offsets = [0, 24], sizes = [8, 8], strides = [1, 1]} : vector<8x32xf32> to vector<8x8xf32>
    %125 = arith.truncf %124 : vector<8x8xf32> to vector<8x8xbf16>
    %126 = vector.extract_strided_slice %51 {offsets = [0, 24], sizes = [8, 8], strides = [1, 1]} : vector<8x32xf32> to vector<8x8xf32>
    %127 = arith.truncf %126 : vector<8x8xf32> to vector<8x8xbf16>
    %128 = vector.extract_strided_slice %52 {offsets = [0, 24], sizes = [8, 8], strides = [1, 1]} : vector<8x32xf32> to vector<8x8xf32>
    %129 = arith.truncf %128 : vector<8x8xf32> to vector<8x8xbf16>
    %cst_41 = arith.constant dense<0.000000e+00> : vector<8x8xf32>
    %130 = tpu.matmul %125, %127, %cst_41 {dimension_numbers = #tpu.dot_dimension_numbers<[1], [1], [0], [0], [0, 0, 1, 0], [], []>} : vector<8x8xbf16>, vector<8x8xbf16>, vector<8x8xf32> -> vector<8x8xf32>
    %131 = arith.addf %130, %1 : vector<8x8xf32>
    %cst_42 = arith.constant dense<0xFF800000> : vector<8xf32>
    %132 = vector.multi_reduction <maximumf>, %131, %cst_42 [1] : vector<8x8xf32> to vector<8xf32>
    %133 = vector.shape_cast %132 : vector<8xf32> to vector<8x1xf32>
    %134 = vector.broadcast %133 : vector<8x1xf32> to vector<8x8xf32>
    %135 = arith.subf %131, %134 : vector<8x8xf32>
    %136 = math.exp %135 : vector<8x8xf32>
    %cst_43 = arith.constant dense<0.000000e+00> : vector<8xf32>
    %137 = vector.multi_reduction <add>, %136, %cst_43 [1] : vector<8x8xf32> to vector<8xf32>
    %138 = vector.shape_cast %137 : vector<8xf32> to vector<8x1xf32>
    %139 = tpu.reciprocal %138 {approx = true} : vector<8x1xf32> -> vector<8x1xf32>
    %140 = vector.broadcast %139 : vector<8x1xf32> to vector<8x8xf32>
    %141 = arith.mulf %136, %140 : vector<8x8xf32>
    %142 = arith.truncf %141 : vector<8x8xf32> to vector<8x8xbf16>
    %cst_44 = arith.constant dense<0.000000e+00> : vector<8x8xf32>
    %143 = tpu.matmul %142, %129, %cst_44 {dimension_numbers = #tpu.dot_dimension_numbers<[1], [0], [0], [1], [0, 0, 1, 1], [], []>} : vector<8x8xbf16>, vector<8x8xbf16>, vector<8x8xf32> -> vector<8x8xf32>
    %144 = vector.extract_strided_slice %36 {offsets = [24, 0], sizes = [8, 32], strides = [1, 1]} : vector<32x32xbf16> to vector<8x32xbf16>
    %145 = arith.truncf %143 : vector<8x8xf32> to vector<8x8xbf16>
    %cst_45 = arith.constant dense<0.000000e+00> : vector<8x32xf32>
    %146 = tpu.matmul %145, %144, %cst_45 {dimension_numbers = #tpu.dot_dimension_numbers<[1], [0], [0], [1], [0, 0, 1, 1], [], []>} : vector<8x8xbf16>, vector<8x32xbf16>, vector<8x32xf32> -> vector<8x32xf32>
    %147 = arith.addf %123, %146 : vector<8x32xf32>
    %148 = vector.extract_strided_slice %32 {offsets = [1, 0], sizes = [1, 32], strides = [1, 1]} : vector<8x128xf32> to vector<1x32xf32>
    %149 = vector.shape_cast %148 : vector<1x32xf32> to vector<32xf32>
    %150 = vector.shape_cast %149 : vector<32xf32> to vector<1x32xf32>
    %151 = vector.broadcast %150 : vector<1x32xf32> to vector<8x32xf32>
    %152 = arith.addf %147, %151 : vector<8x32xf32>
    %153 = arith.addf %30, %152 : vector<8x32xf32>
    %154 = vector.extract_strided_slice %32 {offsets = [2, 0], sizes = [1, 32], strides = [1, 1]} : vector<8x128xf32> to vector<1x32xf32>
    %155 = vector.shape_cast %154 : vector<1x32xf32> to vector<32xf32>
    %156 = vector.extract_strided_slice %32 {offsets = [3, 0], sizes = [1, 32], strides = [1, 1]} : vector<8x128xf32> to vector<1x32xf32>
    %157 = vector.shape_cast %156 : vector<1x32xf32> to vector<32xf32>
    %cst_46 = arith.constant dense<0.000000e+00> : vector<8xf32>
    %158 = vector.multi_reduction <add>, %153, %cst_46 [1] : vector<8x32xf32> to vector<8xf32>
    %159 = vector.shape_cast %158 : vector<8xf32> to vector<8x1xf32>
    %cst_47 = arith.constant 3.200000e+01 : f32
    %160 = vector.broadcast %cst_47 : f32 to vector<8x1xf32>
    %161 = arith.divf %159, %160 : vector<8x1xf32>
    %162 = vector.broadcast %161 : vector<8x1xf32> to vector<8x32xf32>
    %163 = arith.subf %153, %162 : vector<8x32xf32>
    %164 = arith.mulf %163, %163 : vector<8x32xf32>
    %cst_48 = arith.constant dense<0.000000e+00> : vector<8xf32>
    %165 = vector.multi_reduction <add>, %164, %cst_48 [1] : vector<8x32xf32> to vector<8xf32>
    %166 = vector.shape_cast %165 : vector<8xf32> to vector<8x1xf32>
    %cst_49 = arith.constant 3.200000e+01 : f32
    %167 = vector.broadcast %cst_49 : f32 to vector<8x1xf32>
    %168 = arith.divf %166, %167 : vector<8x1xf32>
    %169 = vector.broadcast %161 : vector<8x1xf32> to vector<8x32xf32>
    %170 = arith.subf %153, %169 : vector<8x32xf32>
    %cst_50 = arith.constant 9.99999996E-13 : f32
    %171 = vector.broadcast %cst_50 : f32 to vector<8x1xf32>
    %172 = arith.addf %168, %171 : vector<8x1xf32>
    %173 = math.rsqrt %172 : vector<8x1xf32>
    %174 = vector.broadcast %173 : vector<8x1xf32> to vector<8x32xf32>
    %175 = arith.mulf %170, %174 : vector<8x32xf32>
    %176 = vector.shape_cast %155 : vector<32xf32> to vector<1x32xf32>
    %177 = vector.broadcast %176 : vector<1x32xf32> to vector<8x32xf32>
    %178 = arith.mulf %175, %177 : vector<8x32xf32>
    %179 = vector.shape_cast %157 : vector<32xf32> to vector<1x32xf32>
    %180 = vector.broadcast %179 : vector<1x32xf32> to vector<8x32xf32>
    %181 = arith.addf %178, %180 : vector<8x32xf32>
    %182 = arith.truncf %181 : vector<8x32xf32> to vector<8x32xbf16>
    %cst_51 = arith.constant dense<0.000000e+00> : vector<8x128xf32>
    %183 = tpu.matmul %182, %38, %cst_51 {dimension_numbers = #tpu.dot_dimension_numbers<[1], [0], [0], [1], [0, 0, 1, 1], [], []>} : vector<8x32xbf16>, vector<32x128xbf16>, vector<8x128xf32> -> vector<8x128xf32>
    %184 = vector.extract_strided_slice %32 {offsets = [4, 0], sizes = [1, 128], strides = [1, 1]} : vector<8x128xf32> to vector<1x128xf32>
    %185 = vector.shape_cast %184 : vector<1x128xf32> to vector<128xf32>
    %186 = vector.shape_cast %185 : vector<128xf32> to vector<1x128xf32>
    %187 = vector.broadcast %186 : vector<1x128xf32> to vector<8x128xf32>
    %188 = arith.addf %183, %187 : vector<8x128xf32>
    %cst_52 = arith.constant 5.000000e-01 : f32
    %189 = vector.broadcast %cst_52 : f32 to vector<8x128xf32>
    %190 = arith.mulf %189, %188 : vector<8x128xf32>
    %cst_53 = arith.constant 4.471500e-02 : f32
    %191 = vector.broadcast %cst_53 : f32 to vector<8x128xf32>
    %192 = arith.mulf %191, %188 : vector<8x128xf32>
    %193 = arith.mulf %192, %188 : vector<8x128xf32>
    %194 = arith.mulf %193, %188 : vector<8x128xf32>
    %195 = arith.addf %188, %194 : vector<8x128xf32>
    %cst_54 = arith.constant 0.797884583 : f32
    %196 = vector.broadcast %cst_54 : f32 to vector<8x128xf32>
    %197 = arith.mulf %196, %195 : vector<8x128xf32>
    %198 = math.tanh %197 : vector<8x128xf32>
    %cst_55 = arith.constant 1.000000e+00 : f32
    %199 = vector.broadcast %cst_55 : f32 to vector<8x128xf32>
    %200 = arith.addf %199, %198 : vector<8x128xf32>
    %201 = arith.mulf %190, %200 : vector<8x128xf32>
    %202 = arith.truncf %201 : vector<8x128xf32> to vector<8x128xbf16>
    %cst_56 = arith.constant dense<0.000000e+00> : vector<8x32xf32>
    %203 = tpu.matmul %202, %40, %cst_56 {dimension_numbers = #tpu.dot_dimension_numbers<[1], [0], [0], [1], [0, 0, 1, 1], [], []>} : vector<8x128xbf16>, vector<128x32xbf16>, vector<8x32xf32> -> vector<8x32xf32>
    %204 = vector.extract_strided_slice %32 {offsets = [5, 0], sizes = [1, 32], strides = [1, 1]} : vector<8x128xf32> to vector<1x32xf32>
    %205 = vector.shape_cast %204 : vector<1x32xf32> to vector<32xf32>
    %206 = vector.shape_cast %205 : vector<32xf32> to vector<1x32xf32>
    %207 = vector.broadcast %206 : vector<1x32xf32> to vector<8x32xf32>
    %208 = arith.addf %203, %207 : vector<8x32xf32>
    %209 = arith.addf %181, %208 : vector<8x32xf32>
    %210 = vector.extract_strided_slice %32 {offsets = [6, 0], sizes = [1, 32], strides = [1, 1]} : vector<8x128xf32> to vector<1x32xf32>
    %211 = vector.shape_cast %210 : vector<1x32xf32> to vector<32xf32>
    %212 = vector.extract_strided_slice %32 {offsets = [7, 0], sizes = [1, 32], strides = [1, 1]} : vector<8x128xf32> to vector<1x32xf32>
    %213 = vector.shape_cast %212 : vector<1x32xf32> to vector<32xf32>
    %cst_57 = arith.constant dense<0.000000e+00> : vector<8xf32>
    %214 = vector.multi_reduction <add>, %209, %cst_57 [1] : vector<8x32xf32> to vector<8xf32>
    %215 = vector.shape_cast %214 : vector<8xf32> to vector<8x1xf32>
    %cst_58 = arith.constant 3.200000e+01 : f32
    %216 = vector.broadcast %cst_58 : f32 to vector<8x1xf32>
    %217 = arith.divf %215, %216 : vector<8x1xf32>
    %218 = vector.broadcast %217 : vector<8x1xf32> to vector<8x32xf32>
    %219 = arith.subf %209, %218 : vector<8x32xf32>
    %220 = arith.mulf %219, %219 : vector<8x32xf32>
    %cst_59 = arith.constant dense<0.000000e+00> : vector<8xf32>
    %221 = vector.multi_reduction <add>, %220, %cst_59 [1] : vector<8x32xf32> to vector<8xf32>
    %222 = vector.shape_cast %221 : vector<8xf32> to vector<8x1xf32>
    %cst_60 = arith.constant 3.200000e+01 : f32
    %223 = vector.broadcast %cst_60 : f32 to vector<8x1xf32>
    %224 = arith.divf %222, %223 : vector<8x1xf32>
    %225 = vector.broadcast %217 : vector<8x1xf32> to vector<8x32xf32>
    %226 = arith.subf %209, %225 : vector<8x32xf32>
    %cst_61 = arith.constant 9.99999996E-13 : f32
    %227 = vector.broadcast %cst_61 : f32 to vector<8x1xf32>
    %228 = arith.addf %224, %227 : vector<8x1xf32>
    %229 = math.rsqrt %228 : vector<8x1xf32>
    %230 = vector.broadcast %229 : vector<8x1xf32> to vector<8x32xf32>
    %231 = arith.mulf %226, %230 : vector<8x32xf32>
    %232 = vector.shape_cast %211 : vector<32xf32> to vector<1x32xf32>
    %233 = vector.broadcast %232 : vector<1x32xf32> to vector<8x32xf32>
    %234 = arith.mulf %231, %233 : vector<8x32xf32>
    %235 = vector.shape_cast %213 : vector<32xf32> to vector<1x32xf32>
    %236 = vector.broadcast %235 : vector<1x32xf32> to vector<8x32xf32>
    %237 = arith.addf %234, %236 : vector<8x32xf32>
    %c1 = arith.constant 1 : index
    %c0_62 = arith.constant 0 : index
    %c0_63 = arith.constant 0 : index
    %238 = vector.load %arg8[%c1, %c0_62, %c0_63] : memref<2x8x128xf32, #tpu.memory_space<vmem>>, vector<1x8x128xf32>
    %239 = vector.shape_cast %238 : vector<1x8x128xf32> to vector<8x128xf32>
    %c1_64 = arith.constant 1 : index
    %c0_65 = arith.constant 0 : index
    %c0_66 = arith.constant 0 : index
    %240 = vector.load %arg4[%c1_64, %c0_65, %c0_66] : memref<2x32x96xbf16, #tpu.memory_space<vmem>>, vector<1x32x96xbf16>
    %241 = vector.shape_cast %240 : vector<1x32x96xbf16> to vector<32x96xbf16>
    %c1_67 = arith.constant 1 : index
    %c0_68 = arith.constant 0 : index
    %c0_69 = arith.constant 0 : index
    %242 = vector.load %arg5[%c1_67, %c0_68, %c0_69] : memref<2x32x32xbf16, #tpu.memory_space<vmem>>, vector<1x32x32xbf16>
    %243 = vector.shape_cast %242 : vector<1x32x32xbf16> to vector<32x32xbf16>
    %c1_70 = arith.constant 1 : index
    %c0_71 = arith.constant 0 : index
    %c0_72 = arith.constant 0 : index
    %244 = vector.load %arg6[%c1_70, %c0_71, %c0_72] : memref<2x32x128xbf16, #tpu.memory_space<vmem>>, vector<1x32x128xbf16>
    %245 = vector.shape_cast %244 : vector<1x32x128xbf16> to vector<32x128xbf16>
    %c1_73 = arith.constant 1 : index
    %c0_74 = arith.constant 0 : index
    %c0_75 = arith.constant 0 : index
    %246 = vector.load %arg7[%c1_73, %c0_74, %c0_75] : memref<2x128x32xbf16, #tpu.memory_space<vmem>>, vector<1x128x32xbf16>
    %247 = vector.shape_cast %246 : vector<1x128x32xbf16> to vector<128x32xbf16>
    %248 = arith.truncf %237 : vector<8x32xf32> to vector<8x32xbf16>
    %cst_76 = arith.constant dense<0.000000e+00> : vector<8x96xf32>
    %249 = tpu.matmul %248, %241, %cst_76 {dimension_numbers = #tpu.dot_dimension_numbers<[1], [0], [0], [1], [0, 0, 1, 1], [], []>} : vector<8x32xbf16>, vector<32x96xbf16>, vector<8x96xf32> -> vector<8x96xf32>
    %250 = vector.extract_strided_slice %239 {offsets = [0, 0], sizes = [1, 96], strides = [1, 1]} : vector<8x128xf32> to vector<1x96xf32>
    %251 = vector.shape_cast %250 : vector<1x96xf32> to vector<96xf32>
    %252 = vector.shape_cast %251 : vector<96xf32> to vector<1x96xf32>
    %253 = vector.broadcast %252 : vector<1x96xf32> to vector<8x96xf32>
    %254 = arith.addf %249, %253 : vector<8x96xf32>
    %255 = vector.extract_strided_slice %254 {offsets = [0, 0], sizes = [8, 32], strides = [1, 1]} : vector<8x96xf32> to vector<8x32xf32>
    %cst_77 = arith.constant 0.353553385 : f32
    %256 = vector.broadcast %cst_77 : f32 to vector<8x32xf32>
    %257 = arith.mulf %255, %256 : vector<8x32xf32>
    %258 = vector.extract_strided_slice %254 {offsets = [0, 32], sizes = [8, 32], strides = [1, 1]} : vector<8x96xf32> to vector<8x32xf32>
    %259 = vector.extract_strided_slice %254 {offsets = [0, 64], sizes = [8, 32], strides = [1, 1]} : vector<8x96xf32> to vector<8x32xf32>
    %260 = vector.extract_strided_slice %257 {offsets = [0, 0], sizes = [8, 8], strides = [1, 1]} : vector<8x32xf32> to vector<8x8xf32>
    %261 = arith.truncf %260 : vector<8x8xf32> to vector<8x8xbf16>
    %262 = vector.extract_strided_slice %258 {offsets = [0, 0], sizes = [8, 8], strides = [1, 1]} : vector<8x32xf32> to vector<8x8xf32>
    %263 = arith.truncf %262 : vector<8x8xf32> to vector<8x8xbf16>
    %264 = vector.extract_strided_slice %259 {offsets = [0, 0], sizes = [8, 8], strides = [1, 1]} : vector<8x32xf32> to vector<8x8xf32>
    %265 = arith.truncf %264 : vector<8x8xf32> to vector<8x8xbf16>
    %cst_78 = arith.constant dense<0.000000e+00> : vector<8x8xf32>
    %266 = tpu.matmul %261, %263, %cst_78 {dimension_numbers = #tpu.dot_dimension_numbers<[1], [1], [0], [0], [0, 0, 1, 0], [], []>} : vector<8x8xbf16>, vector<8x8xbf16>, vector<8x8xf32> -> vector<8x8xf32>
    %267 = arith.addf %266, %1 : vector<8x8xf32>
    %cst_79 = arith.constant dense<0xFF800000> : vector<8xf32>
    %268 = vector.multi_reduction <maximumf>, %267, %cst_79 [1] : vector<8x8xf32> to vector<8xf32>
    %269 = vector.shape_cast %268 : vector<8xf32> to vector<8x1xf32>
    %270 = vector.broadcast %269 : vector<8x1xf32> to vector<8x8xf32>
    %271 = arith.subf %267, %270 : vector<8x8xf32>
    %272 = math.exp %271 : vector<8x8xf32>
    %cst_80 = arith.constant dense<0.000000e+00> : vector<8xf32>
    %273 = vector.multi_reduction <add>, %272, %cst_80 [1] : vector<8x8xf32> to vector<8xf32>
    %274 = vector.shape_cast %273 : vector<8xf32> to vector<8x1xf32>
    %275 = tpu.reciprocal %274 {approx = true} : vector<8x1xf32> -> vector<8x1xf32>
    %276 = vector.broadcast %275 : vector<8x1xf32> to vector<8x8xf32>
    %277 = arith.mulf %272, %276 : vector<8x8xf32>
    %278 = arith.truncf %277 : vector<8x8xf32> to vector<8x8xbf16>
    %cst_81 = arith.constant dense<0.000000e+00> : vector<8x8xf32>
    %279 = tpu.matmul %278, %265, %cst_81 {dimension_numbers = #tpu.dot_dimension_numbers<[1], [0], [0], [1], [0, 0, 1, 1], [], []>} : vector<8x8xbf16>, vector<8x8xbf16>, vector<8x8xf32> -> vector<8x8xf32>
    %280 = vector.extract_strided_slice %243 {offsets = [0, 0], sizes = [8, 32], strides = [1, 1]} : vector<32x32xbf16> to vector<8x32xbf16>
    %281 = arith.truncf %279 : vector<8x8xf32> to vector<8x8xbf16>
    %cst_82 = arith.constant dense<0.000000e+00> : vector<8x32xf32>
    %282 = tpu.matmul %281, %280, %cst_82 {dimension_numbers = #tpu.dot_dimension_numbers<[1], [0], [0], [1], [0, 0, 1, 1], [], []>} : vector<8x8xbf16>, vector<8x32xbf16>, vector<8x32xf32> -> vector<8x32xf32>
    %283 = vector.extract_strided_slice %257 {offsets = [0, 8], sizes = [8, 8], strides = [1, 1]} : vector<8x32xf32> to vector<8x8xf32>
    %284 = arith.truncf %283 : vector<8x8xf32> to vector<8x8xbf16>
    %285 = vector.extract_strided_slice %258 {offsets = [0, 8], sizes = [8, 8], strides = [1, 1]} : vector<8x32xf32> to vector<8x8xf32>
    %286 = arith.truncf %285 : vector<8x8xf32> to vector<8x8xbf16>
    %287 = vector.extract_strided_slice %259 {offsets = [0, 8], sizes = [8, 8], strides = [1, 1]} : vector<8x32xf32> to vector<8x8xf32>
    %288 = arith.truncf %287 : vector<8x8xf32> to vector<8x8xbf16>
    %cst_83 = arith.constant dense<0.000000e+00> : vector<8x8xf32>
    %289 = tpu.matmul %284, %286, %cst_83 {dimension_numbers = #tpu.dot_dimension_numbers<[1], [1], [0], [0], [0, 0, 1, 0], [], []>} : vector<8x8xbf16>, vector<8x8xbf16>, vector<8x8xf32> -> vector<8x8xf32>
    %290 = arith.addf %289, %1 : vector<8x8xf32>
    %cst_84 = arith.constant dense<0xFF800000> : vector<8xf32>
    %291 = vector.multi_reduction <maximumf>, %290, %cst_84 [1] : vector<8x8xf32> to vector<8xf32>
    %292 = vector.shape_cast %291 : vector<8xf32> to vector<8x1xf32>
    %293 = vector.broadcast %292 : vector<8x1xf32> to vector<8x8xf32>
    %294 = arith.subf %290, %293 : vector<8x8xf32>
    %295 = math.exp %294 : vector<8x8xf32>
    %cst_85 = arith.constant dense<0.000000e+00> : vector<8xf32>
    %296 = vector.multi_reduction <add>, %295, %cst_85 [1] : vector<8x8xf32> to vector<8xf32>
    %297 = vector.shape_cast %296 : vector<8xf32> to vector<8x1xf32>
    %298 = tpu.reciprocal %297 {approx = true} : vector<8x1xf32> -> vector<8x1xf32>
    %299 = vector.broadcast %298 : vector<8x1xf32> to vector<8x8xf32>
    %300 = arith.mulf %295, %299 : vector<8x8xf32>
    %301 = arith.truncf %300 : vector<8x8xf32> to vector<8x8xbf16>
    %cst_86 = arith.constant dense<0.000000e+00> : vector<8x8xf32>
    %302 = tpu.matmul %301, %288, %cst_86 {dimension_numbers = #tpu.dot_dimension_numbers<[1], [0], [0], [1], [0, 0, 1, 1], [], []>} : vector<8x8xbf16>, vector<8x8xbf16>, vector<8x8xf32> -> vector<8x8xf32>
    %303 = vector.extract_strided_slice %243 {offsets = [8, 0], sizes = [8, 32], strides = [1, 1]} : vector<32x32xbf16> to vector<8x32xbf16>
    %304 = arith.truncf %302 : vector<8x8xf32> to vector<8x8xbf16>
    %cst_87 = arith.constant dense<0.000000e+00> : vector<8x32xf32>
    %305 = tpu.matmul %304, %303, %cst_87 {dimension_numbers = #tpu.dot_dimension_numbers<[1], [0], [0], [1], [0, 0, 1, 1], [], []>} : vector<8x8xbf16>, vector<8x32xbf16>, vector<8x32xf32> -> vector<8x32xf32>
    %306 = arith.addf %282, %305 : vector<8x32xf32>
    %307 = vector.extract_strided_slice %257 {offsets = [0, 16], sizes = [8, 8], strides = [1, 1]} : vector<8x32xf32> to vector<8x8xf32>
    %308 = arith.truncf %307 : vector<8x8xf32> to vector<8x8xbf16>
    %309 = vector.extract_strided_slice %258 {offsets = [0, 16], sizes = [8, 8], strides = [1, 1]} : vector<8x32xf32> to vector<8x8xf32>
    %310 = arith.truncf %309 : vector<8x8xf32> to vector<8x8xbf16>
    %311 = vector.extract_strided_slice %259 {offsets = [0, 16], sizes = [8, 8], strides = [1, 1]} : vector<8x32xf32> to vector<8x8xf32>
    %312 = arith.truncf %311 : vector<8x8xf32> to vector<8x8xbf16>
    %cst_88 = arith.constant dense<0.000000e+00> : vector<8x8xf32>
    %313 = tpu.matmul %308, %310, %cst_88 {dimension_numbers = #tpu.dot_dimension_numbers<[1], [1], [0], [0], [0, 0, 1, 0], [], []>} : vector<8x8xbf16>, vector<8x8xbf16>, vector<8x8xf32> -> vector<8x8xf32>
    %314 = arith.addf %313, %1 : vector<8x8xf32>
    %cst_89 = arith.constant dense<0xFF800000> : vector<8xf32>
    %315 = vector.multi_reduction <maximumf>, %314, %cst_89 [1] : vector<8x8xf32> to vector<8xf32>
    %316 = vector.shape_cast %315 : vector<8xf32> to vector<8x1xf32>
    %317 = vector.broadcast %316 : vector<8x1xf32> to vector<8x8xf32>
    %318 = arith.subf %314, %317 : vector<8x8xf32>
    %319 = math.exp %318 : vector<8x8xf32>
    %cst_90 = arith.constant dense<0.000000e+00> : vector<8xf32>
    %320 = vector.multi_reduction <add>, %319, %cst_90 [1] : vector<8x8xf32> to vector<8xf32>
    %321 = vector.shape_cast %320 : vector<8xf32> to vector<8x1xf32>
    %322 = tpu.reciprocal %321 {approx = true} : vector<8x1xf32> -> vector<8x1xf32>
    %323 = vector.broadcast %322 : vector<8x1xf32> to vector<8x8xf32>
    %324 = arith.mulf %319, %323 : vector<8x8xf32>
    %325 = arith.truncf %324 : vector<8x8xf32> to vector<8x8xbf16>
    %cst_91 = arith.constant dense<0.000000e+00> : vector<8x8xf32>
    %326 = tpu.matmul %325, %312, %cst_91 {dimension_numbers = #tpu.dot_dimension_numbers<[1], [0], [0], [1], [0, 0, 1, 1], [], []>} : vector<8x8xbf16>, vector<8x8xbf16>, vector<8x8xf32> -> vector<8x8xf32>
    %327 = vector.extract_strided_slice %243 {offsets = [16, 0], sizes = [8, 32], strides = [1, 1]} : vector<32x32xbf16> to vector<8x32xbf16>
    %328 = arith.truncf %326 : vector<8x8xf32> to vector<8x8xbf16>
    %cst_92 = arith.constant dense<0.000000e+00> : vector<8x32xf32>
    %329 = tpu.matmul %328, %327, %cst_92 {dimension_numbers = #tpu.dot_dimension_numbers<[1], [0], [0], [1], [0, 0, 1, 1], [], []>} : vector<8x8xbf16>, vector<8x32xbf16>, vector<8x32xf32> -> vector<8x32xf32>
    %330 = arith.addf %306, %329 : vector<8x32xf32>
    %331 = vector.extract_strided_slice %257 {offsets = [0, 24], sizes = [8, 8], strides = [1, 1]} : vector<8x32xf32> to vector<8x8xf32>
    %332 = arith.truncf %331 : vector<8x8xf32> to vector<8x8xbf16>
    %333 = vector.extract_strided_slice %258 {offsets = [0, 24], sizes = [8, 8], strides = [1, 1]} : vector<8x32xf32> to vector<8x8xf32>
    %334 = arith.truncf %333 : vector<8x8xf32> to vector<8x8xbf16>
    %335 = vector.extract_strided_slice %259 {offsets = [0, 24], sizes = [8, 8], strides = [1, 1]} : vector<8x32xf32> to vector<8x8xf32>
    %336 = arith.truncf %335 : vector<8x8xf32> to vector<8x8xbf16>
    %cst_93 = arith.constant dense<0.000000e+00> : vector<8x8xf32>
    %337 = tpu.matmul %332, %334, %cst_93 {dimension_numbers = #tpu.dot_dimension_numbers<[1], [1], [0], [0], [0, 0, 1, 0], [], []>} : vector<8x8xbf16>, vector<8x8xbf16>, vector<8x8xf32> -> vector<8x8xf32>
    %338 = arith.addf %337, %1 : vector<8x8xf32>
    %cst_94 = arith.constant dense<0xFF800000> : vector<8xf32>
    %339 = vector.multi_reduction <maximumf>, %338, %cst_94 [1] : vector<8x8xf32> to vector<8xf32>
    %340 = vector.shape_cast %339 : vector<8xf32> to vector<8x1xf32>
    %341 = vector.broadcast %340 : vector<8x1xf32> to vector<8x8xf32>
    %342 = arith.subf %338, %341 : vector<8x8xf32>
    %343 = math.exp %342 : vector<8x8xf32>
    %cst_95 = arith.constant dense<0.000000e+00> : vector<8xf32>
    %344 = vector.multi_reduction <add>, %343, %cst_95 [1] : vector<8x8xf32> to vector<8xf32>
    %345 = vector.shape_cast %344 : vector<8xf32> to vector<8x1xf32>
    %346 = tpu.reciprocal %345 {approx = true} : vector<8x1xf32> -> vector<8x1xf32>
    %347 = vector.broadcast %346 : vector<8x1xf32> to vector<8x8xf32>
    %348 = arith.mulf %343, %347 : vector<8x8xf32>
    %349 = arith.truncf %348 : vector<8x8xf32> to vector<8x8xbf16>
    %cst_96 = arith.constant dense<0.000000e+00> : vector<8x8xf32>
    %350 = tpu.matmul %349, %336, %cst_96 {dimension_numbers = #tpu.dot_dimension_numbers<[1], [0], [0], [1], [0, 0, 1, 1], [], []>} : vector<8x8xbf16>, vector<8x8xbf16>, vector<8x8xf32> -> vector<8x8xf32>
    %351 = vector.extract_strided_slice %243 {offsets = [24, 0], sizes = [8, 32], strides = [1, 1]} : vector<32x32xbf16> to vector<8x32xbf16>
    %352 = arith.truncf %350 : vector<8x8xf32> to vector<8x8xbf16>
    %cst_97 = arith.constant dense<0.000000e+00> : vector<8x32xf32>
    %353 = tpu.matmul %352, %351, %cst_97 {dimension_numbers = #tpu.dot_dimension_numbers<[1], [0], [0], [1], [0, 0, 1, 1], [], []>} : vector<8x8xbf16>, vector<8x32xbf16>, vector<8x32xf32> -> vector<8x32xf32>
    %354 = arith.addf %330, %353 : vector<8x32xf32>
    %355 = vector.extract_strided_slice %239 {offsets = [1, 0], sizes = [1, 32], strides = [1, 1]} : vector<8x128xf32> to vector<1x32xf32>
    %356 = vector.shape_cast %355 : vector<1x32xf32> to vector<32xf32>
    %357 = vector.shape_cast %356 : vector<32xf32> to vector<1x32xf32>
    %358 = vector.broadcast %357 : vector<1x32xf32> to vector<8x32xf32>
    %359 = arith.addf %354, %358 : vector<8x32xf32>
    %360 = arith.addf %237, %359 : vector<8x32xf32>
    %361 = vector.extract_strided_slice %239 {offsets = [2, 0], sizes = [1, 32], strides = [1, 1]} : vector<8x128xf32> to vector<1x32xf32>
    %362 = vector.shape_cast %361 : vector<1x32xf32> to vector<32xf32>
    %363 = vector.extract_strided_slice %239 {offsets = [3, 0], sizes = [1, 32], strides = [1, 1]} : vector<8x128xf32> to vector<1x32xf32>
    %364 = vector.shape_cast %363 : vector<1x32xf32> to vector<32xf32>
    %cst_98 = arith.constant dense<0.000000e+00> : vector<8xf32>
    %365 = vector.multi_reduction <add>, %360, %cst_98 [1] : vector<8x32xf32> to vector<8xf32>
    %366 = vector.shape_cast %365 : vector<8xf32> to vector<8x1xf32>
    %cst_99 = arith.constant 3.200000e+01 : f32
    %367 = vector.broadcast %cst_99 : f32 to vector<8x1xf32>
    %368 = arith.divf %366, %367 : vector<8x1xf32>
    %369 = vector.broadcast %368 : vector<8x1xf32> to vector<8x32xf32>
    %370 = arith.subf %360, %369 : vector<8x32xf32>
    %371 = arith.mulf %370, %370 : vector<8x32xf32>
    %cst_100 = arith.constant dense<0.000000e+00> : vector<8xf32>
    %372 = vector.multi_reduction <add>, %371, %cst_100 [1] : vector<8x32xf32> to vector<8xf32>
    %373 = vector.shape_cast %372 : vector<8xf32> to vector<8x1xf32>
    %cst_101 = arith.constant 3.200000e+01 : f32
    %374 = vector.broadcast %cst_101 : f32 to vector<8x1xf32>
    %375 = arith.divf %373, %374 : vector<8x1xf32>
    %376 = vector.broadcast %368 : vector<8x1xf32> to vector<8x32xf32>
    %377 = arith.subf %360, %376 : vector<8x32xf32>
    %cst_102 = arith.constant 9.99999996E-13 : f32
    %378 = vector.broadcast %cst_102 : f32 to vector<8x1xf32>
    %379 = arith.addf %375, %378 : vector<8x1xf32>
    %380 = math.rsqrt %379 : vector<8x1xf32>
    %381 = vector.broadcast %380 : vector<8x1xf32> to vector<8x32xf32>
    %382 = arith.mulf %377, %381 : vector<8x32xf32>
    %383 = vector.shape_cast %362 : vector<32xf32> to vector<1x32xf32>
    %384 = vector.broadcast %383 : vector<1x32xf32> to vector<8x32xf32>
    %385 = arith.mulf %382, %384 : vector<8x32xf32>
    %386 = vector.shape_cast %364 : vector<32xf32> to vector<1x32xf32>
    %387 = vector.broadcast %386 : vector<1x32xf32> to vector<8x32xf32>
    %388 = arith.addf %385, %387 : vector<8x32xf32>
    %389 = arith.truncf %388 : vector<8x32xf32> to vector<8x32xbf16>
    %cst_103 = arith.constant dense<0.000000e+00> : vector<8x128xf32>
    %390 = tpu.matmul %389, %245, %cst_103 {dimension_numbers = #tpu.dot_dimension_numbers<[1], [0], [0], [1], [0, 0, 1, 1], [], []>} : vector<8x32xbf16>, vector<32x128xbf16>, vector<8x128xf32> -> vector<8x128xf32>
    %391 = vector.extract_strided_slice %239 {offsets = [4, 0], sizes = [1, 128], strides = [1, 1]} : vector<8x128xf32> to vector<1x128xf32>
    %392 = vector.shape_cast %391 : vector<1x128xf32> to vector<128xf32>
    %393 = vector.shape_cast %392 : vector<128xf32> to vector<1x128xf32>
    %394 = vector.broadcast %393 : vector<1x128xf32> to vector<8x128xf32>
    %395 = arith.addf %390, %394 : vector<8x128xf32>
    %cst_104 = arith.constant 5.000000e-01 : f32
    %396 = vector.broadcast %cst_104 : f32 to vector<8x128xf32>
    %397 = arith.mulf %396, %395 : vector<8x128xf32>
    %cst_105 = arith.constant 4.471500e-02 : f32
    %398 = vector.broadcast %cst_105 : f32 to vector<8x128xf32>
    %399 = arith.mulf %398, %395 : vector<8x128xf32>
    %400 = arith.mulf %399, %395 : vector<8x128xf32>
    %401 = arith.mulf %400, %395 : vector<8x128xf32>
    %402 = arith.addf %395, %401 : vector<8x128xf32>
    %cst_106 = arith.constant 0.797884583 : f32
    %403 = vector.broadcast %cst_106 : f32 to vector<8x128xf32>
    %404 = arith.mulf %403, %402 : vector<8x128xf32>
    %405 = math.tanh %404 : vector<8x128xf32>
    %cst_107 = arith.constant 1.000000e+00 : f32
    %406 = vector.broadcast %cst_107 : f32 to vector<8x128xf32>
    %407 = arith.addf %406, %405 : vector<8x128xf32>
    %408 = arith.mulf %397, %407 : vector<8x128xf32>
    %409 = arith.truncf %408 : vector<8x128xf32> to vector<8x128xbf16>
    %cst_108 = arith.constant dense<0.000000e+00> : vector<8x32xf32>
    %410 = tpu.matmul %409, %247, %cst_108 {dimension_numbers = #tpu.dot_dimension_numbers<[1], [0], [0], [1], [0, 0, 1, 1], [], []>} : vector<8x128xbf16>, vector<128x32xbf16>, vector<8x32xf32> -> vector<8x32xf32>
    %411 = vector.extract_strided_slice %239 {offsets = [5, 0], sizes = [1, 32], strides = [1, 1]} : vector<8x128xf32> to vector<1x32xf32>
    %412 = vector.shape_cast %411 : vector<1x32xf32> to vector<32xf32>
    %413 = vector.shape_cast %412 : vector<32xf32> to vector<1x32xf32>
    %414 = vector.broadcast %413 : vector<1x32xf32> to vector<8x32xf32>
    %415 = arith.addf %410, %414 : vector<8x32xf32>
    %416 = arith.addf %388, %415 : vector<8x32xf32>
    %417 = vector.extract_strided_slice %239 {offsets = [6, 0], sizes = [1, 32], strides = [1, 1]} : vector<8x128xf32> to vector<1x32xf32>
    %418 = vector.shape_cast %417 : vector<1x32xf32> to vector<32xf32>
    %419 = vector.extract_strided_slice %239 {offsets = [7, 0], sizes = [1, 32], strides = [1, 1]} : vector<8x128xf32> to vector<1x32xf32>
    %420 = vector.shape_cast %419 : vector<1x32xf32> to vector<32xf32>
    %cst_109 = arith.constant dense<0.000000e+00> : vector<8xf32>
    %421 = vector.multi_reduction <add>, %416, %cst_109 [1] : vector<8x32xf32> to vector<8xf32>
    %422 = vector.shape_cast %421 : vector<8xf32> to vector<8x1xf32>
    %cst_110 = arith.constant 3.200000e+01 : f32
    %423 = vector.broadcast %cst_110 : f32 to vector<8x1xf32>
    %424 = arith.divf %422, %423 : vector<8x1xf32>
    %425 = vector.broadcast %424 : vector<8x1xf32> to vector<8x32xf32>
    %426 = arith.subf %416, %425 : vector<8x32xf32>
    %427 = arith.mulf %426, %426 : vector<8x32xf32>
    %cst_111 = arith.constant dense<0.000000e+00> : vector<8xf32>
    %428 = vector.multi_reduction <add>, %427, %cst_111 [1] : vector<8x32xf32> to vector<8xf32>
    %429 = vector.shape_cast %428 : vector<8xf32> to vector<8x1xf32>
    %cst_112 = arith.constant 3.200000e+01 : f32
    %430 = vector.broadcast %cst_112 : f32 to vector<8x1xf32>
    %431 = arith.divf %429, %430 : vector<8x1xf32>
    %432 = vector.broadcast %424 : vector<8x1xf32> to vector<8x32xf32>
    %433 = arith.subf %416, %432 : vector<8x32xf32>
    %cst_113 = arith.constant 9.99999996E-13 : f32
    %434 = vector.broadcast %cst_113 : f32 to vector<8x1xf32>
    %435 = arith.addf %431, %434 : vector<8x1xf32>
    %436 = math.rsqrt %435 : vector<8x1xf32>
    %437 = vector.broadcast %436 : vector<8x1xf32> to vector<8x32xf32>
    %438 = arith.mulf %433, %437 : vector<8x32xf32>
    %439 = vector.shape_cast %418 : vector<32xf32> to vector<1x32xf32>
    %440 = vector.broadcast %439 : vector<1x32xf32> to vector<8x32xf32>
    %441 = arith.mulf %438, %440 : vector<8x32xf32>
    %442 = vector.shape_cast %420 : vector<32xf32> to vector<1x32xf32>
    %443 = vector.broadcast %442 : vector<1x32xf32> to vector<8x32xf32>
    %444 = arith.addf %441, %443 : vector<8x32xf32>
    %445 = vector.extract_strided_slice %444 {offsets = [0, 0], sizes = [1, 32], strides = [1, 1]} : vector<8x32xf32> to vector<1x32xf32>
    %446 = vector.shape_cast %445 : vector<1x32xf32> to vector<1x32xf32>
    %447 = vector.broadcast %446 : vector<1x32xf32> to vector<8x32xf32>
    %c0_114 = arith.constant 0 : index
    %c0_115 = arith.constant 0 : index
    %448 = vector.load %arg9[%c0_114, %c0_115] : memref<32x128xbf16, #tpu.memory_space<vmem>>, vector<32x128xbf16>
    %449 = arith.truncf %447 : vector<8x32xf32> to vector<8x32xbf16>
    %cst_116 = arith.constant dense<0.000000e+00> : vector<8x128xf32>
    %450 = tpu.matmul %449, %448, %cst_116 {dimension_numbers = #tpu.dot_dimension_numbers<[1], [0], [0], [1], [0, 0, 1, 1], [], []>} : vector<8x32xbf16>, vector<32x128xbf16>, vector<8x128xf32> -> vector<8x128xf32>
    %451 = vector.extract_strided_slice %0 {offsets = [2, 0], sizes = [1, 128], strides = [1, 1]} : vector<8x128xf32> to vector<1x128xf32>
    %452 = vector.shape_cast %451 : vector<1x128xf32> to vector<128xf32>
    %453 = vector.shape_cast %452 : vector<128xf32> to vector<1x128xf32>
    %454 = vector.broadcast %453 : vector<1x128xf32> to vector<8x128xf32>
    %455 = arith.addf %450, %454 : vector<8x128xf32>
    %456 = vector.shape_cast %455 : vector<8x128xf32> to vector<1x8x128xf32>
    %c0_117 = arith.constant 0 : index
    %c0_118 = arith.constant 0 : index
    %c0_119 = arith.constant 0 : index
    %457 = vector.load %arg10[%c0_117, %c0_118, %c0_119] : memref<1x8x128xf32, #tpu.memory_space<vmem>>, vector<1x8x128xf32>
    tpu.vector_store %arg10[%c0_117, %c0_118, %c0_119], %456 {strides = array<i32>} : memref<1x8x128xf32, #tpu.memory_space<vmem>>, vector<1x8x128xf32>,
    return
  }
  func.func @transform_0(%arg0: i32) -> (i32, i32) {
    %c0_i32 = arith.constant 0 : i32
    %c0_i32_0 = arith.constant 0 : i32
    return %arg0, %c0_i32 : i32, i32
  }
  func.func @transform_1(%arg0: i32) -> (i32, i32) {
    %c0_i32 = arith.constant 0 : i32
    %c0_i32_0 = arith.constant 0 : i32
    return %arg0, %c0_i32 : i32, i32
  }
  func.func @transform_2(%arg0: i32) -> (i32, i32) {
    %c0_i32 = arith.constant 0 : i32
    %c0_i32_0 = arith.constant 0 : i32
    %c0_i32_1 = arith.constant 0 : i32
    return %c0_i32, %c0_i32_0 : i32, i32
  }
  func.func @transform_3(%arg0: i32) -> (i32, i32, i32) {
    %c0_i32 = arith.constant 0 : i32
    %c0_i32_0 = arith.constant 0 : i32
    %c0_i32_1 = arith.constant 0 : i32
    %c0_i32_2 = arith.constant 0 : i32
    return %c0_i32, %c0_i32_0, %c0_i32_1 : i32, i32, i32
  }
  func.func @transform_4(%arg0: i32) -> (i32, i32, i32) {
    %c0_i32 = arith.constant 0 : i32
    %c0_i32_0 = arith.constant 0 : i32
    %c0_i32_1 = arith.constant 0 : i32
    %c0_i32_2 = arith.constant 0 : i32
    return %c0_i32, %c0_i32_0, %c0_i32_1 : i32, i32, i32
  }
  func.func @transform_5(%arg0: i32) -> (i32, i32, i32) {
    %c0_i32 = arith.constant 0 : i32
    %c0_i32_0 = arith.constant 0 : i32
    %c0_i32_1 = arith.constant 0 : i32
    %c0_i32_2 = arith.constant 0 : i32
    return %c0_i32, %c0_i32_0, %c0_i32_1 : i32, i32, i32
  }
  func.func @transform_6(%arg0: i32) -> (i32, i32, i32) {
    %c0_i32 = arith.constant 0 : i32
    %c0_i32_0 = arith.constant 0 : i32
    %c0_i32_1 = arith.constant 0 : i32
    %c0_i32_2 = arith.constant 0 : i32
    return %c0_i32, %c0_i32_0, %c0_i32_1 : i32, i32, i32
  }
  func.func @transform_7(%arg0: i32) -> (i32, i32, i32) {
    %c0_i32 = arith.constant 0 : i32
    %c0_i32_0 = arith.constant 0 : i32
    %c0_i32_1 = arith.constant 0 : i32
    %c0_i32_2 = arith.constant 0 : i32
    return %c0_i32, %c0_i32_0, %c0_i32_1 : i32, i32, i32
  }
  func.func @transform_8(%arg0: i32) -> (i32, i32) {
    %c0_i32 = arith.constant 0 : i32
    %c0_i32_0 = arith.constant 0 : i32
    %c0_i32_1 = arith.constant 0 : i32
    return %c0_i32, %c0_i32_0 : i32, i32
  }
  func.func @transform_9(%arg0: i32) -> (i32, i32, i32) {
    %c0_i32 = arith.constant 0 : i32
    %c0_i32_0 = arith.constant 0 : i32
    %c0_i32_1 = arith.constant 0 : i32
    return %arg0, %c0_i32, %c0_i32_0 : i32, i32, i32
  }
}

</mosaic_0001>

<llo_original>
// kernel: _lambda_.1
$region0: #{_lambda_.1}
  #allocation0 [shape = 'u32[]', space=smem, size = 0x4, offset = 0x4, fixed_abs, tag = 'smem constant byte address 0x4 - core index']
  #allocation1 [shape = 'u32[144,128]{1,0:T(1,128)}', space=vmem, size = 0x12000, scoped, tag = 'internal scratch']
  %s0 = inlined_call_operand.vmem [shape: f32[16,32], index: 0, kind: input, shape index: {}]
  %s1 = inlined_call_operand.vmem [shape: f32[16,8], index: 1, kind: input, shape index: {}]
  %s2 = inlined_call_operand.vmem [shape: f32[8,128], index: 2, kind: input, shape index: {}]
  %s3 = inlined_call_operand.vmem [shape: bf16[2,32,96], index: 3, kind: input, shape index: {}]
  %s4 = inlined_call_operand.vmem [shape: bf16[2,32,32], index: 4, kind: input, shape index: {}]
  %s5 = inlined_call_operand.vmem [shape: bf16[2,32,128], index: 5, kind: input, shape index: {}]
  %s6 = inlined_call_operand.vmem [shape: bf16[2,128,32], index: 6, kind: input, shape index: {}]
  %s7 = inlined_call_operand.vmem [shape: f32[2,8,128], index: 7, kind: input, shape index: {}]
  %s8 = inlined_call_operand.vmem [shape: bf16[32,128], index: 8, kind: input, shape index: {}]
  %s9 = inlined_call_operand.vmem [shape: f32[2,8,128], index: 9, kind: output, shape index: {}]
  %s10 = sld [smem:[#allocation0]]
  $region69: #{_lambda_.1} parent=0
    _
  %s12 = ssub.s32 1, %s10
  %s13 = scalar_select 0, %s12, %s10
  loop: start=0, step=1, limit=4
  $region2: #{_lambda_.1} parent=0 // loop_pre_header
    _
  $region3: #{_lambda_.1} parent=0 // loop_header
    %s15 = sphi 0, %s19
    %p16 = scmp.ge.s32.totalorder %s15, 4
    %s25 = sphi 0, %s27
    %s28 = sphi 0, %s25
    %s29 = sphi 0, %s28
    %s45 = sphi 0, %s29
    %s51 = sphi 0, %s53
    %s54 = sphi 0, %s51
    %s55 = sphi 0, %s54
    %s71 = sphi 0, %s55
    %s75 = sphi 0, %s75
    %s77 = sphi 0, %s75
    %s78 = sphi 0, %s77
    %s92 = sphi 0, %s78
    %s96 = sphi 0, %s96
    %s98 = sphi 0, %s96
    %s99 = sphi 0, %s98
    %s113 = sphi 0, %s99
    %s117 = sphi 0, %s117
    %s119 = sphi 0, %s117
    %s120 = sphi 0, %s119
    %s134 = sphi 0, %s120
    %s138 = sphi 0, %s138
    %s140 = sphi 0, %s138
    %s141 = sphi 0, %s140
    %s155 = sphi 0, %s141
    %s159 = sphi 0, %s159
    %s161 = sphi 0, %s159
    %s162 = sphi 0, %s161
    %s176 = sphi 0, %s162
    %s180 = sphi 0, %s180
    %s182 = sphi 0, %s180
    %s183 = sphi 0, %s182
    %s197 = sphi 0, %s183
    %s201 = sphi 0, %s201
    %s203 = sphi 0, %s201
    %s204 = sphi 0, %s203
    %s218 = sphi 0, %s204
    %s224 = sphi 0, %s226
    %s227 = sphi 0, %s224
    %s228 = sphi 0, %s227
    %s244 = sphi 0, %s228
  $region4: #{_lambda_.1} parent=0 // loop_header_branch
    %18 = sbr.rel (%p16) target = $region8
  $region5: #{_lambda_.1} parent=0 // loop_body
    %s20 = ssub.s32 %s15, 1
    %s21 = ssub.s32 %s15, 2
    %s22 = sadd.s32 %s15, 1
    %s23 = ssub.s32 %s15, %s22
    %p24 = scmp.eq.s32.totalorder %s23, 0
    %s26 = sadd.s32 %s25, 1
    %s27 = scalar_select %p24, %s25, %s26
    %p30 = pneg %p24
    %p31 = scmp.eq.s32.totalorder %s15, 1
    %p32 = por %p30, %p31
    %p33 = scmp.ne.s32.totalorder %s25, %s28
    %p34 = scmp.eq.s32.totalorder %s15, 0
    %p35 = por %p33, %p34
    %p36 = scmp.ne.s32.totalorder %s25, %s28
    %p37 = scmp.eq.s32.totalorder %s20, 1
    %p38 = por %p36, %p37
    %p39 = scmp.ne.s32.totalorder %s28, %s29
    %p40 = scmp.eq.s32.totalorder %s20, 0
    %p41 = por %p39, %p40
    %p42 = scmp.ne.s32.totalorder %s28, %s29
    %p43 = scmp.eq.s32.totalorder %s21, 1
    %p44 = por %p42, %p43
    %p46 = scmp.ne.s32.totalorder %s29, %s45
    %p47 = scmp.eq.s32.totalorder %s21, 0
    %p48 = por %p46, %p47
    %s49 = ssub.s32 %s15, %s22
    %p50 = scmp.eq.s32.totalorder %s49, 0
    %s52 = sadd.s32 %s51, 1
    %s53 = scalar_select %p50, %s51, %s52
    %p56 = pneg %p50
    %p57 = scmp.eq.s32.totalorder %s15, 1
    %p58 = por %p56, %p57
    %p59 = scmp.ne.s32.totalorder %s51, %s54
    %p60 = scmp.eq.s32.totalorder %s15, 0
    %p61 = por %p59, %p60
    %p62 = scmp.ne.s32.totalorder %s51, %s54
    %p63 = scmp.eq.s32.totalorder %s20, 1
    %p64 = por %p62, %p63
    %p65 = scmp.ne.s32.totalorder %s54, %s55
    %p66 = scmp.eq.s32.totalorder %s20, 0
    %p67 = por %p65, %p66
    %p68 = scmp.ne.s32.totalorder %s54, %s55
    %p69 = scmp.eq.s32.totalorder %s21, 1
    %p70 = por %p68, %p69
    %p72 = scmp.ne.s32.totalorder %s55, %s71
    %p73 = scmp.eq.s32.totalorder %s21, 0
    %p74 = por %p72, %p73
    %s76 = sadd.s32 %s75, 1
    %p79 = scmp.eq.s32.totalorder %s15, 1
    %p80 = scmp.ne.s32.totalorder %s75, %s77
    %p81 = scmp.eq.s32.totalorder %s15, 0
    %p82 = por %p80, %p81
    %p83 = scmp.ne.s32.totalorder %s75, %s77
    %p84 = scmp.eq.s32.totalorder %s20, 1
    %p85 = por %p83, %p84
    %p86 = scmp.ne.s32.totalorder %s77, %s78
    %p87 = scmp.eq.s32.totalorder %s20, 0
    %p88 = por %p86, %p87
    %p89 = scmp.ne.s32.totalorder %s77, %s78
    %p90 = scmp.eq.s32.totalorder %s21, 1
    %p91 = por %p89, %p90
    %p93 = scmp.ne.s32.totalorder %s78, %s92
    %p94 = scmp.eq.s32.totalorder %s21, 0
    %p95 = por %p93, %p94
    %s97 = sadd.s32 %s96, 1
    %p100 = scmp.eq.s32.totalorder %s15, 1
    %p101 = scmp.ne.s32.totalorder %s96, %s98
    %p102 = scmp.eq.s32.totalorder %s15, 0
    %p103 = por %p101, %p102
    %p104 = scmp.ne.s32.totalorder %s96, %s98
    %p105 = scmp.eq.s32.totalorder %s20, 1
    %p106 = por %p104, %p105
    %p107 = scmp.ne.s32.totalorder %s98, %s99
    %p108 = scmp.eq.s32.totalorder %s20, 0
    %p109 = por %p107, %p108
    %p110 = scmp.ne.s32.totalorder %s98, %s99
    %p111 = scmp.eq.s32.totalorder %s21, 1
    %p112 = por %p110, %p111
    %p114 = scmp.ne.s32.totalorder %s99, %s113
    %p115 = scmp.eq.s32.totalorder %s21, 0
    %p116 = por %p114, %p115
    %s118 = sadd.s32 %s117, 1
    %p121 = scmp.eq.s32.totalorder %s15, 1
    %p122 = scmp.ne.s32.totalorder %s117, %s119
    %p123 = scmp.eq.s32.totalorder %s15, 0
    %p124 = por %p122, %p123
    %p125 = scmp.ne.s32.totalorder %s117, %s119
    %p126 = scmp.eq.s32.totalorder %s20, 1
    %p127 = por %p125, %p126
    %p128 = scmp.ne.s32.totalorder %s119, %s120
    %p129 = scmp.eq.s32.totalorder %s20, 0
    %p130 = por %p128, %p129
    %p131 = scmp.ne.s32.totalorder %s119, %s120
    %p132 = scmp.eq.s32.totalorder %s21, 1
    %p133 = por %p131, %p132
    %p135 = scmp.ne.s32.totalorder %s120, %s134
    %p136 = scmp.eq.s32.totalorder %s21, 0
    %p137 = por %p135, %p136
    %s139 = sadd.s32 %s138, 1
    %p142 = scmp.eq.s32.totalorder %s15, 1
    %p143 = scmp.ne.s32.totalorder %s138, %s140
    %p144 = scmp.eq.s32.totalorder %s15, 0
    %p145 = por %p143, %p144
    %p146 = scmp.ne.s32.totalorder %s138, %s140
    %p147 = scmp.eq.s32.totalorder %s20, 1
    %p148 = por %p146, %p147
    %p149 = scmp.ne.s32.totalorder %s140, %s141
    %p150 = scmp.eq.s32.totalorder %s20, 0
    %p151 = por %p149, %p150
    %p152 = scmp.ne.s32.totalorder %s140, %s141
    %p153 = scmp.eq.s32.totalorder %s21, 1
    %p154 = por %p152, %p153
    %p156 = scmp.ne.s32.totalorder %s141, %s155
    %p157 = scmp.eq.s32.totalorder %s21, 0
    %p158 = por %p156, %p157
    %s160 = sadd.s32 %s159, 1
    %p163 = scmp.eq.s32.totalorder %s15, 1
    %p164 = scmp.ne.s32.totalorder %s159, %s161
    %p165 = scmp.eq.s32.totalorder %s15, 0
    %p166 = por %p164, %p165
    %p167 = scmp.ne.s32.totalorder %s159, %s161
    %p168 = scmp.eq.s32.totalorder %s20, 1
    %p169 = por %p167, %p168
    %p170 = scmp.ne.s32.totalorder %s161, %s162
    %p171 = scmp.eq.s32.totalorder %s20, 0
    %p172 = por %p170, %p171
    %p173 = scmp.ne.s32.totalorder %s161, %s162
    %p174 = scmp.eq.s32.totalorder %s21, 1
    %p175 = por %p173, %p174
    %p177 = scmp.ne.s32.totalorder %s162, %s176
    %p178 = scmp.eq.s32.totalorder %s21, 0
    %p179 = por %p177, %p178
    %s181 = sadd.s32 %s180, 1
    %p184 = scmp.eq.s32.totalorder %s15, 1
    %p185 = scmp.ne.s32.totalorder %s180, %s182
    %p186 = scmp.eq.s32.totalorder %s15, 0
    %p187 = por %p185, %p186
    %p188 = scmp.ne.s32.totalorder %s180, %s182
    %p189 = scmp.eq.s32.totalorder %s20, 1
    %p190 = por %p188, %p189
    %p191 = scmp.ne.s32.totalorder %s182, %s183
    %p192 = scmp.eq.s32.totalorder %s20, 0
    %p193 = por %p191, %p192
    %p194 = scmp.ne.s32.totalorder %s182, %s183
    %p195 = scmp.eq.s32.totalorder %s21, 1
    %p196 = por %p194, %p195
    %p198 = scmp.ne.s32.totalorder %s183, %s197
    %p199 = scmp.eq.s32.totalorder %s21, 0
    %p200 = por %p198, %p199
    %s202 = sadd.s32 %s201, 1
    %p205 = scmp.eq.s32.totalorder %s15, 1
    %p206 = scmp.ne.s32.totalorder %s201, %s203
    %p207 = scmp.eq.s32.totalorder %s15, 0
    %p208 = por %p206, %p207
    %p209 = scmp.ne.s32.totalorder %s201, %s203
    %p210 = scmp.eq.s32.totalorder %s20, 1
    %p211 = por %p209, %p210
    %p212 = scmp.ne.s32.totalorder %s203, %s204
    %p213 = scmp.eq.s32.totalorder %s20, 0
    %p214 = por %p212, %p213
    %p215 = scmp.ne.s32.totalorder %s203, %s204
    %p216 = scmp.eq.s32.totalorder %s21, 1
    %p217 = por %p215, %p216
    %p219 = scmp.ne.s32.totalorder %s204, %s218
    %p220 = scmp.eq.s32.totalorder %s21, 0
    %p221 = por %p219, %p220
    %s222 = ssub.s32 %s15, %s22
    %p223 = scmp.eq.s32.totalorder %s222, 0
    %s225 = sadd.s32 %s224, 1
    %s226 = scalar_select %p223, %s224, %s225
    %p229 = pneg %p223
    %p230 = scmp.eq.s32.totalorder %s15, 1
    %p231 = por %p229, %p230
    %p232 = scmp.ne.s32.totalorder %s224, %s227
    %p233 = scmp.eq.s32.totalorder %s15, 0
    %p234 = por %p232, %p233
    %p235 = scmp.ne.s32.totalorder %s224, %s227
    %p236 = scmp.eq.s32.totalorder %s20, 1
    %p237 = por %p235, %p236
    %p238 = scmp.ne.s32.totalorder %s227, %s228
    %p239 = scmp.eq.s32.totalorder %s20, 0
    %p240 = por %p238, %p239
    %p241 = scmp.ne.s32.totalorder %s227, %s228
    %p242 = scmp.eq.s32.totalorder %s21, 1
    %p243 = por %p241, %p242
    %p245 = scmp.ne.s32.totalorder %s228, %s244
    %p246 = scmp.eq.s32.totalorder %s21, 0
    %p247 = por %p245, %p246
    %p248 = scmp.le.s32.totalorder 1, %s15
    %p249 = scmp.lt.s32.totalorder %s15, 3
    %p250 = pnand %p248, %p249
    %p251 = pneg %p250
    // Predicated region
    $region9: #{_lambda_.1} parent=5 // pred_check
      _
    $region10: #{_lambda_.1} parent=5 // pred_check_branch
      %253 = sbr.rel (%p250) target = $region12
    $region11: #{_lambda_.1} parent=5 // pred_region
      %s254 = ssub.s32 %s15, 1
      // Predicated region
      $region13: #{_lambda_.1} parent=11 // pred_check
        %p255 = pneg %p88
      $region14: #{_lambda_.1} parent=11 // pred_check_branch
        %257 = sbr.rel (%p255) target = $region16
      $region15: #{_lambda_.1} parent=11 // pred_region
        _
      $region16: #{_lambda_.1} parent=11 // pred_fallthru
        _
      // Predicated region
      $region17: #{_lambda_.1} parent=11 // pred_check
        %p258 = pneg %p109
      $region18: #{_lambda_.1} parent=11 // pred_check_branch
        %260 = sbr.rel (%p258) target = $region20
      $region19: #{_lambda_.1} parent=11 // pred_region
        _
      $region20: #{_lambda_.1} parent=11 // pred_fallthru
        _
      // Predicated region
      $region21: #{_lambda_.1} parent=11 // pred_check
        %p261 = pneg %p130
      $region22: #{_lambda_.1} parent=11 // pred_check_branch
        %263 = sbr.rel (%p261) target = $region24
      $region23: #{_lambda_.1} parent=11 // pred_region
        _
      $region24: #{_lambda_.1} parent=11 // pred_fallthru
        _
      // Predicated region
      $region25: #{_lambda_.1} parent=11 // pred_check
        %p264 = pneg %p151
      $region26: #{_lambda_.1} parent=11 // pred_check_branch
        %266 = sbr.rel (%p264) target = $region28
      $region27: #{_lambda_.1} parent=11 // pred_region
        _
      $region28: #{_lambda_.1} parent=11 // pred_fallthru
        _
      // Predicated region
      $region29: #{_lambda_.1} parent=11 // pred_check
        %p267 = pneg %p172
      $region30: #{_lambda_.1} parent=11 // pred_check_branch
        %269 = sbr.rel (%p267) target = $region32
      $region31: #{_lambda_.1} parent=11 // pred_region
        _
      $region32: #{_lambda_.1} parent=11 // pred_fallthru
        _
      // Predicated region
      $region33: #{_lambda_.1} parent=11 // pred_check
        %p270 = pneg %p193
      $region34: #{_lambda_.1} parent=11 // pred_check_branch
        %272 = sbr.rel (%p270) target = $region36
      $region35: #{_lambda_.1} parent=11 // pred_region
        _
      $region36: #{_lambda_.1} parent=11 // pred_fallthru
        _
      // Predicated region
      $region37: #{_lambda_.1} parent=11 // pred_check
        %p273 = pneg %p214
      $region38: #{_lambda_.1} parent=11 // pred_check_branch
        %275 = sbr.rel (%p273) target = $region40
      $region39: #{_lambda_.1} parent=11 // pred_region
        _
      $region40: #{_lambda_.1} parent=11 // pred_fallthru
        _
    $region12: #{_lambda_.1} parent=5 // pred_fallthru
      _
    %p276 = scmp.lt.s32.totalorder %s15, 2
    // Predicated region
    $region41: #{_lambda_.1} parent=5 // pred_check
      %p277 = pneg %p276
    $region42: #{_lambda_.1} parent=5 // pred_check_branch
      %279 = sbr.rel (%p277) target = $region44
    $region43: #{_lambda_.1} parent=5 // pred_region
      // Predicated region
      $region45: #{_lambda_.1} parent=43 // pred_check
        %p280 = pneg %p35
      $region46: #{_lambda_.1} parent=43 // pred_check_branch
        %282 = sbr.rel (%p280) target = $region48
      $region47: #{_lambda_.1} parent=43 // pred_region
        %p283 = scmp.lt.s32.totalorder %s15, 1
        %s284 = scalar_select %p283, %s15, 1
        %s285 = smul.addr %s284, 8
        %s286 = scalar_lea.vmem %s0, %s285
      $region48: #{_lambda_.1} parent=43 // pred_fallthru
        _
      // Predicated region
      $region49: #{_lambda_.1} parent=43 // pred_check
        %p287 = pneg %p61
      $region50: #{_lambda_.1} parent=43 // pred_check_branch
        %289 = sbr.rel (%p287) target = $region52
      $region51: #{_lambda_.1} parent=43 // pred_region
        %p290 = scmp.lt.s32.totalorder %s15, 1
        %s291 = scalar_select %p290, %s15, 1
        %s292 = smul.addr %s291, 8
        %s293 = scalar_lea.vmem %s1, %s292
      $region52: #{_lambda_.1} parent=43 // pred_fallthru
        _
    $region44: #{_lambda_.1} parent=5 // pred_fallthru
      _
    %p294 = scmp.le.s32.totalorder 1, %s15
    %p295 = scmp.lt.s32.totalorder %s15, 3
    %p296 = pnand %p294, %p295
    %p297 = pneg %p296
    // Predicated region
    $region53: #{_lambda_.1} parent=5 // pred_check
      _
    $region54: #{_lambda_.1} parent=5 // pred_check_branch
      %299 = sbr.rel (%p296) target = $region56
    $region55: #{_lambda_.1} parent=5 // pred_region
      %s300 = ssub.s32 %s15, 1
      %p301 = scmp.lt.s32.totalorder %s20, 1
      %s302 = scalar_select %p301, %s20, 1
      %s303 = smul.addr %s302, 8
      %s304 = scalar_lea.vmem %s0, %s303
      %p305 = pneg %p41
      %p306 = pneg %p38
      %p307 = scmp.lt.s32.totalorder %s20, 1
      %s308 = scalar_select %p307, %s20, 1
      %s309 = smul.addr %s308, 8
      %s310 = scalar_lea.vmem %s1, %s309
      %p311 = pneg %p67
      %p312 = pneg %p64
      %p313 = pneg %p88
      %p314 = pneg %p85
      %p315 = pneg %p109
      %p316 = pneg %p106
      %p317 = pneg %p130
      %p318 = pneg %p127
      %p319 = pneg %p151
      %p320 = pneg %p148
      %p321 = pneg %p172
      %p322 = pneg %p169
      %p323 = pneg %p193
      %p324 = pneg %p190
      %p325 = pneg %p214
      %p326 = pneg %p211
      %p327 = pneg %p240
      %p328 = pneg %p237
      %p329 = scmp.lt.s32.totalorder %s20, 1
      %s330 = scalar_select %p329, %s20, 1
      %s331 = smul.addr %s330, 8
      %s332 = scalar_lea.vmem %s9, %s331
      %p333 = scmp.lt.s32.totalorder %s20, 1
      %s334 = scalar_select %p333, %s20, 1
      %s335 = smul.addr %s334, 8
      %s336 = scalar_lea.vmem %s0, %s335
      %p337 = scmp.lt.s32.totalorder %s20, 1
      %s338 = scalar_select %p337, %s20, 1
      %s339 = smul.addr %s338, 8
      %s340 = scalar_lea.vmem %s1, %s339
      %p341 = scmp.lt.s32.totalorder %s20, 1
      %s342 = scalar_select %p341, %s20, 1
      %s343 = smul.addr %s342, 8
      %s344 = scalar_lea.vmem %s9, %s343
      %v346 = vld [vmem:[%s2] sm:$0xff]
      %v347 = vld [vmem:[%s340] sm:$0xff]
      %v348 = vld [vmem:[%s336] sm:$0xff]
      %vm349 = vcmask 261120
      %v350 = vsel %vm349, %v348, 0.0
      %351 = vadd.xlane.f32.xlu0 %v350
      %v352 = vpop.xlane.xlu0 %351
      %v353 = vrcp.pop 32.0
      %v354 = vmul.f32 %v352, %v353
      %v355 = vsub.f32 %v348, %v354
      %v356 = vmul.f32 %v355, %v355
      %v357 = vsel %vm349, %v356, 0.0
      %358 = vadd.xlane.f32.xlu0 %v357
      %v359 = vpop.xlane.xlu0 %358
      %v360 = vmul.f32 %v359, %v353
      %v361 = vadd.f32 %v360, 1e-12
      %v362 = vrsqrt.pop %v361
      %v363 = vmul.f32 %v355, %v362
      %v364 = vlaneseq
      %v365 = vshrl.u32 %v364, 7
      %v366 = vsub.s32 0, %v365
      %v367 = vrot.slane %v346, %v366
      %v368 = vmul.f32 %v363, %v367
      %v369 = vlaneseq
      %v370 = vshrl.u32 %v369, 7
      %v371 = vsub.s32 1, %v370
      %v372 = vrot.slane %v346, %v371
      %v373 = vadd.f32 %v368, %v372
      %v374 = vld [vmem:[%s7] sm:$0xff]
      %v375 = vld [vmem:[%s3] sm:$0xf]
      %v376 = vld [vmem:[%s3 + $0x4] sm:$0xf]
      %v377 = vld [vmem:[%s3 + $0x8] sm:$0xf]
      %v378 = vld [vmem:[%s3 + $0xc] sm:$0xf]
      %v379 = vld [vmem:[%s4] sm:$0xf]
      %v380 = vld [vmem:[%s4 + $0x4] sm:$0xf]
      %v381 = vld [vmem:[%s4 + $0x8] sm:$0xf]
      %v382 = vld [vmem:[%s4 + $0xc] sm:$0xf]
      %v383 = vld [vmem:[%s5] sm:$0xf]
      %v384 = vld [vmem:[%s5 + $0x4] sm:$0xf]
      %v385 = vld [vmem:[%s5 + $0x8] sm:$0xf]
      %v386 = vld [vmem:[%s5 + $0xc] sm:$0xf]
      %v387 = vld [vmem:[%s6] sm:$0xf]
      %v388 = vld [vmem:[%s6 + $0x4] sm:$0xf]
      %v389 = vld [vmem:[%s6 + $0x8] sm:$0xf]
      %v390 = vld [vmem:[%s6 + $0xc] sm:$0xf]
      %v391 = vld [vmem:[%s6 + $0x10] sm:$0xf]
      %v392 = vld [vmem:[%s6 + $0x14] sm:$0xf]
      %v393 = vld [vmem:[%s6 + $0x18] sm:$0xf]
      %v394 = vld [vmem:[%s6 + $0x1c] sm:$0xf]
      %v395 = vld [vmem:[%s6 + $0x20] sm:$0xf]
      %v396 = vld [vmem:[%s6 + $0x24] sm:$0xf]
      %v397 = vld [vmem:[%s6 + $0x28] sm:$0xf]
      %v398 = vld [vmem:[%s6 + $0x2c] sm:$0xf]
      %v399 = vld [vmem:[%s6 + $0x30] sm:$0xf]
      %v400 = vld [vmem:[%s6 + $0x34] sm:$0xf]
      %v401 = vld [vmem:[%s6 + $0x38] sm:$0xf]
      %v402 = vld [vmem:[%s6 + $0x3c] sm:$0xf]
      %v403 = vpack.c.bf16 %v373, %v373
      %v404 = vlaneseq
      %v405 = vshrl.u32 %v404, 7
      %v406 = vsub.s32 0, %v405
      %v407 = vrot.slane %v374, %v406
      %v412 = vunpack.c.l.b16 %v375
      %v413 = vunpack.c.l.b16 %v376
      %v414 = vunpack.c.l.b16 %v377
      %v415 = vunpack.c.l.b16 %v378
      %v416 = vpack.c.b16 %v413, %v412
      %v417 = vpack.c.b16 %v415, %v414
      %v421 = vsel %vm349, %v403, 0
      %423 = vmatprep.subr.bf16.mxu0 0
      %424 = vmatpush1.bf16.msra.mxu0 %v416
      %425 = vmatprep.subr.bf16.mxu0 0
      %426 = vmatpush1.bf16.msra.mxu0 %v417
      %427 = vmatprep.subr.bf16.mxu0 0
      %428 = vmatpush1.bf16.msra.mxu0 0
      %429 = vmatprep.subr.bf16.mxu0 0
      %430 = vmatpush1.bf16.msra.mxu0 0
      %431 = vmatprep.subr.bf16.mxu0 0
      %432 = vmatpush1.bf16.msra.mxu0 0
      %433 = vmatprep.subr.bf16.mxu0 0
      %434 = vmatpush1.bf16.msra.mxu0 0
      %435 = vmatprep.subr.bf16.mxu0 0
      %436 = vmatpush1.bf16.msra.mxu0 0
      %437 = vmatprep.subr.bf16.mxu0 0
      %438 = vmatpush1.bf16.msra.mxu0 0
      %439 = vmatprep.subr.bf16.mxu0 0
      %440 = vmatpush1.bf16.msra.mxu0 0
      %441 = vmatprep.subr.bf16.mxu0 0
      %442 = vmatpush1.bf16.msra.mxu0 0
      %443 = vmatprep.subr.bf16.mxu0 0
      %444 = vmatpush1.bf16.msra.mxu0 0
      %445 = vmatprep.subr.bf16.mxu0 0
      %446 = vmatpush1.bf16.msra.mxu0 0
      %447 = vmatprep.subr.bf16.mxu0 0
      %448 = vmatpush1.bf16.msra.mxu0 0
      %449 = vmatprep.subr.bf16.mxu0 0
      %450 = vmatpush1.bf16.msra.mxu0 0
      %451 = vmatprep.subr.bf16.mxu0 0
      %452 = vmatpush1.bf16.msra.mxu0 0
      %453 = vmatprep.subr.bf16.mxu0 0
      %454 = vmatpush1.bf16.msra.mxu0 0
      %455 = vmatprep.mubr.bf16.mxu0 0
      %456 = vmatmul.mubr.bf16.gmra.mrb[0].mxu0 %v421
      %v457 = vpop.f32.mrb[0].mxu0
      %v458 = vadd.f32 %v407, %v457
      %v459 = vpop.f32.mrb[0].mxu0
      %v460 = vpop.f32.mrb[0].mxu0
      %v461 = vpop.f32.mrb[0].mxu0
      %462 = vdwg.mxu0
      %v463 = vmul.f32 %v458, 0.35355338
      %v464 = vpack.c.bf16 %v463, %v463
      %v465 = vpack.c.bf16 %v458, %v458
      %467 = vrot.lane.b32.xlu0 %v465, 96
      %v468 = vpop.permute.xlu0 %467
      %vm469 = vcmask 64512
      %v471 = vsel %vm469, %v464, 0
      %v474 = vsel %vm469, %v468, 0
      %476 = vmatprep.subr.bf16.mxu0 0
      %477 = vmatpush1.bf16.xpose.msra.mxu0 %v474
      %478 = vmatprep.subr.bf16.mxu0 0
      %479 = vmatpush1.bf16.xpose.msra.mxu0 0
      %480 = vmatprep.subr.bf16.mxu0 0
      %481 = vmatpush1.bf16.xpose.msra.mxu0 0
      %482 = vmatprep.subr.bf16.mxu0 0
      %483 = vmatpush1.bf16.xpose.msra.mxu0 0
      %484 = vmatprep.subr.bf16.mxu0 0
      %485 = vmatpush1.bf16.xpose.msra.mxu0 0
      %486 = vmatprep.subr.bf16.mxu0 0
      %487 = vmatpush1.bf16.xpose.msra.mxu0 0
      %488 = vmatprep.subr.bf16.mxu0 0
      %489 = vmatpush1.bf16.xpose.msra.mxu0 0
      %490 = vmatprep.subr.bf16.mxu0 0
      %491 = vmatpush1.bf16.xpose.msra.mxu0 0
      %492 = vmatprep.subr.bf16.mxu0 0
      %493 = vmatpush1.bf16.xpose.msra.mxu0 0
      %494 = vmatprep.subr.bf16.mxu0 0
      %495 = vmatpush1.bf16.xpose.msra.mxu0 0
      %496 = vmatprep.subr.bf16.mxu0 0
      %497 = vmatpush1.bf16.xpose.msra.mxu0 0
      %498 = vmatprep.subr.bf16.mxu0 0
      %499 = vmatpush1.bf16.xpose.msra.mxu0 0
      %500 = vmatprep.subr.bf16.mxu0 0
      %501 = vmatpush1.bf16.xpose.msra.mxu0 0
      %502 = vmatprep.subr.bf16.mxu0 0
      %503 = vmatpush1.bf16.xpose.msra.mxu0 0
      %504 = vmatprep.subr.bf16.mxu0 0
      %505 = vmatpush1.bf16.xpose.msra.mxu0 0
      %506 = vmatprep.subr.bf16.mxu0 0
      %507 = vmatpush1.bf16.xpose.msra.mxu0 0
      %508 = vmatprep.mubr.bf16.mxu0 0
      %509 = vmatmul.mubr.bf16.gmra.mrb[0].mxu0 %v471
      %v510 = vpop.f32.mrb[0].mxu0
      %v511 = vadd.f32 %v347, %v510
      %v512 = vpop.f32.mrb[0].mxu0
      %v513 = vpop.f32.mrb[0].mxu0
      %v514 = vpop.f32.mrb[0].mxu0
      %515 = vdwg.mxu0
      %v516 = vsel %vm469, %v511, -inf
      %517 = vmax.xlane.f32.xlu0 %v516
      %v518 = vpop.xlane.xlu0 %517
      %v519 = vsub.f32 %v511, %v518
      %v520 = vmul.f32 %v519, 1.442695
      %v521 = vpow.pop %v520
      %v522 = vsel %vm469, %v521, 0.0
      %523 = vadd.xlane.f32.xlu0 %v522
      %v524 = vpop.xlane.xlu0 %523
      %v525 = vrcp.pop %v524
      %v526 = vmul.f32 %v521, %v525
      %v527 = vpack.c.bf16 %v526, %v526
      %528 = vrot.lane.b32.xlu0 %v465, 64
      %v529 = vpop.permute.xlu0 %528
      %v531 = vsel %vm469, %v527, 0
      %vm533 = vcmask 1043456
      %v535 = vsel %vm533, %v529, 0
      %537 = vmatprep.subr.bf16.mxu0 0
      %538 = vmatpush1.bf16.msra.mxu0 %v535
      %539 = vmatprep.subr.bf16.mxu0 0
      %540 = vmatpush1.bf16.msra.mxu0 0
      %541 = vmatprep.subr.bf16.mxu0 0
      %542 = vmatpush1.bf16.msra.mxu0 0
      %543 = vmatprep.subr.bf16.mxu0 0
      %544 = vmatpush1.bf16.msra.mxu0 0
      %545 = vmatprep.subr.bf16.mxu0 0
      %546 = vmatpush1.bf16.msra.mxu0 0
      %547 = vmatprep.subr.bf16.mxu0 0
      %548 = vmatpush1.bf16.msra.mxu0 0
      %549 = vmatprep.subr.bf16.mxu0 0
      %550 = vmatpush1.bf16.msra.mxu0 0
      %551 = vmatprep.subr.bf16.mxu0 0
      %552 = vmatpush1.bf16.msra.mxu0 0
      %553 = vmatprep.subr.bf16.mxu0 0
      %554 = vmatpush1.bf16.msra.mxu0 0
      %555 = vmatprep.subr.bf16.mxu0 0
      %556 = vmatpush1.bf16.msra.mxu0 0
      %557 = vmatprep.subr.bf16.mxu0 0
      %558 = vmatpush1.bf16.msra.mxu0 0
      %559 = vmatprep.subr.bf16.mxu0 0
      %560 = vmatpush1.bf16.msra.mxu0 0
      %561 = vmatprep.subr.bf16.mxu0 0
      %562 = vmatpush1.bf16.msra.mxu0 0
      %563 = vmatprep.subr.bf16.mxu0 0
      %564 = vmatpush1.bf16.msra.mxu0 0
      %565 = vmatprep.subr.bf16.mxu0 0
      %566 = vmatpush1.bf16.msra.mxu0 0
      %567 = vmatprep.subr.bf16.mxu0 0
      %568 = vmatpush1.bf16.msra.mxu0 0
      %569 = vmatprep.mubr.bf16.mxu0 0
      %570 = vmatmul.mubr.bf16.gmra.mrb[0].mxu0 %v531
      %v571 = vpop.f32.mrb[0].mxu0
      %v572 = vadd.f32 0.0, %v571
      %v573 = vpop.f32.mrb[0].mxu0
      %v574 = vpop.f32.mrb[0].mxu0
      %v575 = vpop.f32.mrb[0].mxu0
      %576 = vdwg.mxu0
      %v577 = vpack.c.bf16 %v572, %v572
      %579 = vrot.lane.b32.xlu0 %v464, 120
      %v580 = vpop.permute.xlu0 %579
      %581 = vrot.lane.b32.xlu0 %v465, 88
      %v582 = vpop.permute.xlu0 %581
      %v584 = vsel %vm469, %v580, 0
      %v587 = vsel %vm469, %v582, 0
      %589 = vmatprep.subr.bf16.mxu0 0
      %590 = vmatpush1.bf16.xpose.msra.mxu0 %v587
      %591 = vmatprep.subr.bf16.mxu0 0
      %592 = vmatpush1.bf16.xpose.msra.mxu0 0
      %593 = vmatprep.subr.bf16.mxu0 0
      %594 = vmatpush1.bf16.xpose.msra.mxu0 0
      %595 = vmatprep.subr.bf16.mxu0 0
      %596 = vmatpush1.bf16.xpose.msra.mxu0 0
      %597 = vmatprep.subr.bf16.mxu0 0
      %598 = vmatpush1.bf16.xpose.msra.mxu0 0
      %599 = vmatprep.subr.bf16.mxu0 0
      %600 = vmatpush1.bf16.xpose.msra.mxu0 0
      %601 = vmatprep.subr.bf16.mxu0 0
      %602 = vmatpush1.bf16.xpose.msra.mxu0 0
      %603 = vmatprep.subr.bf16.mxu0 0
      %604 = vmatpush1.bf16.xpose.msra.mxu0 0
      %605 = vmatprep.subr.bf16.mxu0 0
      %606 = vmatpush1.bf16.xpose.msra.mxu0 0
      %607 = vmatprep.subr.bf16.mxu0 0
      %608 = vmatpush1.bf16.xpose.msra.mxu0 0
      %609 = vmatprep.subr.bf16.mxu0 0
      %610 = vmatpush1.bf16.xpose.msra.mxu0 0
      %611 = vmatprep.subr.bf16.mxu0 0
      %612 = vmatpush1.bf16.xpose.msra.mxu0 0
      %613 = vmatprep.subr.bf16.mxu0 0
      %614 = vmatpush1.bf16.xpose.msra.mxu0 0
      %615 = vmatprep.subr.bf16.mxu0 0
      %616 = vmatpush1.bf16.xpose.msra.mxu0 0
      %617 = vmatprep.subr.bf16.mxu0 0
      %618 = vmatpush1.bf16.xpose.msra.mxu0 0
      %619 = vmatprep.subr.bf16.mxu0 0
      %620 = vmatpush1.bf16.xpose.msra.mxu0 0
      %621 = vmatprep.mubr.bf16.mxu0 0
      %622 = vmatmul.mubr.bf16.gmra.mrb[0].mxu0 %v584
      %v623 = vpop.f32.mrb[0].mxu0
      %v624 = vadd.f32 %v347, %v623
      %v625 = vpop.f32.mrb[0].mxu0
      %v626 = vpop.f32.mrb[0].mxu0
      %v627 = vpop.f32.mrb[0].mxu0
      %628 = vdwg.mxu0
      %v629 = vsel %vm469, %v624, -inf
      %630 = vmax.xlane.f32.xlu0 %v629
      %v631 = vpop.xlane.xlu0 %630
      %v632 = vsub.f32 %v624, %v631
      %v633 = vmul.f32 %v632, 1.442695
      %v634 = vpow.pop %v633
      %v635 = vsel %vm469, %v634, 0.0
      %636 = vadd.xlane.f32.xlu0 %v635
      %v637 = vpop.xlane.xlu0 %636
      %v638 = vrcp.pop %v637
      %v639 = vmul.f32 %v634, %v638
      %v640 = vpack.c.bf16 %v639, %v639
      %641 = vrot.lane.b32.xlu0 %v465, 56
      %v642 = vpop.permute.xlu0 %641
      %v644 = vsel %vm469, %v640, 0
      %v647 = vsel %vm533, %v642, 0
      %649 = vmatprep.subr.bf16.mxu0 0
      %650 = vmatpush1.bf16.msra.mxu0 %v647
      %651 = vmatprep.subr.bf16.mxu0 0
      %652 = vmatpush1.bf16.msra.mxu0 0
      %653 = vmatprep.subr.bf16.mxu0 0
      %654 = vmatpush1.bf16.msra.mxu0 0
      %655 = vmatprep.subr.bf16.mxu0 0
      %656 = vmatpush1.bf16.msra.mxu0 0
      %657 = vmatprep.subr.bf16.mxu0 0
      %658 = vmatpush1.bf16.msra.mxu0 0
      %659 = vmatprep.subr.bf16.mxu0 0
      %660 = vmatpush1.bf16.msra.mxu0 0
      %661 = vmatprep.subr.bf16.mxu0 0
      %662 = vmatpush1.bf16.msra.mxu0 0
      %663 = vmatprep.subr.bf16.mxu0 0
      %664 = vmatpush1.bf16.msra.mxu0 0
      %665 = vmatprep.subr.bf16.mxu0 0
      %666 = vmatpush1.bf16.msra.mxu0 0
      %667 = vmatprep.subr.bf16.mxu0 0
      %668 = vmatpush1.bf16.msra.mxu0 0
      %669 = vmatprep.subr.bf16.mxu0 0
      %670 = vmatpush1.bf16.msra.mxu0 0
      %671 = vmatprep.subr.bf16.mxu0 0
      %672 = vmatpush1.bf16.msra.mxu0 0
      %673 = vmatprep.subr.bf16.mxu0 0
      %674 = vmatpush1.bf16.msra.mxu0 0
      %675 = vmatprep.subr.bf16.mxu0 0
      %676 = vmatpush1.bf16.msra.mxu0 0
      %677 = vmatprep.subr.bf16.mxu0 0
      %678 = vmatpush1.bf16.msra.mxu0 0
      %679 = vmatprep.subr.bf16.mxu0 0
      %680 = vmatpush1.bf16.msra.mxu0 0
      %681 = vmatprep.mubr.bf16.mxu0 0
      %682 = vmatmul.mubr.bf16.gmra.mrb[0].mxu0 %v644
      %v683 = vpop.f32.mrb[0].mxu0
      %v684 = vadd.f32 0.0, %v683
      %v685 = vpop.f32.mrb[0].mxu0
      %v686 = vpop.f32.mrb[0].mxu0
      %v687 = vpop.f32.mrb[0].mxu0
      %688 = vdwg.mxu0
      %v689 = vpack.c.bf16 %v684, %v684
      %v691 = vsel %vm469, %v689, 0
      %v694 = vsel %vm533, %v380, 0
      %696 = vmatprep.subr.bf16.mxu0 0
      %697 = vmatpush1.bf16.msra.mxu0 %v694
      %698 = vmatprep.subr.bf16.mxu0 0
      %699 = vmatpush1.bf16.msra.mxu0 0
      %700 = vmatprep.subr.bf16.mxu0 0
      %701 = vmatpush1.bf16.msra.mxu0 0
      %702 = vmatprep.subr.bf16.mxu0 0
      %703 = vmatpush1.bf16.msra.mxu0 0
      %704 = vmatprep.subr.bf16.mxu0 0
      %705 = vmatpush1.bf16.msra.mxu0 0
      %706 = vmatprep.subr.bf16.mxu0 0
      %707 = vmatpush1.bf16.msra.mxu0 0
      %708 = vmatprep.subr.bf16.mxu0 0
      %709 = vmatpush1.bf16.msra.mxu0 0
      %710 = vmatprep.subr.bf16.mxu0 0
      %711 = vmatpush1.bf16.msra.mxu0 0
      %712 = vmatprep.subr.bf16.mxu0 0
      %713 = vmatpush1.bf16.msra.mxu0 0
      %714 = vmatprep.subr.bf16.mxu0 0
      %715 = vmatpush1.bf16.msra.mxu0 0
      %716 = vmatprep.subr.bf16.mxu0 0
      %717 = vmatpush1.bf16.msra.mxu0 0
      %718 = vmatprep.subr.bf16.mxu0 0
      %719 = vmatpush1.bf16.msra.mxu0 0
      %720 = vmatprep.subr.bf16.mxu0 0
      %721 = vmatpush1.bf16.msra.mxu0 0
      %722 = vmatprep.subr.bf16.mxu0 0
      %723 = vmatpush1.bf16.msra.mxu0 0
      %724 = vmatprep.subr.bf16.mxu0 0
      %725 = vmatpush1.bf16.msra.mxu0 0
      %726 = vmatprep.subr.bf16.mxu0 0
      %727 = vmatpush1.bf16.msra.mxu0 0
      %728 = vmatprep.mubr.bf16.mxu0 0
      %729 = vmatmul.mubr.bf16.gmra.mrb[0].mxu0 %v691
      %v730 = vpop.f32.mrb[0].mxu0
      %v731 = vadd.f32 0.0, %v730
      %v732 = vpop.f32.mrb[0].mxu0
      %v733 = vpop.f32.mrb[0].mxu0
      %v734 = vpop.f32.mrb[0].mxu0
      %735 = vdwg.mxu0
      %v737 = vsel %vm469, %v577, 0
      %v740 = vsel %vm533, %v379, 0
      %742 = vmatprep.subr.bf16.mxu0 0
      %743 = vmatpush1.bf16.msra.mxu0 %v740
      %744 = vmatprep.subr.bf16.mxu0 0
      %745 = vmatpush1.bf16.msra.mxu0 0
      %746 = vmatprep.subr.bf16.mxu0 0
      %747 = vmatpush1.bf16.msra.mxu0 0
      %748 = vmatprep.subr.bf16.mxu0 0
      %749 = vmatpush1.bf16.msra.mxu0 0
      %750 = vmatprep.subr.bf16.mxu0 0
      %751 = vmatpush1.bf16.msra.mxu0 0
      %752 = vmatprep.subr.bf16.mxu0 0
      %753 = vmatpush1.bf16.msra.mxu0 0
      %754 = vmatprep.subr.bf16.mxu0 0
      %755 = vmatpush1.bf16.msra.mxu0 0
      %756 = vmatprep.subr.bf16.mxu0 0
      %757 = vmatpush1.bf16.msra.mxu0 0
      %758 = vmatprep.subr.bf16.mxu0 0
      %759 = vmatpush1.bf16.msra.mxu0 0
      %760 = vmatprep.subr.bf16.mxu0 0
      %761 = vmatpush1.bf16.msra.mxu0 0
      %762 = vmatprep.subr.bf16.mxu0 0
      %763 = vmatpush1.bf16.msra.mxu0 0
      %764 = vmatprep.subr.bf16.mxu0 0
      %765 = vmatpush1.bf16.msra.mxu0 0
      %766 = vmatprep.subr.bf16.mxu0 0
      %767 = vmatpush1.bf16.msra.mxu0 0
      %768 = vmatprep.subr.bf16.mxu0 0
      %769 = vmatpush1.bf16.msra.mxu0 0
      %770 = vmatprep.subr.bf16.mxu0 0
      %771 = vmatpush1.bf16.msra.mxu0 0
      %772 = vmatprep.subr.bf16.mxu0 0
      %773 = vmatpush1.bf16.msra.mxu0 0
      %774 = vmatprep.mubr.bf16.mxu0 0
      %775 = vmatmul.mubr.bf16.gmra.mrb[0].mxu0 %v737
      %v776 = vpop.f32.mrb[0].mxu0
      %v777 = vadd.f32 %v731, %v776
      %v778 = vpop.f32.mrb[0].mxu0
      %v779 = vpop.f32.mrb[0].mxu0
      %v780 = vpop.f32.mrb[0].mxu0
      %781 = vdwg.mxu0
      %782 = vrot.lane.b32.xlu0 %v464, 112
      %v783 = vpop.permute.xlu0 %782
      %784 = vrot.lane.b32.xlu0 %v465, 80
      %v785 = vpop.permute.xlu0 %784
      %v787 = vsel %vm469, %v783, 0
      %v790 = vsel %vm469, %v785, 0
      %792 = vmatprep.subr.bf16.mxu0 0
      %793 = vmatpush1.bf16.xpose.msra.mxu0 %v790
      %794 = vmatprep.subr.bf16.mxu0 0
      %795 = vmatpush1.bf16.xpose.msra.mxu0 0
      %796 = vmatprep.subr.bf16.mxu0 0
      %797 = vmatpush1.bf16.xpose.msra.mxu0 0
      %798 = vmatprep.subr.bf16.mxu0 0
      %799 = vmatpush1.bf16.xpose.msra.mxu0 0
      %800 = vmatprep.subr.bf16.mxu0 0
      %801 = vmatpush1.bf16.xpose.msra.mxu0 0
      %802 = vmatprep.subr.bf16.mxu0 0
      %803 = vmatpush1.bf16.xpose.msra.mxu0 0
      %804 = vmatprep.subr.bf16.mxu0 0
      %805 = vmatpush1.bf16.xpose.msra.mxu0 0
      %806 = vmatprep.subr.bf16.mxu0 0
      %807 = vmatpush1.bf16.xpose.msra.mxu0 0
      %808 = vmatprep.subr.bf16.mxu0 0
      %809 = vmatpush1.bf16.xpose.msra.mxu0 0
      %810 = vmatprep.subr.bf16.mxu0 0
      %811 = vmatpush1.bf16.xpose.msra.mxu0 0
      %812 = vmatprep.subr.bf16.mxu0 0
      %813 = vmatpush1.bf16.xpose.msra.mxu0 0
      %814 = vmatprep.subr.bf16.mxu0 0
      %815 = vmatpush1.bf16.xpose.msra.mxu0 0
      %816 = vmatprep.subr.bf16.mxu0 0
      %817 = vmatpush1.bf16.xpose.msra.mxu0 0
      %818 = vmatprep.subr.bf16.mxu0 0
      %819 = vmatpush1.bf16.xpose.msra.mxu0 0
      %820 = vmatprep.subr.bf16.mxu0 0
      %821 = vmatpush1.bf16.xpose.msra.mxu0 0
      %822 = vmatprep.subr.bf16.mxu0 0
      %823 = vmatpush1.bf16.xpose.msra.mxu0 0
      %824 = vmatprep.mubr.bf16.mxu0 0
      %825 = vmatmul.mubr.bf16.gmra.mrb[0].mxu0 %v787
      %v826 = vpop.f32.mrb[0].mxu0
      %v827 = vadd.f32 %v347, %v826
      %v828 = vpop.f32.mrb[0].mxu0
      %v829 = vpop.f32.mrb[0].mxu0
      %v830 = vpop.f32.mrb[0].mxu0
      %831 = vdwg.mxu0
      %v832 = vsel %vm469, %v827, -inf
      %833 = vmax.xlane.f32.xlu0 %v832
      %v834 = vpop.xlane.xlu0 %833
      %v835 = vsub.f32 %v827, %v834
      %v836 = vmul.f32 %v835, 1.442695
      %v837 = vpow.pop %v836
      %v838 = vsel %vm469, %v837, 0.0
      %839 = vadd.xlane.f32.xlu0 %v838
      %v840 = vpop.xlane.xlu0 %839
      %v841 = vrcp.pop %v840
      %v842 = vmul.f32 %v837, %v841
      %v843 = vpack.c.bf16 %v842, %v842
      %844 = vrot.lane.b32.xlu0 %v465, 48
      %v845 = vpop.permute.xlu0 %844
      %v847 = vsel %vm469, %v843, 0
      %v850 = vsel %vm533, %v845, 0
      %852 = vmatprep.subr.bf16.mxu0 0
      %853 = vmatpush1.bf16.msra.mxu0 %v850
      %854 = vmatprep.subr.bf16.mxu0 0
      %855 = vmatpush1.bf16.msra.mxu0 0
      %856 = vmatprep.subr.bf16.mxu0 0
      %857 = vmatpush1.bf16.msra.mxu0 0
      %858 = vmatprep.subr.bf16.mxu0 0
      %859 = vmatpush1.bf16.msra.mxu0 0
      %860 = vmatprep.subr.bf16.mxu0 0
      %861 = vmatpush1.bf16.msra.mxu0 0
      %862 = vmatprep.subr.bf16.mxu0 0
      %863 = vmatpush1.bf16.msra.mxu0 0
      %864 = vmatprep.subr.bf16.mxu0 0
      %865 = vmatpush1.bf16.msra.mxu0 0
      %866 = vmatprep.subr.bf16.mxu0 0
      %867 = vmatpush1.bf16.msra.mxu0 0
      %868 = vmatprep.subr.bf16.mxu0 0
      %869 = vmatpush1.bf16.msra.mxu0 0
      %870 = vmatprep.subr.bf16.mxu0 0
      %871 = vmatpush1.bf16.msra.mxu0 0
      %872 = vmatprep.subr.bf16.mxu0 0
      %873 = vmatpush1.bf16.msra.mxu0 0
      %874 = vmatprep.subr.bf16.mxu0 0
      %875 = vmatpush1.bf16.msra.mxu0 0
      %876 = vmatprep.subr.bf16.mxu0 0
      %877 = vmatpush1.bf16.msra.mxu0 0
      %878 = vmatprep.subr.bf16.mxu0 0
      %879 = vmatpush1.bf16.msra.mxu0 0
      %880 = vmatprep.subr.bf16.mxu0 0
      %881 = vmatpush1.bf16.msra.mxu0 0
      %882 = vmatprep.subr.bf16.mxu0 0
      %883 = vmatpush1.bf16.msra.mxu0 0
      %884 = vmatprep.mubr.bf16.mxu0 0
      %885 = vmatmul.mubr.bf16.gmra.mrb[0].mxu0 %v847
      %v886 = vpop.f32.mrb[0].mxu0
      %v887 = vadd.f32 0.0, %v886
      %v888 = vpop.f32.mrb[0].mxu0
      %v889 = vpop.f32.mrb[0].mxu0
      %v890 = vpop.f32.mrb[0].mxu0
      %891 = vdwg.mxu0
      %v892 = vpack.c.bf16 %v887, %v887
      %v894 = vsel %vm469, %v892, 0
      %v897 = vsel %vm533, %v381, 0
      %899 = vmatprep.subr.bf16.mxu0 0
      %900 = vmatpush1.bf16.msra.mxu0 %v897
      %901 = vmatprep.subr.bf16.mxu0 0
      %902 = vmatpush1.bf16.msra.mxu0 0
      %903 = vmatprep.subr.bf16.mxu0 0
      %904 = vmatpush1.bf16.msra.mxu0 0
      %905 = vmatprep.subr.bf16.mxu0 0
      %906 = vmatpush1.bf16.msra.mxu0 0
      %907 = vmatprep.subr.bf16.mxu0 0
      %908 = vmatpush1.bf16.msra.mxu0 0
      %909 = vmatprep.subr.bf16.mxu0 0
      %910 = vmatpush1.bf16.msra.mxu0 0
      %911 = vmatprep.subr.bf16.mxu0 0
      %912 = vmatpush1.bf16.msra.mxu0 0
      %913 = vmatprep.subr.bf16.mxu0 0
      %914 = vmatpush1.bf16.msra.mxu0 0
      %915 = vmatprep.subr.bf16.mxu0 0
      %916 = vmatpush1.bf16.msra.mxu0 0
      %917 = vmatprep.subr.bf16.mxu0 0
      %918 = vmatpush1.bf16.msra.mxu0 0
      %919 = vmatprep.subr.bf16.mxu0 0
      %920 = vmatpush1.bf16.msra.mxu0 0
      %921 = vmatprep.subr.bf16.mxu0 0
      %922 = vmatpush1.bf16.msra.mxu0 0
      %923 = vmatprep.subr.bf16.mxu0 0
      %924 = vmatpush1.bf16.msra.mxu0 0
      %925 = vmatprep.subr.bf16.mxu0 0
      %926 = vmatpush1.bf16.msra.mxu0 0
      %927 = vmatprep.subr.bf16.mxu0 0
      %928 = vmatpush1.bf16.msra.mxu0 0
      %929 = vmatprep.subr.bf16.mxu0 0
      %930 = vmatpush1.bf16.msra.mxu0 0
      %931 = vmatprep.mubr.bf16.mxu0 0
      %932 = vmatmul.mubr.bf16.gmra.mrb[0].mxu0 %v894
      %v933 = vpop.f32.mrb[0].mxu0
      %v934 = vadd.f32 0.0, %v933
      %v935 = vpop.f32.mrb[0].mxu0
      %v936 = vpop.f32.mrb[0].mxu0
      %v937 = vpop.f32.mrb[0].mxu0
      %938 = vdwg.mxu0
      %v939 = vadd.f32 %v777, %v934
      %940 = vrot.lane.b32.xlu0 %v464, 104
      %v941 = vpop.permute.xlu0 %940
      %942 = vrot.lane.b32.xlu0 %v465, 72
      %v943 = vpop.permute.xlu0 %942
      %v945 = vsel %vm469, %v941, 0
      %v948 = vsel %vm469, %v943, 0
      %950 = vmatprep.subr.bf16.mxu0 0
      %951 = vmatpush1.bf16.xpose.msra.mxu0 %v948
      %952 = vmatprep.subr.bf16.mxu0 0
      %953 = vmatpush1.bf16.xpose.msra.mxu0 0
      %954 = vmatprep.subr.bf16.mxu0 0
      %955 = vmatpush1.bf16.xpose.msra.mxu0 0
      %956 = vmatprep.subr.bf16.mxu0 0
      %957 = vmatpush1.bf16.xpose.msra.mxu0 0
      %958 = vmatprep.subr.bf16.mxu0 0
      %959 = vmatpush1.bf16.xpose.msra.mxu0 0
      %960 = vmatprep.subr.bf16.mxu0 0
      %961 = vmatpush1.bf16.xpose.msra.mxu0 0
      %962 = vmatprep.subr.bf16.mxu0 0
      %963 = vmatpush1.bf16.xpose.msra.mxu0 0
      %964 = vmatprep.subr.bf16.mxu0 0
      %965 = vmatpush1.bf16.xpose.msra.mxu0 0
      %966 = vmatprep.subr.bf16.mxu0 0
      %967 = vmatpush1.bf16.xpose.msra.mxu0 0
      %968 = vmatprep.subr.bf16.mxu0 0
      %969 = vmatpush1.bf16.xpose.msra.mxu0 0
      %970 = vmatprep.subr.bf16.mxu0 0
      %971 = vmatpush1.bf16.xpose.msra.mxu0 0
      %972 = vmatprep.subr.bf16.mxu0 0
      %973 = vmatpush1.bf16.xpose.msra.mxu0 0
      %974 = vmatprep.subr.bf16.mxu0 0
      %975 = vmatpush1.bf16.xpose.msra.mxu0 0
      %976 = vmatprep.subr.bf16.mxu0 0
      %977 = vmatpush1.bf16.xpose.msra.mxu0 0
      %978 = vmatprep.subr.bf16.mxu0 0
      %979 = vmatpush1.bf16.xpose.msra.mxu0 0
      %980 = vmatprep.subr.bf16.mxu0 0
      %981 = vmatpush1.bf16.xpose.msra.mxu0 0
      %982 = vmatprep.mubr.bf16.mxu0 0
      %983 = vmatmul.mubr.bf16.gmra.mrb[0].mxu0 %v945
      %v984 = vpop.f32.mrb[0].mxu0
      %v985 = vadd.f32 %v347, %v984
      %v986 = vpop.f32.mrb[0].mxu0
      %v987 = vpop.f32.mrb[0].mxu0
      %v988 = vpop.f32.mrb[0].mxu0
      %989 = vdwg.mxu0
      %v990 = vsel %vm469, %v985, -inf
      %991 = vmax.xlane.f32.xlu0 %v990
      %v992 = vpop.xlane.xlu0 %991
      %v993 = vsub.f32 %v985, %v992
      %v994 = vmul.f32 %v993, 1.442695
      %v995 = vpow.pop %v994
      %v996 = vsel %vm469, %v995, 0.0
      %997 = vadd.xlane.f32.xlu0 %v996
      %v998 = vpop.xlane.xlu0 %997
      %v999 = vrcp.pop %v998
      %v1000 = vmul.f32 %v995, %v999
      %v1001 = vpack.c.bf16 %v1000, %v1000
      %1002 = vrot.lane.b32.xlu0 %v465, 40
      %v1003 = vpop.permute.xlu0 %1002
      %v1005 = vsel %vm469, %v1001, 0
      %v1008 = vsel %vm533, %v1003, 0
      %1010 = vmatprep.subr.bf16.mxu0 0
      %1011 = vmatpush1.bf16.msra.mxu0 %v1008
      %1012 = vmatprep.subr.bf16.mxu0 0
      %1013 = vmatpush1.bf16.msra.mxu0 0
      %1014 = vmatprep.subr.bf16.mxu0 0
      %1015 = vmatpush1.bf16.msra.mxu0 0
      %1016 = vmatprep.subr.bf16.mxu0 0
      %1017 = vmatpush1.bf16.msra.mxu0 0
      %1018 = vmatprep.subr.bf16.mxu0 0
      %1019 = vmatpush1.bf16.msra.mxu0 0
      %1020 = vmatprep.subr.bf16.mxu0 0
      %1021 = vmatpush1.bf16.msra.mxu0 0
      %1022 = vmatprep.subr.bf16.mxu0 0
      %1023 = vmatpush1.bf16.msra.mxu0 0
      %1024 = vmatprep.subr.bf16.mxu0 0
      %1025 = vmatpush1.bf16.msra.mxu0 0
      %1026 = vmatprep.subr.bf16.mxu0 0
      %1027 = vmatpush1.bf16.msra.mxu0 0
      %1028 = vmatprep.subr.bf16.mxu0 0
      %1029 = vmatpush1.bf16.msra.mxu0 0
      %1030 = vmatprep.subr.bf16.mxu0 0
      %1031 = vmatpush1.bf16.msra.mxu0 0
      %1032 = vmatprep.subr.bf16.mxu0 0
      %1033 = vmatpush1.bf16.msra.mxu0 0
      %1034 = vmatprep.subr.bf16.mxu0 0
      %1035 = vmatpush1.bf16.msra.mxu0 0
      %1036 = vmatprep.subr.bf16.mxu0 0
      %1037 = vmatpush1.bf16.msra.mxu0 0
      %1038 = vmatprep.subr.bf16.mxu0 0
      %1039 = vmatpush1.bf16.msra.mxu0 0
      %1040 = vmatprep.subr.bf16.mxu0 0
      %1041 = vmatpush1.bf16.msra.mxu0 0
      %1042 = vmatprep.mubr.bf16.mxu0 0
      %1043 = vmatmul.mubr.bf16.gmra.mrb[0].mxu0 %v1005
      %v1044 = vpop.f32.mrb[0].mxu0
      %v1045 = vadd.f32 0.0, %v1044
      %v1046 = vpop.f32.mrb[0].mxu0
      %v1047 = vpop.f32.mrb[0].mxu0
      %v1048 = vpop.f32.mrb[0].mxu0
      %1049 = vdwg.mxu0
      %v1050 = vpack.c.bf16 %v1045, %v1045
      %v1052 = vsel %vm469, %v1050, 0
      %v1055 = vsel %vm533, %v382, 0
      %1057 = vmatprep.subr.bf16.mxu0 0
      %1058 = vmatpush1.bf16.msra.mxu0 %v1055
      %1059 = vmatprep.subr.bf16.mxu0 0
      %1060 = vmatpush1.bf16.msra.mxu0 0
      %1061 = vmatprep.subr.bf16.mxu0 0
      %1062 = vmatpush1.bf16.msra.mxu0 0
      %1063 = vmatprep.subr.bf16.mxu0 0
      %1064 = vmatpush1.bf16.msra.mxu0 0
      %1065 = vmatprep.subr.bf16.mxu0 0
      %1066 = vmatpush1.bf16.msra.mxu0 0
      %1067 = vmatprep.subr.bf16.mxu0 0
      %1068 = vmatpush1.bf16.msra.mxu0 0
      %1069 = vmatprep.subr.bf16.mxu0 0
      %1070 = vmatpush1.bf16.msra.mxu0 0
      %1071 = vmatprep.subr.bf16.mxu0 0
      %1072 = vmatpush1.bf16.msra.mxu0 0
      %1073 = vmatprep.subr.bf16.mxu0 0
      %1074 = vmatpush1.bf16.msra.mxu0 0
      %1075 = vmatprep.subr.bf16.mxu0 0
      %1076 = vmatpush1.bf16.msra.mxu0 0
      %1077 = vmatprep.subr.bf16.mxu0 0
      %1078 = vmatpush1.bf16.msra.mxu0 0
      %1079 = vmatprep.subr.bf16.mxu0 0
      %1080 = vmatpush1.bf16.msra.mxu0 0
      %1081 = vmatprep.subr.bf16.mxu0 0
      %1082 = vmatpush1.bf16.msra.mxu0 0
      %1083 = vmatprep.subr.bf16.mxu0 0
      %1084 = vmatpush1.bf16.msra.mxu0 0
      %1085 = vmatprep.subr.bf16.mxu0 0
      %1086 = vmatpush1.bf16.msra.mxu0 0
      %1087 = vmatprep.subr.bf16.mxu0 0
      %1088 = vmatpush1.bf16.msra.mxu0 0
      %1089 = vmatprep.mubr.bf16.mxu0 0
      %1090 = vmatmul.mubr.bf16.gmra.mrb[0].mxu0 %v1052
      %v1091 = vpop.f32.mrb[0].mxu0
      %v1092 = vadd.f32 0.0, %v1091
      %v1093 = vpop.f32.mrb[0].mxu0
      %v1094 = vpop.f32.mrb[0].mxu0
      %v1095 = vpop.f32.mrb[0].mxu0
      %1096 = vdwg.mxu0
      %v1097 = vadd.f32 %v939, %v1092
      %v1098 = vlaneseq
      %v1099 = vshrl.u32 %v1098, 7
      %v1100 = vsub.s32 1, %v1099
      %v1101 = vrot.slane %v374, %v1100
      %v1102 = vadd.f32 %v1097, %v1101
      %v1103 = vadd.f32 %v373, %v1102
      %v1104 = vsel %vm349, %v1103, 0.0
      %1105 = vadd.xlane.f32.xlu0 %v1104
      %v1106 = vpop.xlane.xlu0 %1105
      %v1107 = vmul.f32 %v1106, %v353
      %v1108 = vsub.f32 %v1103, %v1107
      %v1109 = vmul.f32 %v1108, %v1108
      %v1110 = vsel %vm349, %v1109, 0.0
      %1111 = vadd.xlane.f32.xlu0 %v1110
      %v1112 = vpop.xlane.xlu0 %1111
      %v1113 = vmul.f32 %v1112, %v353
      %v1114 = vadd.f32 %v1113, 1e-12
      %v1115 = vrsqrt.pop %v1114
      %v1116 = vmul.f32 %v1108, %v1115
      %v1117 = vlaneseq
      %v1118 = vshrl.u32 %v1117, 7
      %v1119 = vsub.s32 2, %v1118
      %v1120 = vrot.slane %v374, %v1119
      %v1121 = vmul.f32 %v1116, %v1120
      %v1122 = vlaneseq
      %v1123 = vshrl.u32 %v1122, 7
      %v1124 = vsub.s32 3, %v1123
      %v1125 = vrot.slane %v374, %v1124
      %v1126 = vadd.f32 %v1121, %v1125
      %v1127 = vpack.c.bf16 %v1126, %v1126
      %v1128 = vlaneseq
      %v1129 = vshrl.u32 %v1128, 7
      %v1130 = vsub.s32 4, %v1129
      %v1131 = vrot.slane %v374, %v1130
      %v1136 = vunpack.c.l.b16 %v383
      %v1137 = vunpack.c.l.b16 %v384
      %v1138 = vunpack.c.l.b16 %v385
      %v1139 = vunpack.c.l.b16 %v386
      %v1140 = vpack.c.b16 %v1137, %v1136
      %v1141 = vpack.c.b16 %v1139, %v1138
      %v1145 = vsel %vm349, %v1127, 0
      %1147 = vmatprep.subr.bf16.mxu0 0
      %1148 = vmatpush1.bf16.msra.mxu0 %v1140
      %1149 = vmatprep.subr.bf16.mxu0 0
      %1150 = vmatpush1.bf16.msra.mxu0 %v1141
      %1151 = vmatprep.subr.bf16.mxu0 0
      %1152 = vmatpush1.bf16.msra.mxu0 0
      %1153 = vmatprep.subr.bf16.mxu0 0
      %1154 = vmatpush1.bf16.msra.mxu0 0
      %1155 = vmatprep.subr.bf16.mxu0 0
      %1156 = vmatpush1.bf16.msra.mxu0 0
      %1157 = vmatprep.subr.bf16.mxu0 0
      %1158 = vmatpush1.bf16.msra.mxu0 0
      %1159 = vmatprep.subr.bf16.mxu0 0
      %1160 = vmatpush1.bf16.msra.mxu0 0
      %1161 = vmatprep.subr.bf16.mxu0 0
      %1162 = vmatpush1.bf16.msra.mxu0 0
      %1163 = vmatprep.subr.bf16.mxu0 0
      %1164 = vmatpush1.bf16.msra.mxu0 0
      %1165 = vmatprep.subr.bf16.mxu0 0
      %1166 = vmatpush1.bf16.msra.mxu0 0
      %1167 = vmatprep.subr.bf16.mxu0 0
      %1168 = vmatpush1.bf16.msra.mxu0 0
      %1169 = vmatprep.subr.bf16.mxu0 0
      %1170 = vmatpush1.bf16.msra.mxu0 0
      %1171 = vmatprep.subr.bf16.mxu0 0
      %1172 = vmatpush1.bf16.msra.mxu0 0
      %1173 = vmatprep.subr.bf16.mxu0 0
      %1174 = vmatpush1.bf16.msra.mxu0 0
      %1175 = vmatprep.subr.bf16.mxu0 0
      %1176 = vmatpush1.bf16.msra.mxu0 0
      %1177 = vmatprep.subr.bf16.mxu0 0
      %1178 = vmatpush1.bf16.msra.mxu0 0
      %1179 = vmatprep.mubr.bf16.mxu0 0
      %1180 = vmatmul.mubr.bf16.gmra.mrb[0].mxu0 %v1145
      %v1181 = vpop.f32.mrb[0].mxu0
      %v1182 = vadd.f32 %v1131, %v1181
      %v1183 = vpop.f32.mrb[0].mxu0
      %v1184 = vpop.f32.mrb[0].mxu0
      %v1185 = vpop.f32.mrb[0].mxu0
      %1186 = vdwg.mxu0
      %v1187 = vmul.f32 %v1182, 0.5
      %v1188 = vmul.f32 %v1182, 0.044715
      %v1189 = vmul.f32 %v1188, %v1182
      %v1190 = vmul.f32 %v1189, %v1182
      %v1191 = vadd.f32 %v1182, %v1190
      %v1192 = vmul.f32 %v1191, 0.7978846
      %v1193 = vtanh.pop %v1192
      %v1194 = vadd.f32 %v1193, 1.0
      %v1195 = vmul.f32 %v1187, %v1194
      %v1196 = vpack.c.bf16 %v1195, %v1195
      %v1197 = vlaneseq
      %v1198 = vshrl.u32 %v1197, 7
      %v1199 = vsub.s32 5, %v1198
      %v1200 = vrot.slane %v374, %v1199
      %v1217 = vunpack.c.l.b16 %v387
      %v1218 = vunpack.c.l.b16 %v388
      %v1219 = vunpack.c.l.b16 %v389
      %v1220 = vunpack.c.l.b16 %v390
      %v1221 = vunpack.c.l.b16 %v391
      %v1222 = vunpack.c.l.b16 %v392
      %v1223 = vunpack.c.l.b16 %v393
      %v1224 = vunpack.c.l.b16 %v394
      %v1225 = vunpack.c.l.b16 %v395
      %v1226 = vunpack.c.l.b16 %v396
      %v1227 = vunpack.c.l.b16 %v397
      %v1228 = vunpack.c.l.b16 %v398
      %v1229 = vunpack.c.l.b16 %v399
      %v1230 = vunpack.c.l.b16 %v400
      %v1231 = vunpack.c.l.b16 %v401
      %v1232 = vunpack.c.l.b16 %v402
      %v1233 = vpack.c.b16 %v1218, %v1217
      %v1234 = vpack.c.b16 %v1220, %v1219
      %v1235 = vpack.c.b16 %v1222, %v1221
      %v1236 = vpack.c.b16 %v1224, %v1223
      %v1237 = vpack.c.b16 %v1226, %v1225
      %v1238 = vpack.c.b16 %v1228, %v1227
      %v1239 = vpack.c.b16 %v1230, %v1229
      %v1240 = vpack.c.b16 %v1232, %v1231
      %1249 = vmatprep.subr.bf16.mxu0 0
      %1250 = vmatpush1.bf16.msra.mxu0 %v1233
      %1251 = vmatprep.subr.bf16.mxu0 0
      %1252 = vmatpush1.bf16.msra.mxu0 %v1234
      %1253 = vmatprep.subr.bf16.mxu0 0
      %1254 = vmatpush1.bf16.msra.mxu0 %v1235
      %1255 = vmatprep.subr.bf16.mxu0 0
      %1256 = vmatpush1.bf16.msra.mxu0 %v1236
      %1257 = vmatprep.subr.bf16.mxu0 0
      %1258 = vmatpush1.bf16.msra.mxu0 %v1237
      %1259 = vmatprep.subr.bf16.mxu0 0
      %1260 = vmatpush1.bf16.msra.mxu0 %v1238
      %1261 = vmatprep.subr.bf16.mxu0 0
      %1262 = vmatpush1.bf16.msra.mxu0 %v1239
      %1263 = vmatprep.subr.bf16.mxu0 0
      %1264 = vmatpush1.bf16.msra.mxu0 %v1240
      %1265 = vmatprep.subr.bf16.mxu0 0
      %1266 = vmatpush1.bf16.msra.mxu0 0
      %1267 = vmatprep.subr.bf16.mxu0 0
      %1268 = vmatpush1.bf16.msra.mxu0 0
      %1269 = vmatprep.subr.bf16.mxu0 0
      %1270 = vmatpush1.bf16.msra.mxu0 0
      %1271 = vmatprep.subr.bf16.mxu0 0
      %1272 = vmatpush1.bf16.msra.mxu0 0
      %1273 = vmatprep.subr.bf16.mxu0 0
      %1274 = vmatpush1.bf16.msra.mxu0 0
      %1275 = vmatprep.subr.bf16.mxu0 0
      %1276 = vmatpush1.bf16.msra.mxu0 0
      %1277 = vmatprep.subr.bf16.mxu0 0
      %1278 = vmatpush1.bf16.msra.mxu0 0
      %1279 = vmatprep.subr.bf16.mxu0 0
      %1280 = vmatpush1.bf16.msra.mxu0 0
      %1281 = vmatprep.mubr.bf16.mxu0 0
      %1282 = vmatmul.mubr.bf16.gmra.mrb[0].mxu0 %v1196
      %v1283 = vpop.f32.mrb[0].mxu0
      %v1284 = vadd.f32 %v1200, %v1283
      %v1285 = vpop.f32.mrb[0].mxu0
      %v1286 = vpop.f32.mrb[0].mxu0
      %v1287 = vpop.f32.mrb[0].mxu0
      %1288 = vdwg.mxu0
      %v1289 = vadd.f32 %v1126, %v1284
      %v1290 = vsel %vm349, %v1289, 0.0
      %1291 = vadd.xlane.f32.xlu0 %v1290
      %v1292 = vpop.xlane.xlu0 %1291
      %v1293 = vmul.f32 %v1292, %v353
      %v1294 = vsub.f32 %v1289, %v1293
      %v1295 = vmul.f32 %v1294, %v1294
      %v1296 = vsel %vm349, %v1295, 0.0
      %1297 = vadd.xlane.f32.xlu0 %v1296
      %v1298 = vpop.xlane.xlu0 %1297
      %v1299 = vmul.f32 %v1298, %v353
      %v1300 = vadd.f32 %v1299, 1e-12
      %v1301 = vrsqrt.pop %v1300
      %v1302 = vmul.f32 %v1294, %v1301
      %v1303 = vlaneseq
      %v1304 = vshrl.u32 %v1303, 7
      %v1305 = vsub.s32 6, %v1304
      %v1306 = vrot.slane %v374, %v1305
      %v1307 = vmul.f32 %v1302, %v1306
      %v1308 = vlaneseq
      %v1309 = vshrl.u32 %v1308, 7
      %v1310 = vsub.s32 7, %v1309
      %v1311 = vrot.slane %v374, %v1310
      %v1312 = vadd.f32 %v1307, %v1311
      %s1313 = scalar_lea.vmem %s7, 8
      %v1314 = vld [vmem:[%s1313] sm:$0xff]
      %s1315 = scalar_lea.vmem %s3, 16
      %v1316 = vld [vmem:[%s1315] sm:$0xf]
      %v1317 = vld [vmem:[%s1315 + $0x4] sm:$0xf]
      %v1318 = vld [vmem:[%s1315 + $0x8] sm:$0xf]
      %v1319 = vld [vmem:[%s1315 + $0xc] sm:$0xf]
      %s1320 = scalar_lea.vmem %s4, 16
      %v1321 = vld [vmem:[%s1320] sm:$0xf]
      %v1322 = vld [vmem:[%s1320 + $0x4] sm:$0xf]
      %v1323 = vld [vmem:[%s1320 + $0x8] sm:$0xf]
      %v1324 = vld [vmem:[%s1320 + $0xc] sm:$0xf]
      %s1325 = scalar_lea.vmem %s5, 16
      %v1326 = vld [vmem:[%s1325] sm:$0xf]
      %v1327 = vld [vmem:[%s1325 + $0x4] sm:$0xf]
      %v1328 = vld [vmem:[%s1325 + $0x8] sm:$0xf]
      %v1329 = vld [vmem:[%s1325 + $0xc] sm:$0xf]
      %s1330 = scalar_lea.vmem %s6, 64
      %v1331 = vld [vmem:[%s1330] sm:$0xf]
      %v1332 = vld [vmem:[%s1330 + $0x4] sm:$0xf]
      %v1333 = vld [vmem:[%s1330 + $0x8] sm:$0xf]
      %v1334 = vld [vmem:[%s1330 + $0xc] sm:$0xf]
      %v1335 = vld [vmem:[%s1330 + $0x10] sm:$0xf]
      %v1336 = vld [vmem:[%s1330 + $0x14] sm:$0xf]
      %v1337 = vld [vmem:[%s1330 + $0x18] sm:$0xf]
      %v1338 = vld [vmem:[%s1330 + $0x1c] sm:$0xf]
      %v1339 = vld [vmem:[%s1330 + $0x20] sm:$0xf]
      %v1340 = vld [vmem:[%s1330 + $0x24] sm:$0xf]
      %v1341 = vld [vmem:[%s1330 + $0x28] sm:$0xf]
      %v1342 = vld [vmem:[%s1330 + $0x2c] sm:$0xf]
      %v1343 = vld [vmem:[%s1330 + $0x30] sm:$0xf]
      %v1344 = vld [vmem:[%s1330 + $0x34] sm:$0xf]
      %v1345 = vld [vmem:[%s1330 + $0x38] sm:$0xf]
      %v1346 = vld [vmem:[%s1330 + $0x3c] sm:$0xf]
      %v1347 = vpack.c.bf16 %v1312, %v1312
      %v1348 = vlaneseq
      %v1349 = vshrl.u32 %v1348, 7
      %v1350 = vsub.s32 0, %v1349
      %v1351 = vrot.slane %v1314, %v1350
      %v1356 = vunpack.c.l.b16 %v1316
      %v1357 = vunpack.c.l.b16 %v1317
      %v1358 = vunpack.c.l.b16 %v1318
      %v1359 = vunpack.c.l.b16 %v1319
      %v1360 = vpack.c.b16 %v1357, %v1356
      %v1361 = vpack.c.b16 %v1359, %v1358
      %v1365 = vsel %vm349, %v1347, 0
      %1367 = vmatprep.subr.bf16.mxu0 0
      %1368 = vmatpush1.bf16.msra.mxu0 %v1360
      %1369 = vmatprep.subr.bf16.mxu0 0
      %1370 = vmatpush1.bf16.msra.mxu0 %v1361
      %1371 = vmatprep.subr.bf16.mxu0 0
      %1372 = vmatpush1.bf16.msra.mxu0 0
      %1373 = vmatprep.subr.bf16.mxu0 0
      %1374 = vmatpush1.bf16.msra.mxu0 0
      %1375 = vmatprep.subr.bf16.mxu0 0
      %1376 = vmatpush1.bf16.msra.mxu0 0
      %1377 = vmatprep.subr.bf16.mxu0 0
      %1378 = vmatpush1.bf16.msra.mxu0 0
      %1379 = vmatprep.subr.bf16.mxu0 0
      %1380 = vmatpush1.bf16.msra.mxu0 0
      %1381 = vmatprep.subr.bf16.mxu0 0
      %1382 = vmatpush1.bf16.msra.mxu0 0
      %1383 = vmatprep.subr.bf16.mxu0 0
      %1384 = vmatpush1.bf16.msra.mxu0 0
      %1385 = vmatprep.subr.bf16.mxu0 0
      %1386 = vmatpush1.bf16.msra.mxu0 0
      %1387 = vmatprep.subr.bf16.mxu0 0
      %1388 = vmatpush1.bf16.msra.mxu0 0
      %1389 = vmatprep.subr.bf16.mxu0 0
      %1390 = vmatpush1.bf16.msra.mxu0 0
      %1391 = vmatprep.subr.bf16.mxu0 0
      %1392 = vmatpush1.bf16.msra.mxu0 0
      %1393 = vmatprep.subr.bf16.mxu0 0
      %1394 = vmatpush1.bf16.msra.mxu0 0
      %1395 = vmatprep.subr.bf16.mxu0 0
      %1396 = vmatpush1.bf16.msra.mxu0 0
      %1397 = vmatprep.subr.bf16.mxu0 0
      %1398 = vmatpush1.bf16.msra.mxu0 0
      %1399 = vmatprep.mubr.bf16.mxu0 0
      %1400 = vmatmul.mubr.bf16.gmra.mrb[0].mxu0 %v1365
      %v1401 = vpop.f32.mrb[0].mxu0
      %v1402 = vadd.f32 %v1351, %v1401
      %v1403 = vpop.f32.mrb[0].mxu0
      %v1404 = vpop.f32.mrb[0].mxu0
      %v1405 = vpop.f32.mrb[0].mxu0
      %1406 = vdwg.mxu0
      %v1407 = vmul.f32 %v1402, 0.35355338
      %v1408 = vpack.c.bf16 %v1407, %v1407
      %v1409 = vpack.c.bf16 %v1402, %v1402
      %1411 = vrot.lane.b32.xlu0 %v1409, 96
      %v1412 = vpop.permute.xlu0 %1411
      %v1414 = vsel %vm469, %v1408, 0
      %v1417 = vsel %vm469, %v1412, 0
      %1419 = vmatprep.subr.bf16.mxu0 0
      %1420 = vmatpush1.bf16.xpose.msra.mxu0 %v1417
      %1421 = vmatprep.subr.bf16.mxu0 0
      %1422 = vmatpush1.bf16.xpose.msra.mxu0 0
      %1423 = vmatprep.subr.bf16.mxu0 0
      %1424 = vmatpush1.bf16.xpose.msra.mxu0 0
      %1425 = vmatprep.subr.bf16.mxu0 0
      %1426 = vmatpush1.bf16.xpose.msra.mxu0 0
      %1427 = vmatprep.subr.bf16.mxu0 0
      %1428 = vmatpush1.bf16.xpose.msra.mxu0 0
      %1429 = vmatprep.subr.bf16.mxu0 0
      %1430 = vmatpush1.bf16.xpose.msra.mxu0 0
      %1431 = vmatprep.subr.bf16.mxu0 0
      %1432 = vmatpush1.bf16.xpose.msra.mxu0 0
      %1433 = vmatprep.subr.bf16.mxu0 0
      %1434 = vmatpush1.bf16.xpose.msra.mxu0 0
      %1435 = vmatprep.subr.bf16.mxu0 0
      %1436 = vmatpush1.bf16.xpose.msra.mxu0 0
      %1437 = vmatprep.subr.bf16.mxu0 0
      %1438 = vmatpush1.bf16.xpose.msra.mxu0 0
      %1439 = vmatprep.subr.bf16.mxu0 0
      %1440 = vmatpush1.bf16.xpose.msra.mxu0 0
      %1441 = vmatprep.subr.bf16.mxu0 0
      %1442 = vmatpush1.bf16.xpose.msra.mxu0 0
      %1443 = vmatprep.subr.bf16.mxu0 0
      %1444 = vmatpush1.bf16.xpose.msra.mxu0 0
      %1445 = vmatprep.subr.bf16.mxu0 0
      %1446 = vmatpush1.bf16.xpose.msra.mxu0 0
      %1447 = vmatprep.subr.bf16.mxu0 0
      %1448 = vmatpush1.bf16.xpose.msra.mxu0 0
      %1449 = vmatprep.subr.bf16.mxu0 0
      %1450 = vmatpush1.bf16.xpose.msra.mxu0 0
      %1451 = vmatprep.mubr.bf16.mxu0 0
      %1452 = vmatmul.mubr.bf16.gmra.mrb[0].mxu0 %v1414
      %v1453 = vpop.f32.mrb[0].mxu0
      %v1454 = vadd.f32 %v347, %v1453
      %v1455 = vpop.f32.mrb[0].mxu0
      %v1456 = vpop.f32.mrb[0].mxu0
      %v1457 = vpop.f32.mrb[0].mxu0
      %1458 = vdwg.mxu0
      %v1459 = vsel %vm469, %v1454, -inf
      %1460 = vmax.xlane.f32.xlu0 %v1459
      %v1461 = vpop.xlane.xlu0 %1460
      %v1462 = vsub.f32 %v1454, %v1461
      %v1463 = vmul.f32 %v1462, 1.442695
      %v1464 = vpow.pop %v1463
      %v1465 = vsel %vm469, %v1464, 0.0
      %1466 = vadd.xlane.f32.xlu0 %v1465
      %v1467 = vpop.xlane.xlu0 %1466
      %v1468 = vrcp.pop %v1467
      %v1469 = vmul.f32 %v1464, %v1468
      %v1470 = vpack.c.bf16 %v1469, %v1469
      %1471 = vrot.lane.b32.xlu0 %v1409, 64
      %v1472 = vpop.permute.xlu0 %1471
      %v1474 = vsel %vm469, %v1470, 0
      %v1477 = vsel %vm533, %v1472, 0
      %1479 = vmatprep.subr.bf16.mxu0 0
      %1480 = vmatpush1.bf16.msra.mxu0 %v1477
      %1481 = vmatprep.subr.bf16.mxu0 0
      %1482 = vmatpush1.bf16.msra.mxu0 0
      %1483 = vmatprep.subr.bf16.mxu0 0
      %1484 = vmatpush1.bf16.msra.mxu0 0
      %1485 = vmatprep.subr.bf16.mxu0 0
      %1486 = vmatpush1.bf16.msra.mxu0 0
      %1487 = vmatprep.subr.bf16.mxu0 0
      %1488 = vmatpush1.bf16.msra.mxu0 0
      %1489 = vmatprep.subr.bf16.mxu0 0
      %1490 = vmatpush1.bf16.msra.mxu0 0
      %1491 = vmatprep.subr.bf16.mxu0 0
      %1492 = vmatpush1.bf16.msra.mxu0 0
      %1493 = vmatprep.subr.bf16.mxu0 0
      %1494 = vmatpush1.bf16.msra.mxu0 0
      %1495 = vmatprep.subr.bf16.mxu0 0
      %1496 = vmatpush1.bf16.msra.mxu0 0
      %1497 = vmatprep.subr.bf16.mxu0 0
      %1498 = vmatpush1.bf16.msra.mxu0 0
      %1499 = vmatprep.subr.bf16.mxu0 0
      %1500 = vmatpush1.bf16.msra.mxu0 0
      %1501 = vmatprep.subr.bf16.mxu0 0
      %1502 = vmatpush1.bf16.msra.mxu0 0
      %1503 = vmatprep.subr.bf16.mxu0 0
      %1504 = vmatpush1.bf16.msra.mxu0 0
      %1505 = vmatprep.subr.bf16.mxu0 0
      %1506 = vmatpush1.bf16.msra.mxu0 0
      %1507 = vmatprep.subr.bf16.mxu0 0
      %1508 = vmatpush1.bf16.msra.mxu0 0
      %1509 = vmatprep.subr.bf16.mxu0 0
      %1510 = vmatpush1.bf16.msra.mxu0 0
      %1511 = vmatprep.mubr.bf16.mxu0 0
      %1512 = vmatmul.mubr.bf16.gmra.mrb[0].mxu0 %v1474
      %v1513 = vpop.f32.mrb[0].mxu0
      %v1514 = vadd.f32 0.0, %v1513
      %v1515 = vpop.f32.mrb[0].mxu0
      %v1516 = vpop.f32.mrb[0].mxu0
      %v1517 = vpop.f32.mrb[0].mxu0
      %1518 = vdwg.mxu0
      %v1519 = vpack.c.bf16 %v1514, %v1514
      %1521 = vrot.lane.b32.xlu0 %v1408, 120
      %v1522 = vpop.permute.xlu0 %1521
      %1523 = vrot.lane.b32.xlu0 %v1409, 88
      %v1524 = vpop.permute.xlu0 %1523
      %v1526 = vsel %vm469, %v1522, 0
      %v1529 = vsel %vm469, %v1524, 0
      %1531 = vmatprep.subr.bf16.mxu0 0
      %1532 = vmatpush1.bf16.xpose.msra.mxu0 %v1529
      %1533 = vmatprep.subr.bf16.mxu0 0
      %1534 = vmatpush1.bf16.xpose.msra.mxu0 0
      %1535 = vmatprep.subr.bf16.mxu0 0
      %1536 = vmatpush1.bf16.xpose.msra.mxu0 0
      %1537 = vmatprep.subr.bf16.mxu0 0
      %1538 = vmatpush1.bf16.xpose.msra.mxu0 0
      %1539 = vmatprep.subr.bf16.mxu0 0
      %1540 = vmatpush1.bf16.xpose.msra.mxu0 0
      %1541 = vmatprep.subr.bf16.mxu0 0
      %1542 = vmatpush1.bf16.xpose.msra.mxu0 0
      %1543 = vmatprep.subr.bf16.mxu0 0
      %1544 = vmatpush1.bf16.xpose.msra.mxu0 0
      %1545 = vmatprep.subr.bf16.mxu0 0
      %1546 = vmatpush1.bf16.xpose.msra.mxu0 0
      %1547 = vmatprep.subr.bf16.mxu0 0
      %1548 = vmatpush1.bf16.xpose.msra.mxu0 0
      %1549 = vmatprep.subr.bf16.mxu0 0
      %1550 = vmatpush1.bf16.xpose.msra.mxu0 0
      %1551 = vmatprep.subr.bf16.mxu0 0
      %1552 = vmatpush1.bf16.xpose.msra.mxu0 0
      %1553 = vmatprep.subr.bf16.mxu0 0
      %1554 = vmatpush1.bf16.xpose.msra.mxu0 0
      %1555 = vmatprep.subr.bf16.mxu0 0
      %1556 = vmatpush1.bf16.xpose.msra.mxu0 0
      %1557 = vmatprep.subr.bf16.mxu0 0
      %1558 = vmatpush1.bf16.xpose.msra.mxu0 0
      %1559 = vmatprep.subr.bf16.mxu0 0
      %1560 = vmatpush1.bf16.xpose.msra.mxu0 0
      %1561 = vmatprep.subr.bf16.mxu0 0
      %1562 = vmatpush1.bf16.xpose.msra.mxu0 0
      %1563 = vmatprep.mubr.bf16.mxu0 0
      %1564 = vmatmul.mubr.bf16.gmra.mrb[0].mxu0 %v1526
      %v1565 = vpop.f32.mrb[0].mxu0
      %v1566 = vadd.f32 %v347, %v1565
      %v1567 = vpop.f32.mrb[0].mxu0
      %v1568 = vpop.f32.mrb[0].mxu0
      %v1569 = vpop.f32.mrb[0].mxu0
      %1570 = vdwg.mxu0
      %v1571 = vsel %vm469, %v1566, -inf
      %1572 = vmax.xlane.f32.xlu0 %v1571
      %v1573 = vpop.xlane.xlu0 %1572
      %v1574 = vsub.f32 %v1566, %v1573
      %v1575 = vmul.f32 %v1574, 1.442695
      %v1576 = vpow.pop %v1575
      %v1577 = vsel %vm469, %v1576, 0.0
      %1578 = vadd.xlane.f32.xlu0 %v1577
      %v1579 = vpop.xlane.xlu0 %1578
      %v1580 = vrcp.pop %v1579
      %v1581 = vmul.f32 %v1576, %v1580
      %v1582 = vpack.c.bf16 %v1581, %v1581
      %1583 = vrot.lane.b32.xlu0 %v1409, 56
      %v1584 = vpop.permute.xlu0 %1583
      %v1586 = vsel %vm469, %v1582, 0
      %v1589 = vsel %vm533, %v1584, 0
      %1591 = vmatprep.subr.bf16.mxu0 0
      %1592 = vmatpush1.bf16.msra.mxu0 %v1589
      %1593 = vmatprep.subr.bf16.mxu0 0
      %1594 = vmatpush1.bf16.msra.mxu0 0
      %1595 = vmatprep.subr.bf16.mxu0 0
      %1596 = vmatpush1.bf16.msra.mxu0 0
      %1597 = vmatprep.subr.bf16.mxu0 0
      %1598 = vmatpush1.bf16.msra.mxu0 0
      %1599 = vmatprep.subr.bf16.mxu0 0
      %1600 = vmatpush1.bf16.msra.mxu0 0
      %1601 = vmatprep.subr.bf16.mxu0 0
      %1602 = vmatpush1.bf16.msra.mxu0 0
      %1603 = vmatprep.subr.bf16.mxu0 0
      %1604 = vmatpush1.bf16.msra.mxu0 0
      %1605 = vmatprep.subr.bf16.mxu0 0
      %1606 = vmatpush1.bf16.msra.mxu0 0
      %1607 = vmatprep.subr.bf16.mxu0 0
      %1608 = vmatpush1.bf16.msra.mxu0 0
      %1609 = vmatprep.subr.bf16.mxu0 0
      %1610 = vmatpush1.bf16.msra.mxu0 0
      %1611 = vmatprep.subr.bf16.mxu0 0
      %1612 = vmatpush1.bf16.msra.mxu0 0
      %1613 = vmatprep.subr.bf16.mxu0 0
      %1614 = vmatpush1.bf16.msra.mxu0 0
      %1615 = vmatprep.subr.bf16.mxu0 0
      %1616 = vmatpush1.bf16.msra.mxu0 0
      %1617 = vmatprep.subr.bf16.mxu0 0
      %1618 = vmatpush1.bf16.msra.mxu0 0
      %1619 = vmatprep.subr.bf16.mxu0 0
      %1620 = vmatpush1.bf16.msra.mxu0 0
      %1621 = vmatprep.subr.bf16.mxu0 0
      %1622 = vmatpush1.bf16.msra.mxu0 0
      %1623 = vmatprep.mubr.bf16.mxu0 0
      %1624 = vmatmul.mubr.bf16.gmra.mrb[0].mxu0 %v1586
      %v1625 = vpop.f32.mrb[0].mxu0
      %v1626 = vadd.f32 0.0, %v1625
      %v1627 = vpop.f32.mrb[0].mxu0
      %v1628 = vpop.f32.mrb[0].mxu0
      %v1629 = vpop.f32.mrb[0].mxu0
      %1630 = vdwg.mxu0
      %v1631 = vpack.c.bf16 %v1626, %v1626
      %v1633 = vsel %vm469, %v1631, 0
      %v1636 = vsel %vm533, %v1322, 0
      %1638 = vmatprep.subr.bf16.mxu0 0
      %1639 = vmatpush1.bf16.msra.mxu0 %v1636
      %1640 = vmatprep.subr.bf16.mxu0 0
      %1641 = vmatpush1.bf16.msra.mxu0 0
      %1642 = vmatprep.subr.bf16.mxu0 0
      %1643 = vmatpush1.bf16.msra.mxu0 0
      %1644 = vmatprep.subr.bf16.mxu0 0
      %1645 = vmatpush1.bf16.msra.mxu0 0
      %1646 = vmatprep.subr.bf16.mxu0 0
      %1647 = vmatpush1.bf16.msra.mxu0 0
      %1648 = vmatprep.subr.bf16.mxu0 0
      %1649 = vmatpush1.bf16.msra.mxu0 0
      %1650 = vmatprep.subr.bf16.mxu0 0
      %1651 = vmatpush1.bf16.msra.mxu0 0
      %1652 = vmatprep.subr.bf16.mxu0 0
      %1653 = vmatpush1.bf16.msra.mxu0 0
      %1654 = vmatprep.subr.bf16.mxu0 0
      %1655 = vmatpush1.bf16.msra.mxu0 0
      %1656 = vmatprep.subr.bf16.mxu0 0
      %1657 = vmatpush1.bf16.msra.mxu0 0
      %1658 = vmatprep.subr.bf16.mxu0 0
      %1659 = vmatpush1.bf16.msra.mxu0 0
      %1660 = vmatprep.subr.bf16.mxu0 0
      %1661 = vmatpush1.bf16.msra.mxu0 0
      %1662 = vmatprep.subr.bf16.mxu0 0
      %1663 = vmatpush1.bf16.msra.mxu0 0
      %1664 = vmatprep.subr.bf16.mxu0 0
      %1665 = vmatpush1.bf16.msra.mxu0 0
      %1666 = vmatprep.subr.bf16.mxu0 0
      %1667 = vmatpush1.bf16.msra.mxu0 0
      %1668 = vmatprep.subr.bf16.mxu0 0
      %1669 = vmatpush1.bf16.msra.mxu0 0
      %1670 = vmatprep.mubr.bf16.mxu0 0
      %1671 = vmatmul.mubr.bf16.gmra.mrb[0].mxu0 %v1633
      %v1672 = vpop.f32.mrb[0].mxu0
      %v1673 = vadd.f32 0.0, %v1672
      %v1674 = vpop.f32.mrb[0].mxu0
      %v1675 = vpop.f32.mrb[0].mxu0
      %v1676 = vpop.f32.mrb[0].mxu0
      %1677 = vdwg.mxu0
      %v1679 = vsel %vm469, %v1519, 0
      %v1682 = vsel %vm533, %v1321, 0
      %1684 = vmatprep.subr.bf16.mxu0 0
      %1685 = vmatpush1.bf16.msra.mxu0 %v1682
      %1686 = vmatprep.subr.bf16.mxu0 0
      %1687 = vmatpush1.bf16.msra.mxu0 0
      %1688 = vmatprep.subr.bf16.mxu0 0
      %1689 = vmatpush1.bf16.msra.mxu0 0
      %1690 = vmatprep.subr.bf16.mxu0 0
      %1691 = vmatpush1.bf16.msra.mxu0 0
      %1692 = vmatprep.subr.bf16.mxu0 0
      %1693 = vmatpush1.bf16.msra.mxu0 0
      %1694 = vmatprep.subr.bf16.mxu0 0
      %1695 = vmatpush1.bf16.msra.mxu0 0
      %1696 = vmatprep.subr.bf16.mxu0 0
      %1697 = vmatpush1.bf16.msra.mxu0 0
      %1698 = vmatprep.subr.bf16.mxu0 0
      %1699 = vmatpush1.bf16.msra.mxu0 0
      %1700 = vmatprep.subr.bf16.mxu0 0
      %1701 = vmatpush1.bf16.msra.mxu0 0
      %1702 = vmatprep.subr.bf16.mxu0 0
      %1703 = vmatpush1.bf16.msra.mxu0 0
      %1704 = vmatprep.subr.bf16.mxu0 0
      %1705 = vmatpush1.bf16.msra.mxu0 0
      %1706 = vmatprep.subr.bf16.mxu0 0
      %1707 = vmatpush1.bf16.msra.mxu0 0
      %1708 = vmatprep.subr.bf16.mxu0 0
      %1709 = vmatpush1.bf16.msra.mxu0 0
      %1710 = vmatprep.subr.bf16.mxu0 0
      %1711 = vmatpush1.bf16.msra.mxu0 0
      %1712 = vmatprep.subr.bf16.mxu0 0
      %1713 = vmatpush1.bf16.msra.mxu0 0
      %1714 = vmatprep.subr.bf16.mxu0 0
      %1715 = vmatpush1.bf16.msra.mxu0 0
      %1716 = vmatprep.mubr.bf16.mxu0 0
      %1717 = vmatmul.mubr.bf16.gmra.mrb[0].mxu0 %v1679
      %v1718 = vpop.f32.mrb[0].mxu0
      %v1719 = vadd.f32 %v1673, %v1718
      %v1720 = vpop.f32.mrb[0].mxu0
      %v1721 = vpop.f32.mrb[0].mxu0
      %v1722 = vpop.f32.mrb[0].mxu0
      %1723 = vdwg.mxu0
      %1724 = vrot.lane.b32.xlu0 %v1408, 112
      %v1725 = vpop.permute.xlu0 %1724
      %1726 = vrot.lane.b32.xlu0 %v1409, 80
      %v1727 = vpop.permute.xlu0 %1726
      %v1729 = vsel %vm469, %v1725, 0
      %v1732 = vsel %vm469, %v1727, 0
      %1734 = vmatprep.subr.bf16.mxu0 0
      %1735 = vmatpush1.bf16.xpose.msra.mxu0 %v1732
      %1736 = vmatprep.subr.bf16.mxu0 0
      %1737 = vmatpush1.bf16.xpose.msra.mxu0 0
      %1738 = vmatprep.subr.bf16.mxu0 0
      %1739 = vmatpush1.bf16.xpose.msra.mxu0 0
      %1740 = vmatprep.subr.bf16.mxu0 0
      %1741 = vmatpush1.bf16.xpose.msra.mxu0 0
      %1742 = vmatprep.subr.bf16.mxu0 0
      %1743 = vmatpush1.bf16.xpose.msra.mxu0 0
      %1744 = vmatprep.subr.bf16.mxu0 0
      %1745 = vmatpush1.bf16.xpose.msra.mxu0 0
      %1746 = vmatprep.subr.bf16.mxu0 0
      %1747 = vmatpush1.bf16.xpose.msra.mxu0 0
      %1748 = vmatprep.subr.bf16.mxu0 0
      %1749 = vmatpush1.bf16.xpose.msra.mxu0 0
      %1750 = vmatprep.subr.bf16.mxu0 0
      %1751 = vmatpush1.bf16.xpose.msra.mxu0 0
      %1752 = vmatprep.subr.bf16.mxu0 0
      %1753 = vmatpush1.bf16.xpose.msra.mxu0 0
      %1754 = vmatprep.subr.bf16.mxu0 0
      %1755 = vmatpush1.bf16.xpose.msra.mxu0 0
      %1756 = vmatprep.subr.bf16.mxu0 0
      %1757 = vmatpush1.bf16.xpose.msra.mxu0 0
      %1758 = vmatprep.subr.bf16.mxu0 0
      %1759 = vmatpush1.bf16.xpose.msra.mxu0 0
      %1760 = vmatprep.subr.bf16.mxu0 0
      %1761 = vmatpush1.bf16.xpose.msra.mxu0 0
      %1762 = vmatprep.subr.bf16.mxu0 0
      %1763 = vmatpush1.bf16.xpose.msra.mxu0 0
      %1764 = vmatprep.subr.bf16.mxu0 0
      %1765 = vmatpush1.bf16.xpose.msra.mxu0 0
      %1766 = vmatprep.mubr.bf16.mxu0 0
      %1767 = vmatmul.mubr.bf16.gmra.mrb[0].mxu0 %v1729
      %v1768 = vpop.f32.mrb[0].mxu0
      %v1769 = vadd.f32 %v347, %v1768
      %v1770 = vpop.f32.mrb[0].mxu0
      %v1771 = vpop.f32.mrb[0].mxu0
      %v1772 = vpop.f32.mrb[0].mxu0
      %1773 = vdwg.mxu0
      %v1774 = vsel %vm469, %v1769, -inf
      %1775 = vmax.xlane.f32.xlu0 %v1774
      %v1776 = vpop.xlane.xlu0 %1775
      %v1777 = vsub.f32 %v1769, %v1776
      %v1778 = vmul.f32 %v1777, 1.442695
      %v1779 = vpow.pop %v1778
      %v1780 = vsel %vm469, %v1779, 0.0
      %1781 = vadd.xlane.f32.xlu0 %v1780
      %v1782 = vpop.xlane.xlu0 %1781
      %v1783 = vrcp.pop %v1782
      %v1784 = vmul.f32 %v1779, %v1783
      %v1785 = vpack.c.bf16 %v1784, %v1784
      %1786 = vrot.lane.b32.xlu0 %v1409, 48
      %v1787 = vpop.permute.xlu0 %1786
      %v1789 = vsel %vm469, %v1785, 0
      %v1792 = vsel %vm533, %v1787, 0
      %1794 = vmatprep.subr.bf16.mxu0 0
      %1795 = vmatpush1.bf16.msra.mxu0 %v1792
      %1796 = vmatprep.subr.bf16.mxu0 0
      %1797 = vmatpush1.bf16.msra.mxu0 0
      %1798 = vmatprep.subr.bf16.mxu0 0
      %1799 = vmatpush1.bf16.msra.mxu0 0
      %1800 = vmatprep.subr.bf16.mxu0 0
      %1801 = vmatpush1.bf16.msra.mxu0 0
      %1802 = vmatprep.subr.bf16.mxu0 0
      %1803 = vmatpush1.bf16.msra.mxu0 0
      %1804 = vmatprep.subr.bf16.mxu0 0
      %1805 = vmatpush1.bf16.msra.mxu0 0
      %1806 = vmatprep.subr.bf16.mxu0 0
      %1807 = vmatpush1.bf16.msra.mxu0 0
      %1808 = vmatprep.subr.bf16.mxu0 0
      %1809 = vmatpush1.bf16.msra.mxu0 0
      %1810 = vmatprep.subr.bf16.mxu0 0
      %1811 = vmatpush1.bf16.msra.mxu0 0
      %1812 = vmatprep.subr.bf16.mxu0 0
      %1813 = vmatpush1.bf16.msra.mxu0 0
      %1814 = vmatprep.subr.bf16.mxu0 0
      %1815 = vmatpush1.bf16.msra.mxu0 0
      %1816 = vmatprep.subr.bf16.mxu0 0
      %1817 = vmatpush1.bf16.msra.mxu0 0
      %1818 = vmatprep.subr.bf16.mxu0 0
      %1819 = vmatpush1.bf16.msra.mxu0 0
      %1820 = vmatprep.subr.bf16.mxu0 0
      %1821 = vmatpush1.bf16.msra.mxu0 0
      %1822 = vmatprep.subr.bf16.mxu0 0
      %1823 = vmatpush1.bf16.msra.mxu0 0
      %1824 = vmatprep.subr.bf16.mxu0 0
      %1825 = vmatpush1.bf16.msra.mxu0 0
      %1826 = vmatprep.mubr.bf16.mxu0 0
      %1827 = vmatmul.mubr.bf16.gmra.mrb[0].mxu0 %v1789
      %v1828 = vpop.f32.mrb[0].mxu0
      %v1829 = vadd.f32 0.0, %v1828
      %v1830 = vpop.f32.mrb[0].mxu0
      %v1831 = vpop.f32.mrb[0].mxu0
      %v1832 = vpop.f32.mrb[0].mxu0
      %1833 = vdwg.mxu0
      %v1834 = vpack.c.bf16 %v1829, %v1829
      %v1836 = vsel %vm469, %v1834, 0
      %v1839 = vsel %vm533, %v1323, 0
      %1841 = vmatprep.subr.bf16.mxu0 0
      %1842 = vmatpush1.bf16.msra.mxu0 %v1839
      %1843 = vmatprep.subr.bf16.mxu0 0
      %1844 = vmatpush1.bf16.msra.mxu0 0
      %1845 = vmatprep.subr.bf16.mxu0 0
      %1846 = vmatpush1.bf16.msra.mxu0 0
      %1847 = vmatprep.subr.bf16.mxu0 0
      %1848 = vmatpush1.bf16.msra.mxu0 0
      %1849 = vmatprep.subr.bf16.mxu0 0
      %1850 = vmatpush1.bf16.msra.mxu0 0
      %1851 = vmatprep.subr.bf16.mxu0 0
      %1852 = vmatpush1.bf16.msra.mxu0 0
      %1853 = vmatprep.subr.bf16.mxu0 0
      %1854 = vmatpush1.bf16.msra.mxu0 0
      %1855 = vmatprep.subr.bf16.mxu0 0
      %1856 = vmatpush1.bf16.msra.mxu0 0
      %1857 = vmatprep.subr.bf16.mxu0 0
      %1858 = vmatpush1.bf16.msra.mxu0 0
      %1859 = vmatprep.subr.bf16.mxu0 0
      %1860 = vmatpush1.bf16.msra.mxu0 0
      %1861 = vmatprep.subr.bf16.mxu0 0
      %1862 = vmatpush1.bf16.msra.mxu0 0
      %1863 = vmatprep.subr.bf16.mxu0 0
      %1864 = vmatpush1.bf16.msra.mxu0 0
      %1865 = vmatprep.subr.bf16.mxu0 0
      %1866 = vmatpush1.bf16.msra.mxu0 0
      %1867 = vmatprep.subr.bf16.mxu0 0
      %1868 = vmatpush1.bf16.msra.mxu0 0
      %1869 = vmatprep.subr.bf16.mxu0 0
      %1870 = vmatpush1.bf16.msra.mxu0 0
      %1871 = vmatprep.subr.bf16.mxu0 0
      %1872 = vmatpush1.bf16.msra.mxu0 0
      %1873 = vmatprep.mubr.bf16.mxu0 0
      %1874 = vmatmul.mubr.bf16.gmra.mrb[0].mxu0 %v1836
      %v1875 = vpop.f32.mrb[0].mxu0
      %v1876 = vadd.f32 0.0, %v1875
      %v1877 = vpop.f32.mrb[0].mxu0
      %v1878 = vpop.f32.mrb[0].mxu0
      %v1879 = vpop.f32.mrb[0].mxu0
      %1880 = vdwg.mxu0
      %v1881 = vadd.f32 %v1719, %v1876
      %1882 = vrot.lane.b32.xlu0 %v1408, 104
      %v1883 = vpop.permute.xlu0 %1882
      %1884 = vrot.lane.b32.xlu0 %v1409, 72
      %v1885 = vpop.permute.xlu0 %1884
      %v1887 = vsel %vm469, %v1883, 0
      %v1890 = vsel %vm469, %v1885, 0
      %1892 = vmatprep.subr.bf16.mxu0 0
      %1893 = vmatpush1.bf16.xpose.msra.mxu0 %v1890
      %1894 = vmatprep.subr.bf16.mxu0 0
      %1895 = vmatpush1.bf16.xpose.msra.mxu0 0
      %1896 = vmatprep.subr.bf16.mxu0 0
      %1897 = vmatpush1.bf16.xpose.msra.mxu0 0
      %1898 = vmatprep.subr.bf16.mxu0 0
      %1899 = vmatpush1.bf16.xpose.msra.mxu0 0
      %1900 = vmatprep.subr.bf16.mxu0 0
      %1901 = vmatpush1.bf16.xpose.msra.mxu0 0
      %1902 = vmatprep.subr.bf16.mxu0 0
      %1903 = vmatpush1.bf16.xpose.msra.mxu0 0
      %1904 = vmatprep.subr.bf16.mxu0 0
      %1905 = vmatpush1.bf16.xpose.msra.mxu0 0
      %1906 = vmatprep.subr.bf16.mxu0 0
      %1907 = vmatpush1.bf16.xpose.msra.mxu0 0
      %1908 = vmatprep.subr.bf16.mxu0 0
      %1909 = vmatpush1.bf16.xpose.msra.mxu0 0
      %1910 = vmatprep.subr.bf16.mxu0 0
      %1911 = vmatpush1.bf16.xpose.msra.mxu0 0
      %1912 = vmatprep.subr.bf16.mxu0 0
      %1913 = vmatpush1.bf16.xpose.msra.mxu0 0
      %1914 = vmatprep.subr.bf16.mxu0 0
      %1915 = vmatpush1.bf16.xpose.msra.mxu0 0
      %1916 = vmatprep.subr.bf16.mxu0 0
      %1917 = vmatpush1.bf16.xpose.msra.mxu0 0
      %1918 = vmatprep.subr.bf16.mxu0 0
      %1919 = vmatpush1.bf16.xpose.msra.mxu0 0
      %1920 = vmatprep.subr.bf16.mxu0 0
      %1921 = vmatpush1.bf16.xpose.msra.mxu0 0
      %1922 = vmatprep.subr.bf16.mxu0 0
      %1923 = vmatpush1.bf16.xpose.msra.mxu0 0
      %1924 = vmatprep.mubr.bf16.mxu0 0
      %1925 = vmatmul.mubr.bf16.gmra.mrb[0].mxu0 %v1887
      %v1926 = vpop.f32.mrb[0].mxu0
      %v1927 = vadd.f32 %v347, %v1926
      %v1928 = vpop.f32.mrb[0].mxu0
      %v1929 = vpop.f32.mrb[0].mxu0
      %v1930 = vpop.f32.mrb[0].mxu0
      %1931 = vdwg.mxu0
      %v1932 = vsel %vm469, %v1927, -inf
      %1933 = vmax.xlane.f32.xlu0 %v1932
      %v1934 = vpop.xlane.xlu0 %1933
      %v1935 = vsub.f32 %v1927, %v1934
      %v1936 = vmul.f32 %v1935, 1.442695
      %v1937 = vpow.pop %v1936
      %v1938 = vsel %vm469, %v1937, 0.0
      %1939 = vadd.xlane.f32.xlu0 %v1938
      %v1940 = vpop.xlane.xlu0 %1939
      %v1941 = vrcp.pop %v1940
      %v1942 = vmul.f32 %v1937, %v1941
      %v1943 = vpack.c.bf16 %v1942, %v1942
      %1944 = vrot.lane.b32.xlu0 %v1409, 40
      %v1945 = vpop.permute.xlu0 %1944
      %v1947 = vsel %vm469, %v1943, 0
      %v1950 = vsel %vm533, %v1945, 0
      %1952 = vmatprep.subr.bf16.mxu0 0
      %1953 = vmatpush1.bf16.msra.mxu0 %v1950
      %1954 = vmatprep.subr.bf16.mxu0 0
      %1955 = vmatpush1.bf16.msra.mxu0 0
      %1956 = vmatprep.subr.bf16.mxu0 0
      %1957 = vmatpush1.bf16.msra.mxu0 0
      %1958 = vmatprep.subr.bf16.mxu0 0
      %1959 = vmatpush1.bf16.msra.mxu0 0
      %1960 = vmatprep.subr.bf16.mxu0 0
      %1961 = vmatpush1.bf16.msra.mxu0 0
      %1962 = vmatprep.subr.bf16.mxu0 0
      %1963 = vmatpush1.bf16.msra.mxu0 0
      %1964 = vmatprep.subr.bf16.mxu0 0
      %1965 = vmatpush1.bf16.msra.mxu0 0
      %1966 = vmatprep.subr.bf16.mxu0 0
      %1967 = vmatpush1.bf16.msra.mxu0 0
      %1968 = vmatprep.subr.bf16.mxu0 0
      %1969 = vmatpush1.bf16.msra.mxu0 0
      %1970 = vmatprep.subr.bf16.mxu0 0
      %1971 = vmatpush1.bf16.msra.mxu0 0
      %1972 = vmatprep.subr.bf16.mxu0 0
      %1973 = vmatpush1.bf16.msra.mxu0 0
      %1974 = vmatprep.subr.bf16.mxu0 0
      %1975 = vmatpush1.bf16.msra.mxu0 0
      %1976 = vmatprep.subr.bf16.mxu0 0
      %1977 = vmatpush1.bf16.msra.mxu0 0
      %1978 = vmatprep.subr.bf16.mxu0 0
      %1979 = vmatpush1.bf16.msra.mxu0 0
      %1980 = vmatprep.subr.bf16.mxu0 0
      %1981 = vmatpush1.bf16.msra.mxu0 0
      %1982 = vmatprep.subr.bf16.mxu0 0
      %1983 = vmatpush1.bf16.msra.mxu0 0
      %1984 = vmatprep.mubr.bf16.mxu0 0
      %1985 = vmatmul.mubr.bf16.gmra.mrb[0].mxu0 %v1947
      %v1986 = vpop.f32.mrb[0].mxu0
      %v1987 = vadd.f32 0.0, %v1986
      %v1988 = vpop.f32.mrb[0].mxu0
      %v1989 = vpop.f32.mrb[0].mxu0
      %v1990 = vpop.f32.mrb[0].mxu0
      %1991 = vdwg.mxu0
      %v1992 = vpack.c.bf16 %v1987, %v1987
      %v1994 = vsel %vm469, %v1992, 0
      %v1997 = vsel %vm533, %v1324, 0
      %1999 = vmatprep.subr.bf16.mxu0 0
      %2000 = vmatpush1.bf16.msra.mxu0 %v1997
      %2001 = vmatprep.subr.bf16.mxu0 0
      %2002 = vmatpush1.bf16.msra.mxu0 0
      %2003 = vmatprep.subr.bf16.mxu0 0
      %2004 = vmatpush1.bf16.msra.mxu0 0
      %2005 = vmatprep.subr.bf16.mxu0 0
      %2006 = vmatpush1.bf16.msra.mxu0 0
      %2007 = vmatprep.subr.bf16.mxu0 0
      %2008 = vmatpush1.bf16.msra.mxu0 0
      %2009 = vmatprep.subr.bf16.mxu0 0
      %2010 = vmatpush1.bf16.msra.mxu0 0
      %2011 = vmatprep.subr.bf16.mxu0 0
      %2012 = vmatpush1.bf16.msra.mxu0 0
      %2013 = vmatprep.subr.bf16.mxu0 0
      %2014 = vmatpush1.bf16.msra.mxu0 0
      %2015 = vmatprep.subr.bf16.mxu0 0
      %2016 = vmatpush1.bf16.msra.mxu0 0
      %2017 = vmatprep.subr.bf16.mxu0 0
      %2018 = vmatpush1.bf16.msra.mxu0 0
      %2019 = vmatprep.subr.bf16.mxu0 0
      %2020 = vmatpush1.bf16.msra.mxu0 0
      %2021 = vmatprep.subr.bf16.mxu0 0
      %2022 = vmatpush1.bf16.msra.mxu0 0
      %2023 = vmatprep.subr.bf16.mxu0 0
      %2024 = vmatpush1.bf16.msra.mxu0 0
      %2025 = vmatprep.subr.bf16.mxu0 0
      %2026 = vmatpush1.bf16.msra.mxu0 0
      %2027 = vmatprep.subr.bf16.mxu0 0
      %2028 = vmatpush1.bf16.msra.mxu0 0
      %2029 = vmatprep.subr.bf16.mxu0 0
      %2030 = vmatpush1.bf16.msra.mxu0 0
      %2031 = vmatprep.mubr.bf16.mxu0 0
      %2032 = vmatmul.mubr.bf16.gmra.mrb[0].mxu0 %v1994
      %v2033 = vpop.f32.mrb[0].mxu0
      %v2034 = vadd.f32 0.0, %v2033
      %v2035 = vpop.f32.mrb[0].mxu0
      %v2036 = vpop.f32.mrb[0].mxu0
      %v2037 = vpop.f32.mrb[0].mxu0
      %2038 = vdwg.mxu0
      %v2039 = vadd.f32 %v1881, %v2034
      %v2040 = vlaneseq
      %v2041 = vshrl.u32 %v2040, 7
      %v2042 = vsub.s32 1, %v2041
      %v2043 = vrot.slane %v1314, %v2042
      %v2044 = vadd.f32 %v2039, %v2043
      %v2045 = vadd.f32 %v1312, %v2044
      %v2046 = vsel %vm349, %v2045, 0.0
      %2047 = vadd.xlane.f32.xlu0 %v2046
      %v2048 = vpop.xlane.xlu0 %2047
      %v2049 = vmul.f32 %v2048, %v353
      %v2050 = vsub.f32 %v2045, %v2049
      %v2051 = vmul.f32 %v2050, %v2050
      %v2052 = vsel %vm349, %v2051, 0.0
      %2053 = vadd.xlane.f32.xlu0 %v2052
      %v2054 = vpop.xlane.xlu0 %2053
      %v2055 = vmul.f32 %v2054, %v353
      %v2056 = vadd.f32 %v2055, 1e-12
      %v2057 = vrsqrt.pop %v2056
      %v2058 = vmul.f32 %v2050, %v2057
      %v2059 = vlaneseq
      %v2060 = vshrl.u32 %v2059, 7
      %v2061 = vsub.s32 2, %v2060
      %v2062 = vrot.slane %v1314, %v2061
      %v2063 = vmul.f32 %v2058, %v2062
      %v2064 = vlaneseq
      %v2065 = vshrl.u32 %v2064, 7
      %v2066 = vsub.s32 3, %v2065
      %v2067 = vrot.slane %v1314, %v2066
      %v2068 = vadd.f32 %v2063, %v2067
      %v2069 = vpack.c.bf16 %v2068, %v2068
      %v2070 = vlaneseq
      %v2071 = vshrl.u32 %v2070, 7
      %v2072 = vsub.s32 4, %v2071
      %v2073 = vrot.slane %v1314, %v2072
      %v2078 = vunpack.c.l.b16 %v1326
      %v2079 = vunpack.c.l.b16 %v1327
      %v2080 = vunpack.c.l.b16 %v1328
      %v2081 = vunpack.c.l.b16 %v1329
      %v2082 = vpack.c.b16 %v2079, %v2078
      %v2083 = vpack.c.b16 %v2081, %v2080
      %v2087 = vsel %vm349, %v2069, 0
      %2089 = vmatprep.subr.bf16.mxu0 0
      %2090 = vmatpush1.bf16.msra.mxu0 %v2082
      %2091 = vmatprep.subr.bf16.mxu0 0
      %2092 = vmatpush1.bf16.msra.mxu0 %v2083
      %2093 = vmatprep.subr.bf16.mxu0 0
      %2094 = vmatpush1.bf16.msra.mxu0 0
      %2095 = vmatprep.subr.bf16.mxu0 0
      %2096 = vmatpush1.bf16.msra.mxu0 0
      %2097 = vmatprep.subr.bf16.mxu0 0
      %2098 = vmatpush1.bf16.msra.mxu0 0
      %2099 = vmatprep.subr.bf16.mxu0 0
      %2100 = vmatpush1.bf16.msra.mxu0 0
      %2101 = vmatprep.subr.bf16.mxu0 0
      %2102 = vmatpush1.bf16.msra.mxu0 0
      %2103 = vmatprep.subr.bf16.mxu0 0
      %2104 = vmatpush1.bf16.msra.mxu0 0
      %2105 = vmatprep.subr.bf16.mxu0 0
      %2106 = vmatpush1.bf16.msra.mxu0 0
      %2107 = vmatprep.subr.bf16.mxu0 0
      %2108 = vmatpush1.bf16.msra.mxu0 0
      %2109 = vmatprep.subr.bf16.mxu0 0
      %2110 = vmatpush1.bf16.msra.mxu0 0
      %2111 = vmatprep.subr.bf16.mxu0 0
      %2112 = vmatpush1.bf16.msra.mxu0 0
      %2113 = vmatprep.subr.bf16.mxu0 0
      %2114 = vmatpush1.bf16.msra.mxu0 0
      %2115 = vmatprep.subr.bf16.mxu0 0
      %2116 = vmatpush1.bf16.msra.mxu0 0
      %2117 = vmatprep.subr.bf16.mxu0 0
      %2118 = vmatpush1.bf16.msra.mxu0 0
      %2119 = vmatprep.subr.bf16.mxu0 0
      %2120 = vmatpush1.bf16.msra.mxu0 0
      %2121 = vmatprep.mubr.bf16.mxu0 0
      %2122 = vmatmul.mubr.bf16.gmra.mrb[0].mxu0 %v2087
      %v2123 = vpop.f32.mrb[0].mxu0
      %v2124 = vadd.f32 %v2073, %v2123
      %v2125 = vpop.f32.mrb[0].mxu0
      %v2126 = vpop.f32.mrb[0].mxu0
      %v2127 = vpop.f32.mrb[0].mxu0
      %2128 = vdwg.mxu0
      %v2129 = vmul.f32 %v2124, 0.5
      %v2130 = vmul.f32 %v2124, 0.044715
      %v2131 = vmul.f32 %v2130, %v2124
      %v2132 = vmul.f32 %v2131, %v2124
      %v2133 = vadd.f32 %v2124, %v2132
      %v2134 = vmul.f32 %v2133, 0.7978846
      %v2135 = vtanh.pop %v2134
      %v2136 = vadd.f32 %v2135, 1.0
      %v2137 = vmul.f32 %v2129, %v2136
      %v2138 = vpack.c.bf16 %v2137, %v2137
      %v2139 = vlaneseq
      %v2140 = vshrl.u32 %v2139, 7
      %v2141 = vsub.s32 5, %v2140
      %v2142 = vrot.slane %v1314, %v2141
      %v2159 = vunpack.c.l.b16 %v1331
      %v2160 = vunpack.c.l.b16 %v1332
      %v2161 = vunpack.c.l.b16 %v1333
      %v2162 = vunpack.c.l.b16 %v1334
      %v2163 = vunpack.c.l.b16 %v1335
      %v2164 = vunpack.c.l.b16 %v1336
      %v2165 = vunpack.c.l.b16 %v1337
      %v2166 = vunpack.c.l.b16 %v1338
      %v2167 = vunpack.c.l.b16 %v1339
      %v2168 = vunpack.c.l.b16 %v1340
      %v2169 = vunpack.c.l.b16 %v1341
      %v2170 = vunpack.c.l.b16 %v1342
      %v2171 = vunpack.c.l.b16 %v1343
      %v2172 = vunpack.c.l.b16 %v1344
      %v2173 = vunpack.c.l.b16 %v1345
      %v2174 = vunpack.c.l.b16 %v1346
      %v2175 = vpack.c.b16 %v2160, %v2159
      %v2176 = vpack.c.b16 %v2162, %v2161
      %v2177 = vpack.c.b16 %v2164, %v2163
      %v2178 = vpack.c.b16 %v2166, %v2165
      %v2179 = vpack.c.b16 %v2168, %v2167
      %v2180 = vpack.c.b16 %v2170, %v2169
      %v2181 = vpack.c.b16 %v2172, %v2171
      %v2182 = vpack.c.b16 %v2174, %v2173
      %2191 = vmatprep.subr.bf16.mxu0 0
      %2192 = vmatpush1.bf16.msra.mxu0 %v2175
      %2193 = vmatprep.subr.bf16.mxu0 0
      %2194 = vmatpush1.bf16.msra.mxu0 %v2176
      %2195 = vmatprep.subr.bf16.mxu0 0
      %2196 = vmatpush1.bf16.msra.mxu0 %v2177
      %2197 = vmatprep.subr.bf16.mxu0 0
      %2198 = vmatpush1.bf16.msra.mxu0 %v2178
      %2199 = vmatprep.subr.bf16.mxu0 0
      %2200 = vmatpush1.bf16.msra.mxu0 %v2179
      %2201 = vmatprep.subr.bf16.mxu0 0
      %2202 = vmatpush1.bf16.msra.mxu0 %v2180
      %2203 = vmatprep.subr.bf16.mxu0 0
      %2204 = vmatpush1.bf16.msra.mxu0 %v2181
      %2205 = vmatprep.subr.bf16.mxu0 0
      %2206 = vmatpush1.bf16.msra.mxu0 %v2182
      %2207 = vmatprep.subr.bf16.mxu0 0
      %2208 = vmatpush1.bf16.msra.mxu0 0
      %2209 = vmatprep.subr.bf16.mxu0 0
      %2210 = vmatpush1.bf16.msra.mxu0 0
      %2211 = vmatprep.subr.bf16.mxu0 0
      %2212 = vmatpush1.bf16.msra.mxu0 0
      %2213 = vmatprep.subr.bf16.mxu0 0
      %2214 = vmatpush1.bf16.msra.mxu0 0
      %2215 = vmatprep.subr.bf16.mxu0 0
      %2216 = vmatpush1.bf16.msra.mxu0 0
      %2217 = vmatprep.subr.bf16.mxu0 0
      %2218 = vmatpush1.bf16.msra.mxu0 0
      %2219 = vmatprep.subr.bf16.mxu0 0
      %2220 = vmatpush1.bf16.msra.mxu0 0
      %2221 = vmatprep.subr.bf16.mxu0 0
      %2222 = vmatpush1.bf16.msra.mxu0 0
      %2223 = vmatprep.mubr.bf16.mxu0 0
      %2224 = vmatmul.mubr.bf16.gmra.mrb[0].mxu0 %v2138
      %v2225 = vpop.f32.mrb[0].mxu0
      %v2226 = vadd.f32 %v2142, %v2225
      %v2227 = vpop.f32.mrb[0].mxu0
      %v2228 = vpop.f32.mrb[0].mxu0
      %v2229 = vpop.f32.mrb[0].mxu0
      %2230 = vdwg.mxu0
      %v2231 = vadd.f32 %v2068, %v2226
      %v2232 = vsel %vm349, %v2231, 0.0
      %2233 = vadd.xlane.f32.xlu0 %v2232
      %v2234 = vpop.xlane.xlu0 %2233
      %v2235 = vmul.f32 %v2234, %v353
      %v2236 = vsub.f32 %v2231, %v2235
      %v2237 = vmul.f32 %v2236, %v2236
      %v2238 = vsel %vm349, %v2237, 0.0
      %2239 = vadd.xlane.f32.xlu0 %v2238
      %v2240 = vpop.xlane.xlu0 %2239
      %v2241 = vmul.f32 %v2240, %v353
      %v2242 = vadd.f32 %v2241, 1e-12
      %v2243 = vrsqrt.pop %v2242
      %v2244 = vmul.f32 %v2236, %v2243
      %v2245 = vlaneseq
      %v2246 = vshrl.u32 %v2245, 7
      %v2247 = vsub.s32 6, %v2246
      %v2248 = vrot.slane %v1314, %v2247
      %v2249 = vmul.f32 %v2244, %v2248
      %v2250 = vlaneseq
      %v2251 = vshrl.u32 %v2250, 7
      %v2252 = vsub.s32 7, %v2251
      %v2253 = vrot.slane %v1314, %v2252
      %v2254 = vadd.f32 %v2249, %v2253
      %v2255 = vlaneseq
      %v2256 = vshrl.u32 %v2255, 7
      %v2257 = vsub.s32 0, %v2256
      %v2258 = vrot.slane %v2254, %v2257
      %v2259 = vld [vmem:[%s8] sm:$0xf]
      %v2260 = vld [vmem:[%s8 + $0x4] sm:$0xf]
      %v2261 = vld [vmem:[%s8 + $0x8] sm:$0xf]
      %v2262 = vld [vmem:[%s8 + $0xc] sm:$0xf]
      %v2263 = vpack.c.bf16 %v2258, %v2258
      %v2264 = vlaneseq
      %v2265 = vshrl.u32 %v2264, 7
      %v2266 = vsub.s32 2, %v2265
      %v2267 = vrot.slane %v346, %v2266
      %v2272 = vunpack.c.l.b16 %v2259
      %v2273 = vunpack.c.l.b16 %v2260
      %v2274 = vunpack.c.l.b16 %v2261
      %v2275 = vunpack.c.l.b16 %v2262
      %v2276 = vpack.c.b16 %v2273, %v2272
      %v2277 = vpack.c.b16 %v2275, %v2274
      %v2281 = vsel %vm349, %v2263, 0
      %2283 = vmatprep.subr.bf16.mxu0 0
      %2284 = vmatpush1.bf16.msra.mxu0 %v2276
      %2285 = vmatprep.subr.bf16.mxu0 0
      %2286 = vmatpush1.bf16.msra.mxu0 %v2277
      %2287 = vmatprep.subr.bf16.mxu0 0
      %2288 = vmatpush1.bf16.msra.mxu0 0
      %2289 = vmatprep.subr.bf16.mxu0 0
      %2290 = vmatpush1.bf16.msra.mxu0 0
      %2291 = vmatprep.subr.bf16.mxu0 0
      %2292 = vmatpush1.bf16.msra.mxu0 0
      %2293 = vmatprep.subr.bf16.mxu0 0
      %2294 = vmatpush1.bf16.msra.mxu0 0
      %2295 = vmatprep.subr.bf16.mxu0 0
      %2296 = vmatpush1.bf16.msra.mxu0 0
      %2297 = vmatprep.subr.bf16.mxu0 0
      %2298 = vmatpush1.bf16.msra.mxu0 0
      %2299 = vmatprep.subr.bf16.mxu0 0
      %2300 = vmatpush1.bf16.msra.mxu0 0
      %2301 = vmatprep.subr.bf16.mxu0 0
      %2302 = vmatpush1.bf16.msra.mxu0 0
      %2303 = vmatprep.subr.bf16.mxu0 0
      %2304 = vmatpush1.bf16.msra.mxu0 0
      %2305 = vmatprep.subr.bf16.mxu0 0
      %2306 = vmatpush1.bf16.msra.mxu0 0
      %2307 = vmatprep.subr.bf16.mxu0 0
      %2308 = vmatpush1.bf16.msra.mxu0 0
      %2309 = vmatprep.subr.bf16.mxu0 0
      %2310 = vmatpush1.bf16.msra.mxu0 0
      %2311 = vmatprep.subr.bf16.mxu0 0
      %2312 = vmatpush1.bf16.msra.mxu0 0
      %2313 = vmatprep.subr.bf16.mxu0 0
      %2314 = vmatpush1.bf16.msra.mxu0 0
      %2315 = vmatprep.mubr.bf16.mxu0 0
      %2316 = vmatmul.mubr.bf16.gmra.mrb[0].mxu0 %v2281
      %v2317 = vpop.f32.mrb[0].mxu0
      %v2318 = vadd.f32 %v2267, %v2317
      %v2319 = vpop.f32.mrb[0].mxu0
      %v2320 = vpop.f32.mrb[0].mxu0
      %v2321 = vpop.f32.mrb[0].mxu0
      %2322 = vdwg.mxu0
      %2323 = vst [vmem:[%s344] sm:$0xff] %v2318
      %p2324 = scmp.lt.s32.totalorder %s20, 1
      %s2325 = scalar_select %p2324, %s20, 1
      %s2326 = smul.addr %s2325, 8
      %s2327 = scalar_lea.vmem %s9, %s2326
      // Predicated region
      $region57: #{_lambda_.1} parent=55 // pred_check
        %p2328 = pneg %p237
      $region58: #{_lambda_.1} parent=55 // pred_check_branch
        %2330 = sbr.rel (%p2328) target = $region60
      $region59: #{_lambda_.1} parent=55 // pred_region
        _
      $region60: #{_lambda_.1} parent=55 // pred_fallthru
        _
    $region56: #{_lambda_.1} parent=5 // pred_fallthru
      _
    %p2331 = scmp.le.s32.totalorder 2, %s15
    // Predicated region
    $region61: #{_lambda_.1} parent=5 // pred_check
      %p2332 = pneg %p2331
    $region62: #{_lambda_.1} parent=5 // pred_check_branch
      %2334 = sbr.rel (%p2332) target = $region64
    $region63: #{_lambda_.1} parent=5 // pred_region
      %s2335 = ssub.s32 %s15, 2
      // Predicated region
      $region65: #{_lambda_.1} parent=63 // pred_check
        %p2336 = pneg %p243
      $region66: #{_lambda_.1} parent=63 // pred_check_branch
        %2338 = sbr.rel (%p2336) target = $region68
      $region67: #{_lambda_.1} parent=63 // pred_region
        %p2339 = scmp.lt.s32.totalorder %s21, 1
        %s2340 = scalar_select %p2339, %s21, 1
        %s2341 = smul.addr %s2340, 8
        %s2342 = scalar_lea.vmem %s9, %s2341
      $region68: #{_lambda_.1} parent=63 // pred_fallthru
        _
    $region64: #{_lambda_.1} parent=5 // pred_fallthru
      _
  $region6: #{_lambda_.1} parent=0 // loop_footer
    %s19 = sadd.s32 1, %s15
  $region7: #{_lambda_.1} parent=0 // loop_footer_branch
    %14 = sbr.rel target = $region3
  $region8: #{_lambda_.1} parent=0 // loop_exit
    _

</llo_original>
